<compile_context>
chip_gen: v6e
topology: v6e:2x2x1
jax: 0.10.0
libtpu: 0.0.40
codegen_flags: <defaults>
</compile_context>

<pallas_src>
import functools

import jax
import jax.numpy as jnp
from jax.experimental import pallas as pl
from jax.experimental.pallas import tpu as pltpu


# ---------------------------------------------------------------------------
# Fused kernel
# ---------------------------------------------------------------------------
def _bottleneck_kernel(xc_ref, x_hbm, w1_ref, w2_ref, w3_ref,
                       s1_ref, b1_ref, s2_ref, b2_ref, s3_ref, b3_ref,
                       o_ref,
                       halo_buf, dma_sem, y1p_ref,
                       *, TH, H, W):
    n = pl.program_id(0)          # batch element
    i = pl.program_id(1)          # row tile
    n_tiles = pl.num_programs(1)
    P = w1_ref.shape[0]           # planes (bottleneck width)

    # ---- kick off the two halo-row DMAs (1 row above / below this row tile).
    #      At the image border a valid dummy row is fetched and masked later.
    above = jnp.maximum(i * TH - 1, 0)
    below = jnp.minimum(i * TH + TH, H - 1)
    cp_a = pltpu.make_async_copy(x_hbm.at[n, :, pl.ds(above, 1), :],
                                 halo_buf.at[0], dma_sem.at[0])
    cp_b = pltpu.make_async_copy(x_hbm.at[n, :, pl.ds(below, 1), :],
                                 halo_buf.at[1], dma_sem.at[1])
    cp_a.start()
    cp_b.start()

    w1 = w1_ref[...]              # (P, Cin)  -- PyTorch (out, in) layout
    s1 = s1_ref[...]              # (P, 1)
    b1 = b1_ref[...]

    def conv1_bn_relu(v):         # v: (Cin, S) -> (P, S)
        y = jnp.dot(w1, v, preferred_element_type=jnp.float32)
        return jnp.maximum(y * s1 + b1, 0.0)

    # conv1 on the centre rows overlaps with the halo DMAs.
    xc = xc_ref[0].astype(jnp.float32)            # (Cin, TH*W)
    y1c = conv1_bn_relu(xc)                       # (P, TH*W)

    cp_a.wait()
    y1a = conv1_bn_relu(halo_buf[0, :, 0, :].astype(jnp.float32))   # (P, W)
    y1a = jnp.where(i > 0, y1a, 0.0)              # zero-pad above image top

    cp_b.wait()
    y1b = conv1_bn_relu(halo_buf[1, :, 0, :].astype(jnp.float32))   # (P, W)
    y1b = jnp.where(i < n_tiles - 1, y1b, 0.0)    # zero-pad below image bottom

    # ---- assemble the zero-padded conv2 input (P, TH+2, W+2) in VMEM scratch.
    y1p_ref[...] = jnp.zeros_like(y1p_ref)
    y1p_ref[:, 0:1, 1:W + 1] = y1a.reshape(P, 1, W)
    y1p_ref[:, 1:TH + 1, 1:W + 1] = y1c.reshape(P, TH, W)
    y1p_ref[:, TH + 1:TH + 2, 1:W + 1] = y1b.reshape(P, 1, W)

    # ---- conv2 (3x3, stride 1, pad 1) + bn2 + relu : 9 shifted matmuls.
    acc = jnp.zeros((P, TH * W), jnp.float32)
    for kh in range(3):
        for kw in range(3):
            patch = y1p_ref[:, kh:kh + TH, kw:kw + W].reshape(P, TH * W)
            acc = acc + jnp.dot(w2_ref[kh * 3 + kw], patch,
                                preferred_element_type=jnp.float32)
    y2 = jnp.maximum(acc * s2_ref[...] + b2_ref[...], 0.0)          # (P, TH*W)

    # ---- conv3 (1x1) + bn3 + residual add + relu.
    y3 = jnp.dot(w3_ref[...], y2, preferred_element_type=jnp.float32)
    y3 = y3 * s3_ref[...] + b3_ref[...] + xc      # residual == input (downsample None)
    o_ref[0] = jnp.maximum(y3, 0.0).astype(o_ref.dtype)


# ---------------------------------------------------------------------------
# Wrapper
# ---------------------------------------------------------------------------
def _pick_row_tile(H, W):
    """Row tile TH with H % TH == 0 and a lane-dense (TH*W) % 128 == 0."""
    cands = [th for th in (8, 16, 32, 64, 128)
             if H % th == 0 and (th * W) % 128 == 0]
    if not cands:
        return H                      # fall back to whole image per tile
    for th in cands:
        if th * W >= 1024:            # prefer bigger tiles for real feature maps
            return th
    return cands[0]


def bottleneck_forward(x_nchw, params, stride=1):
    """Forward pass of the PyTorch Bottleneck block (inference-mode BN)."""
    if stride != 1:
        # TODO(synk): stride != 1 needs a downsample branch; not implemented.
        raise NotImplementedError("fused bottleneck kernel supports stride=1 only")
    w1, w2t, w3 = params["w1"], params["w2t"], params["w3"]
    N, Cin, H, W = x_nchw.shape
    P = w1.shape[0]
    Cout = w3.shape[0]
    if Cout != Cin:
        raise ValueError("downsample=None requires inplanes == planes * expansion")

    TH = _pick_row_tile(H, W)
    n_tiles = H // TH

    def col(v):                       # per-channel params as (C, 1) columns
        return jnp.asarray(v, jnp.float32).reshape(-1, 1)

    s1, b1 = col(params["s1"]), col(params["b1"])
    s2, b2 = col(params["s2"]), col(params["b2"])
    s3, b3 = col(params["s3"]), col(params["b3"])

    x3 = x_nchw.reshape(N, Cin, H * W)   # free reshape: lane dim = flat H*W

    kernel = functools.partial(_bottleneck_kernel, TH=TH, H=H, W=W)
    out3 = pl.pallas_call(
        kernel,
        out_shape=jax.ShapeDtypeStruct((N, Cout, H * W), x_nchw.dtype),
        grid_spec=pltpu.PrefetchScalarGridSpec(
            num_scalar_prefetch=0,
            grid=(N, n_tiles),
            in_specs=[
                pl.BlockSpec((1, Cin, TH * W), lambda n, i: (n, 0, i)),  # centre tile
                pl.BlockSpec(memory_space=pl.ANY),                       # full x (halo DMA)
                pl.BlockSpec((P, Cin), lambda n, i: (0, 0)),             # conv1 weight
                pl.BlockSpec((9, P, P), lambda n, i: (0, 0, 0)),         # conv2 taps
                pl.BlockSpec((Cout, P), lambda n, i: (0, 0)),            # conv3 weight
                pl.BlockSpec((P, 1), lambda n, i: (0, 0)),               # s1
                pl.BlockSpec((P, 1), lambda n, i: (0, 0)),               # b1
                pl.BlockSpec((P, 1), lambda n, i: (0, 0)),               # s2
                pl.BlockSpec((P, 1), lambda n, i: (0, 0)),               # b2
                pl.BlockSpec((Cout, 1), lambda n, i: (0, 0)),            # s3
                pl.BlockSpec((Cout, 1), lambda n, i: (0, 0)),            # b3
            ],
            out_specs=pl.BlockSpec((1, Cout, TH * W), lambda n, i: (n, 0, i)),
            scratch_shapes=[
                pltpu.VMEM((2, Cin, 1, W), x_nchw.dtype),       # halo rows
                pltpu.SemaphoreType.DMA((2,)),
                pltpu.VMEM((P, TH + 2, W + 2), jnp.float32),    # padded conv2 input
            ]),
        compiler_params=pltpu.CompilerParams(
            dimension_semantics=("parallel", "parallel")),
    )(x3, x_nchw, w1, w2t, w3, s1, b1, s2, b2, s3, b3)
    return out3.reshape(N, Cout, H, W)


# ---------------------------------------------------------------------------
# Pure-JAX reference (mirrors the PyTorch module with folded BN, NCHW)
# ---------------------------------------------------------------------------
def reference_forward(x, w1, w2_oihw, w3, s1, b1, s2, b2, s3, b3):
    def bn(v, s, b):
        return v * s[None, :, None, None] + b[None, :, None, None]
    o = jnp.einsum("oc,nchw->nohw", w1, x)
    o = jnp.maximum(bn(o, s1, b1), 0.0)
    o = jax.lax.conv_general_dilated(
        o, w2_oihw, window_strides=(1, 1), padding=((1, 1), (1, 1)),
        dimension_numbers=("NCHW", "OIHW", "NCHW"))
    o = jnp.maximum(bn(o, s2, b2), 0.0)
    o = jnp.einsum("oc,nchw->nohw", w3, o)
    o = jnp.maximum(bn(o, s3, b3) + x, 0.0)
    return o


# ---------------------------------------------------------------------------
if __name__ == "__main__":
    key = jax.random.PRNGKey(0)
    N, H, W = 2, 16, 16
    planes = 4
    expansion = 4
    inplanes = planes * expansion      # residual add works with downsample=None
    stride = 1

    ks = jax.random.split(key, 16)
    x = jax.random.normal(ks[0], (N, inplanes, H, W), jnp.float32)

    def bn_fold(kg, kb, km, kv, c):
        gamma = 1.0 + 0.1 * jax.random.normal(kg, (c,), jnp.float32)
        beta = 0.1 * jax.random.normal(kb, (c,), jnp.float32)
        mean = 0.1 * jax.random.normal(km, (c,), jnp.float32)
        var = jax.nn.softplus(jax.random.normal(kv, (c,), jnp.float32)) + 0.5
        eps = 1e-5
        scale = gamma / jnp.sqrt(var + eps)
        bias = beta - mean * scale
        return scale, bias

    # PyTorch-layout weights: conv1 (P,Cin), conv2 (P,P,3,3) OIHW, conv3 (Cout,P)
    w1 = 0.1 * jax.random.normal(ks[1], (planes, inplanes), jnp.float32)
    w2_oihw = 0.1 * jax.random.normal(ks[2], (planes, planes, 3, 3), jnp.float32)
    w3 = 0.1 * jax.random.normal(ks[3], (planes * expansion, planes), jnp.float32)
    s1, b1 = bn_fold(ks[4], ks[5], ks[6], ks[7], planes)
    s2, b2 = bn_fold(ks[8], ks[9], ks[10], ks[11], planes)
    s3, b3 = bn_fold(ks[12], ks[13], ks[14], ks[15], planes * expansion)

    params = dict(
        w1=w1,                                                        # (P, Cin)
        w2t=jnp.transpose(w2_oihw, (2, 3, 0, 1)).reshape(9, planes, planes),
        w3=w3,                                                        # (Cout, P)
        s1=s1, b1=b1, s2=s2, b2=b2, s3=s3, b3=b3,
    )

    out = bottleneck_forward(x, params, stride=stride)
    out = jax.block_until_ready(out)

    ref = reference_forward(x, w1, w2_oihw, w3, s1, b1, s2, b2, s3, b3)
    assert out.shape == (N, planes * expansion, H, W)
    assert jnp.allclose(out, ref, rtol=1e-4, atol=1e-4), "mismatch vs reference"

    print("KERNEL_OK")
</pallas_src>

<mosaic_0001>
module attributes {stable_mosaic.version = 11 : i64} {
  func.func @_bottleneck_kernel(%arg0: i32, %arg1: i32, %arg2: memref<1x16x128xf32, #tpu.memory_space<vmem>>, %arg3: memref<2x16x16x16xf32, #tpu.memory_space<any>>, %arg4: memref<4x16xf32, #tpu.memory_space<vmem>>, %arg5: memref<9x4x4xf32, #tpu.memory_space<vmem>>, %arg6: memref<16x4xf32, #tpu.memory_space<vmem>>, %arg7: memref<4x1xf32, #tpu.memory_space<vmem>>, %arg8: memref<4x1xf32, #tpu.memory_space<vmem>>, %arg9: memref<4x1xf32, #tpu.memory_space<vmem>>, %arg10: memref<4x1xf32, #tpu.memory_space<vmem>>, %arg11: memref<16x1xf32, #tpu.memory_space<vmem>>, %arg12: memref<16x1xf32, #tpu.memory_space<vmem>>, %arg13: memref<1x16x128xf32, #tpu.memory_space<vmem>>, %arg14: memref<2x16x1x16xf32, #tpu.memory_space<vmem>>, %arg15: memref<2x!tpu.dma_semaphore, #tpu.memory_space<semaphore_mem>>, %arg16: memref<4x10x18xf32, #tpu.memory_space<vmem>>) attributes {dimension_semantics = [#tpu.dimension_semantics<parallel>, #tpu.dimension_semantics<parallel>], iteration_bounds = array<i64: 2, 2>, scalar_prefetch = 0 : i64, scratch_operands = 3 : i64, tpu.core_type = #tpu.core_type<tc>, window_params = [{transform_indices = @transform_0, window_bounds = array<i64: 1, 16, 128>}, {}, {pipeline_mode = #tpu.pipeline_mode<synchronous>, transform_indices = @transform_2, window_bounds = array<i64: 4, 16>}, {pipeline_mode = #tpu.pipeline_mode<synchronous>, transform_indices = @transform_3, window_bounds = array<i64: 9, 4, 4>}, {pipeline_mode = #tpu.pipeline_mode<synchronous>, transform_indices = @transform_4, window_bounds = array<i64: 16, 4>}, {pipeline_mode = #tpu.pipeline_mode<synchronous>, transform_indices = @transform_5, window_bounds = array<i64: 4, 1>}, {pipeline_mode = #tpu.pipeline_mode<synchronous>, transform_indices = @transform_6, window_bounds = array<i64: 4, 1>}, {pipeline_mode = #tpu.pipeline_mode<synchronous>, transform_indices = @transform_7, window_bounds = array<i64: 4, 1>}, {pipeline_mode = #tpu.pipeline_mode<synchronous>, transform_indices = @transform_8, window_bounds = array<i64: 4, 1>}, {pipeline_mode = #tpu.pipeline_mode<synchronous>, transform_indices = @transform_9, window_bounds = array<i64: 16, 1>}, {pipeline_mode = #tpu.pipeline_mode<synchronous>, transform_indices = @transform_10, window_bounds = array<i64: 16, 1>}, {transform_indices = @transform_11, window_bounds = array<i64: 1, 16, 128>}]} {
    %c8_i32 = arith.constant 8 : i32
    %0 = arith.muli %arg1, %c8_i32 : i32
    %c1_i32 = arith.constant 1 : i32
    %1 = arith.subi %0, %c1_i32 : i32
    %c0_i32 = arith.constant 0 : i32
    %2 = arith.maxsi %1, %c0_i32 : i32
    %c8_i32_0 = arith.constant 8 : i32
    %3 = arith.muli %arg1, %c8_i32_0 : i32
    %c8_i32_1 = arith.constant 8 : i32
    %4 = arith.addi %3, %c8_i32_1 : i32
    %c15_i32 = arith.constant 15 : i32
    %5 = arith.minsi %4, %c15_i32 : i32
    %c0_i32_2 = arith.constant 0 : i32
    %c0_i32_3 = arith.constant 0 : i32
    %c0_i32_4 = arith.constant 0 : i32
    %c0_i32_5 = arith.constant 0 : i32
    %6 = tpu.memref_slice %arg3[%arg0, %c0_i32_4, %2, %c0_i32_5] : memref<2x16x16x16xf32, #tpu.memory_space<any>> -> memref<1x16x1x16xf32, #tpu.memory_space<any>>
    %7 = tpu.memref_squeeze %6 : memref<1x16x1x16xf32, #tpu.memory_space<any>> -> memref<16x1x16xf32, #tpu.memory_space<any>>
    %c0_i32_6 = arith.constant 0 : i32
    %c0_i32_7 = arith.constant 0 : i32
    %c0_i32_8 = arith.constant 0 : i32
    %8 = tpu.memref_slice %arg14[%c0_i32_2, %c0_i32_6, %c0_i32_7, %c0_i32_8] : memref<2x16x1x16xf32, #tpu.memory_space<vmem>> -> memref<1x16x1x16xf32, #tpu.memory_space<vmem>>
    %9 = tpu.memref_squeeze %8 : memref<1x16x1x16xf32, #tpu.memory_space<vmem>> -> memref<16x1x16xf32, #tpu.memory_space<vmem>>
    %10 = tpu.memref_slice %arg15[%c0_i32_3] : memref<2x!tpu.dma_semaphore, #tpu.memory_space<semaphore_mem>> -> memref<1x!tpu.dma_semaphore, #tpu.memory_space<semaphore_mem>>
    %11 = tpu.memref_squeeze %10 : memref<1x!tpu.dma_semaphore, #tpu.memory_space<semaphore_mem>> -> memref<!tpu.dma_semaphore, #tpu.memory_space<semaphore_mem>>
    tpu.enqueue_dma source(%7 : memref<16x1x16xf32, #tpu.memory_space<any>>) target(%9 : memref<16x1x16xf32, #tpu.memory_space<vmem>>) target_semaphore(%11 : memref<!tpu.dma_semaphore, #tpu.memory_space<semaphore_mem>>)
    %c1_i32_9 = arith.constant 1 : i32
    %c1_i32_10 = arith.constant 1 : i32
    %c0_i32_11 = arith.constant 0 : i32
    %c0_i32_12 = arith.constant 0 : i32
    %12 = tpu.memref_slice %arg3[%arg0, %c0_i32_11, %5, %c0_i32_12] : memref<2x16x16x16xf32, #tpu.memory_space<any>> -> memref<1x16x1x16xf32, #tpu.memory_space<any>>
    %13 = tpu.memref_squeeze %12 : memref<1x16x1x16xf32, #tpu.memory_space<any>> -> memref<16x1x16xf32, #tpu.memory_space<any>>
    %c0_i32_13 = arith.constant 0 : i32
    %c0_i32_14 = arith.constant 0 : i32
    %c0_i32_15 = arith.constant 0 : i32
    %14 = tpu.memref_slice %arg14[%c1_i32_9, %c0_i32_13, %c0_i32_14, %c0_i32_15] : memref<2x16x1x16xf32, #tpu.memory_space<vmem>> -> memref<1x16x1x16xf32, #tpu.memory_space<vmem>>
    %15 = tpu.memref_squeeze %14 : memref<1x16x1x16xf32, #tpu.memory_space<vmem>> -> memref<16x1x16xf32, #tpu.memory_space<vmem>>
    %16 = tpu.memref_slice %arg15[%c1_i32_10] : memref<2x!tpu.dma_semaphore, #tpu.memory_space<semaphore_mem>> -> memref<1x!tpu.dma_semaphore, #tpu.memory_space<semaphore_mem>>
    %17 = tpu.memref_squeeze %16 : memref<1x!tpu.dma_semaphore, #tpu.memory_space<semaphore_mem>> -> memref<!tpu.dma_semaphore, #tpu.memory_space<semaphore_mem>>
    tpu.enqueue_dma source(%13 : memref<16x1x16xf32, #tpu.memory_space<any>>) target(%15 : memref<16x1x16xf32, #tpu.memory_space<vmem>>) target_semaphore(%17 : memref<!tpu.dma_semaphore, #tpu.memory_space<semaphore_mem>>)
    %c0 = arith.constant 0 : index
    %c0_16 = arith.constant 0 : index
    %18 = vector.load %arg4[%c0, %c0_16] : memref<4x16xf32, #tpu.memory_space<vmem>>, vector<4x16xf32>
    %c0_17 = arith.constant 0 : index
    %c0_18 = arith.constant 0 : index
    %19 = vector.load %arg7[%c0_17, %c0_18] : memref<4x1xf32, #tpu.memory_space<vmem>>, vector<4x1xf32>
    %c0_19 = arith.constant 0 : index
    %c0_20 = arith.constant 0 : index
    %20 = vector.load %arg8[%c0_19, %c0_20] : memref<4x1xf32, #tpu.memory_space<vmem>>, vector<4x1xf32>
    %c0_21 = arith.constant 0 : index
    %c0_22 = arith.constant 0 : index
    %c0_23 = arith.constant 0 : index
    %21 = vector.load %arg2[%c0_21, %c0_22, %c0_23] : memref<1x16x128xf32, #tpu.memory_space<vmem>>, vector<1x16x128xf32>
    %22 = vector.shape_cast %21 : vector<1x16x128xf32> to vector<16x128xf32>
    %cst = arith.constant dense<0.000000e+00> : vector<4x128xf32>
    %23 = tpu.matmul %18, %22, %cst {dimension_numbers = #tpu.dot_dimension_numbers<[1], [0], [0], [1], [0, 0, 1, 1], [], []>} : vector<4x16xf32>, vector<16x128xf32>, vector<4x128xf32> -> vector<4x128xf32>
    %24 = vector.broadcast %19 : vector<4x1xf32> to vector<4x128xf32>
    %25 = arith.mulf %23, %24 : vector<4x128xf32>
    %26 = vector.broadcast %20 : vector<4x1xf32> to vector<4x128xf32>
    %27 = arith.addf %25, %26 : vector<4x128xf32>
    %cst_24 = arith.constant 0.000000e+00 : f32
    %28 = vector.broadcast %cst_24 : f32 to vector<4x128xf32>
    %29 = arith.maximumf %27, %28 : vector<4x128xf32>
    %c0_i32_25 = arith.constant 0 : i32
    %c0_i32_26 = arith.constant 0 : i32
    %c0_i32_27 = arith.constant 0 : i32
    %c0_i32_28 = arith.constant 0 : i32
    %30 = tpu.memref_slice %arg3[%arg0, %c0_i32_27, %2, %c0_i32_28] : memref<2x16x16x16xf32, #tpu.memory_space<any>> -> memref<1x16x1x16xf32, #tpu.memory_space<any>>
    %31 = tpu.memref_squeeze %30 : memref<1x16x1x16xf32, #tpu.memory_space<any>> -> memref<16x1x16xf32, #tpu.memory_space<any>>
    %c0_i32_29 = arith.constant 0 : i32
    %c0_i32_30 = arith.constant 0 : i32
    %c0_i32_31 = arith.constant 0 : i32
    %32 = tpu.memref_slice %arg14[%c0_i32_25, %c0_i32_29, %c0_i32_30, %c0_i32_31] : memref<2x16x1x16xf32, #tpu.memory_space<vmem>> -> memref<1x16x1x16xf32, #tpu.memory_space<vmem>>
    %33 = tpu.memref_squeeze %32 : memref<1x16x1x16xf32, #tpu.memory_space<vmem>> -> memref<16x1x16xf32, #tpu.memory_space<vmem>>
    %34 = tpu.memref_slice %arg15[%c0_i32_26] : memref<2x!tpu.dma_semaphore, #tpu.memory_space<semaphore_mem>> -> memref<1x!tpu.dma_semaphore, #tpu.memory_space<semaphore_mem>>
    %35 = tpu.memref_squeeze %34 : memref<1x!tpu.dma_semaphore, #tpu.memory_space<semaphore_mem>> -> memref<!tpu.dma_semaphore, #tpu.memory_space<semaphore_mem>>
    tpu.wait_dma2 semaphore(%35 : memref<!tpu.dma_semaphore, #tpu.memory_space<semaphore_mem>>) src(%31 : memref<16x1x16xf32, #tpu.memory_space<any>>) dst(%33 : memref<16x1x16xf32, #tpu.memory_space<vmem>>)
    %c0_32 = arith.constant 0 : index
    %c0_33 = arith.constant 0 : index
    %c0_34 = arith.constant 0 : index
    %c0_35 = arith.constant 0 : index
    %36 = vector.load %arg14[%c0_32, %c0_33, %c0_34, %c0_35] : memref<2x16x1x16xf32, #tpu.memory_space<vmem>>, vector<1x16x1x16xf32>
    %37 = vector.shape_cast %36 : vector<1x16x1x16xf32> to vector<16x16xf32>
    %cst_36 = arith.constant dense<0.000000e+00> : vector<4x16xf32>
    %38 = tpu.matmul %18, %37, %cst_36 {dimension_numbers = #tpu.dot_dimension_numbers<[1], [0], [0], [1], [0, 0, 1, 1], [], []>} : vector<4x16xf32>, vector<16x16xf32>, vector<4x16xf32> -> vector<4x16xf32>
    %39 = vector.broadcast %19 : vector<4x1xf32> to vector<4x16xf32>
    %40 = arith.mulf %38, %39 : vector<4x16xf32>
    %41 = vector.broadcast %20 : vector<4x1xf32> to vector<4x16xf32>
    %42 = arith.addf %40, %41 : vector<4x16xf32>
    %cst_37 = arith.constant 0.000000e+00 : f32
    %43 = vector.broadcast %cst_37 : f32 to vector<4x16xf32>
    %44 = arith.maximumf %42, %43 : vector<4x16xf32>
    %c0_i32_38 = arith.constant 0 : i32
    %45 = arith.cmpi sgt, %arg1, %c0_i32_38 : i32
    %cst_39 = arith.constant 0.000000e+00 : f32
    %46 = vector.broadcast %cst_39 : f32 to vector<4x16xf32>
    %47 = arith.select %45, %44, %46 : vector<4x16xf32>
    %c1_i32_40 = arith.constant 1 : i32
    %c1_i32_41 = arith.constant 1 : i32
    %c0_i32_42 = arith.constant 0 : i32
    %c0_i32_43 = arith.constant 0 : i32
    %48 = tpu.memref_slice %arg3[%arg0, %c0_i32_42, %5, %c0_i32_43] : memref<2x16x16x16xf32, #tpu.memory_space<any>> -> memref<1x16x1x16xf32, #tpu.memory_space<any>>
    %49 = tpu.memref_squeeze %48 : memref<1x16x1x16xf32, #tpu.memory_space<any>> -> memref<16x1x16xf32, #tpu.memory_space<any>>
    %c0_i32_44 = arith.constant 0 : i32
    %c0_i32_45 = arith.constant 0 : i32
    %c0_i32_46 = arith.constant 0 : i32
    %50 = tpu.memref_slice %arg14[%c1_i32_40, %c0_i32_44, %c0_i32_45, %c0_i32_46] : memref<2x16x1x16xf32, #tpu.memory_space<vmem>> -> memref<1x16x1x16xf32, #tpu.memory_space<vmem>>
    %51 = tpu.memref_squeeze %50 : memref<1x16x1x16xf32, #tpu.memory_space<vmem>> -> memref<16x1x16xf32, #tpu.memory_space<vmem>>
    %52 = tpu.memref_slice %arg15[%c1_i32_41] : memref<2x!tpu.dma_semaphore, #tpu.memory_space<semaphore_mem>> -> memref<1x!tpu.dma_semaphore, #tpu.memory_space<semaphore_mem>>
    %53 = tpu.memref_squeeze %52 : memref<1x!tpu.dma_semaphore, #tpu.memory_space<semaphore_mem>> -> memref<!tpu.dma_semaphore, #tpu.memory_space<semaphore_mem>>
    tpu.wait_dma2 semaphore(%53 : memref<!tpu.dma_semaphore, #tpu.memory_space<semaphore_mem>>) src(%49 : memref<16x1x16xf32, #tpu.memory_space<any>>) dst(%51 : memref<16x1x16xf32, #tpu.memory_space<vmem>>)
    %c1 = arith.constant 1 : index
    %c0_47 = arith.constant 0 : index
    %c0_48 = arith.constant 0 : index
    %c0_49 = arith.constant 0 : index
    %54 = vector.load %arg14[%c1, %c0_47, %c0_48, %c0_49] : memref<2x16x1x16xf32, #tpu.memory_space<vmem>>, vector<1x16x1x16xf32>
    %55 = vector.shape_cast %54 : vector<1x16x1x16xf32> to vector<16x16xf32>
    %cst_50 = arith.constant dense<0.000000e+00> : vector<4x16xf32>
    %56 = tpu.matmul %18, %55, %cst_50 {dimension_numbers = #tpu.dot_dimension_numbers<[1], [0], [0], [1], [0, 0, 1, 1], [], []>} : vector<4x16xf32>, vector<16x16xf32>, vector<4x16xf32> -> vector<4x16xf32>
    %57 = vector.broadcast %19 : vector<4x1xf32> to vector<4x16xf32>
    %58 = arith.mulf %56, %57 : vector<4x16xf32>
    %59 = vector.broadcast %20 : vector<4x1xf32> to vector<4x16xf32>
    %60 = arith.addf %58, %59 : vector<4x16xf32>
    %cst_51 = arith.constant 0.000000e+00 : f32
    %61 = vector.broadcast %cst_51 : f32 to vector<4x16xf32>
    %62 = arith.maximumf %60, %61 : vector<4x16xf32>
    %c1_i32_52 = arith.constant 1 : i32
    %63 = arith.cmpi slt, %arg1, %c1_i32_52 : i32
    %cst_53 = arith.constant 0.000000e+00 : f32
    %64 = vector.broadcast %cst_53 : f32 to vector<4x16xf32>
    %65 = arith.select %63, %62, %64 : vector<4x16xf32>
    %cst_54 = arith.constant 0.000000e+00 : f32
    %66 = vector.broadcast %cst_54 : f32 to vector<4x10x18xf32>
    %c0_55 = arith.constant 0 : index
    %c0_56 = arith.constant 0 : index
    %c0_57 = arith.constant 0 : index
    %67 = vector.load %arg16[%c0_55, %c0_56, %c0_57] : memref<4x10x18xf32, #tpu.memory_space<vmem>>, vector<4x10x18xf32>
    tpu.vector_store %arg16[%c0_55, %c0_56, %c0_57], %66 {strides = array<i32>} : memref<4x10x18xf32, #tpu.memory_space<vmem>>, vector<4x10x18xf32>,
    %68 = vector.shape_cast %47 : vector<4x16xf32> to vector<4x1x16xf32>
    %c0_58 = arith.constant 0 : index
    %c0_59 = arith.constant 0 : index
    %c1_60 = arith.constant 1 : index
    %69 = vector.load %arg16[%c0_58, %c0_59, %c1_60] : memref<4x10x18xf32, #tpu.memory_space<vmem>>, vector<4x1x16xf32>
    tpu.vector_store %arg16[%c0_58, %c0_59, %c1_60], %68 {strides = array<i32>} : memref<4x10x18xf32, #tpu.memory_space<vmem>>, vector<4x1x16xf32>,
    %70 = vector.shape_cast %29 : vector<4x128xf32> to vector<4x8x16xf32>
    %c0_61 = arith.constant 0 : index
    %c1_62 = arith.constant 1 : index
    %c1_63 = arith.constant 1 : index
    %71 = vector.load %arg16[%c0_61, %c1_62, %c1_63] : memref<4x10x18xf32, #tpu.memory_space<vmem>>, vector<4x8x16xf32>
    tpu.vector_store %arg16[%c0_61, %c1_62, %c1_63], %70 {strides = array<i32>} : memref<4x10x18xf32, #tpu.memory_space<vmem>>, vector<4x8x16xf32>,
    %72 = vector.shape_cast %65 : vector<4x16xf32> to vector<4x1x16xf32>
    %c0_64 = arith.constant 0 : index
    %c9 = arith.constant 9 : index
    %c1_65 = arith.constant 1 : index
    %73 = vector.load %arg16[%c0_64, %c9, %c1_65] : memref<4x10x18xf32, #tpu.memory_space<vmem>>, vector<4x1x16xf32>
    tpu.vector_store %arg16[%c0_64, %c9, %c1_65], %72 {strides = array<i32>} : memref<4x10x18xf32, #tpu.memory_space<vmem>>, vector<4x1x16xf32>,
    %cst_66 = arith.constant 0.000000e+00 : f32
    %74 = vector.broadcast %cst_66 : f32 to vector<4x128xf32>
    %c0_67 = arith.constant 0 : index
    %c0_68 = arith.constant 0 : index
    %c0_69 = arith.constant 0 : index
    %75 = vector.load %arg16[%c0_67, %c0_68, %c0_69] : memref<4x10x18xf32, #tpu.memory_space<vmem>>, vector<4x8x16xf32>
    %76 = vector.shape_cast %75 : vector<4x8x16xf32> to vector<4x128xf32>
    %c0_70 = arith.constant 0 : index
    %c0_71 = arith.constant 0 : index
    %c0_72 = arith.constant 0 : index
    %77 = vector.load %arg5[%c0_70, %c0_71, %c0_72] : memref<9x4x4xf32, #tpu.memory_space<vmem>>, vector<1x4x4xf32>
    %78 = vector.shape_cast %77 : vector<1x4x4xf32> to vector<4x4xf32>
    %cst_73 = arith.constant dense<0.000000e+00> : vector<4x128xf32>
    %79 = tpu.matmul %78, %76, %cst_73 {dimension_numbers = #tpu.dot_dimension_numbers<[1], [0], [0], [1], [0, 0, 1, 1], [], []>} : vector<4x4xf32>, vector<4x128xf32>, vector<4x128xf32> -> vector<4x128xf32>
    %80 = arith.addf %74, %79 : vector<4x128xf32>
    %c0_74 = arith.constant 0 : index
    %c0_75 = arith.constant 0 : index
    %c1_76 = arith.constant 1 : index
    %81 = vector.load %arg16[%c0_74, %c0_75, %c1_76] : memref<4x10x18xf32, #tpu.memory_space<vmem>>, vector<4x8x16xf32>
    %82 = vector.shape_cast %81 : vector<4x8x16xf32> to vector<4x128xf32>
    %c1_77 = arith.constant 1 : index
    %c0_78 = arith.constant 0 : index
    %c0_79 = arith.constant 0 : index
    %83 = vector.load %arg5[%c1_77, %c0_78, %c0_79] : memref<9x4x4xf32, #tpu.memory_space<vmem>>, vector<1x4x4xf32>
    %84 = vector.shape_cast %83 : vector<1x4x4xf32> to vector<4x4xf32>
    %cst_80 = arith.constant dense<0.000000e+00> : vector<4x128xf32>
    %85 = tpu.matmul %84, %82, %cst_80 {dimension_numbers = #tpu.dot_dimension_numbers<[1], [0], [0], [1], [0, 0, 1, 1], [], []>} : vector<4x4xf32>, vector<4x128xf32>, vector<4x128xf32> -> vector<4x128xf32>
    %86 = arith.addf %80, %85 : vector<4x128xf32>
    %c0_81 = arith.constant 0 : index
    %c0_82 = arith.constant 0 : index
    %c2 = arith.constant 2 : index
    %87 = vector.load %arg16[%c0_81, %c0_82, %c2] : memref<4x10x18xf32, #tpu.memory_space<vmem>>, vector<4x8x16xf32>
    %88 = vector.shape_cast %87 : vector<4x8x16xf32> to vector<4x128xf32>
    %c2_83 = arith.constant 2 : index
    %c0_84 = arith.constant 0 : index
    %c0_85 = arith.constant 0 : index
    %89 = vector.load %arg5[%c2_83, %c0_84, %c0_85] : memref<9x4x4xf32, #tpu.memory_space<vmem>>, vector<1x4x4xf32>
    %90 = vector.shape_cast %89 : vector<1x4x4xf32> to vector<4x4xf32>
    %cst_86 = arith.constant dense<0.000000e+00> : vector<4x128xf32>
    %91 = tpu.matmul %90, %88, %cst_86 {dimension_numbers = #tpu.dot_dimension_numbers<[1], [0], [0], [1], [0, 0, 1, 1], [], []>} : vector<4x4xf32>, vector<4x128xf32>, vector<4x128xf32> -> vector<4x128xf32>
    %92 = arith.addf %86, %91 : vector<4x128xf32>
    %c0_87 = arith.constant 0 : index
    %c1_88 = arith.constant 1 : index
    %c0_89 = arith.constant 0 : index
    %93 = vector.load %arg16[%c0_87, %c1_88, %c0_89] : memref<4x10x18xf32, #tpu.memory_space<vmem>>, vector<4x8x16xf32>
    %94 = vector.shape_cast %93 : vector<4x8x16xf32> to vector<4x128xf32>
    %c3 = arith.constant 3 : index
    %c0_90 = arith.constant 0 : index
    %c0_91 = arith.constant 0 : index
    %95 = vector.load %arg5[%c3, %c0_90, %c0_91] : memref<9x4x4xf32, #tpu.memory_space<vmem>>, vector<1x4x4xf32>
    %96 = vector.shape_cast %95 : vector<1x4x4xf32> to vector<4x4xf32>
    %cst_92 = arith.constant dense<0.000000e+00> : vector<4x128xf32>
    %97 = tpu.matmul %96, %94, %cst_92 {dimension_numbers = #tpu.dot_dimension_numbers<[1], [0], [0], [1], [0, 0, 1, 1], [], []>} : vector<4x4xf32>, vector<4x128xf32>, vector<4x128xf32> -> vector<4x128xf32>
    %98 = arith.addf %92, %97 : vector<4x128xf32>
    %c0_93 = arith.constant 0 : index
    %c1_94 = arith.constant 1 : index
    %c1_95 = arith.constant 1 : index
    %99 = vector.load %arg16[%c0_93, %c1_94, %c1_95] : memref<4x10x18xf32, #tpu.memory_space<vmem>>, vector<4x8x16xf32>
    %100 = vector.shape_cast %99 : vector<4x8x16xf32> to vector<4x128xf32>
    %c4 = arith.constant 4 : index
    %c0_96 = arith.constant 0 : index
    %c0_97 = arith.constant 0 : index
    %101 = vector.load %arg5[%c4, %c0_96, %c0_97] : memref<9x4x4xf32, #tpu.memory_space<vmem>>, vector<1x4x4xf32>
    %102 = vector.shape_cast %101 : vector<1x4x4xf32> to vector<4x4xf32>
    %cst_98 = arith.constant dense<0.000000e+00> : vector<4x128xf32>
    %103 = tpu.matmul %102, %100, %cst_98 {dimension_numbers = #tpu.dot_dimension_numbers<[1], [0], [0], [1], [0, 0, 1, 1], [], []>} : vector<4x4xf32>, vector<4x128xf32>, vector<4x128xf32> -> vector<4x128xf32>
    %104 = arith.addf %98, %103 : vector<4x128xf32>
    %c0_99 = arith.constant 0 : index
    %c1_100 = arith.constant 1 : index
    %c2_101 = arith.constant 2 : index
    %105 = vector.load %arg16[%c0_99, %c1_100, %c2_101] : memref<4x10x18xf32, #tpu.memory_space<vmem>>, vector<4x8x16xf32>
    %106 = vector.shape_cast %105 : vector<4x8x16xf32> to vector<4x128xf32>
    %c5 = arith.constant 5 : index
    %c0_102 = arith.constant 0 : index
    %c0_103 = arith.constant 0 : index
    %107 = vector.load %arg5[%c5, %c0_102, %c0_103] : memref<9x4x4xf32, #tpu.memory_space<vmem>>, vector<1x4x4xf32>
    %108 = vector.shape_cast %107 : vector<1x4x4xf32> to vector<4x4xf32>
    %cst_104 = arith.constant dense<0.000000e+00> : vector<4x128xf32>
    %109 = tpu.matmul %108, %106, %cst_104 {dimension_numbers = #tpu.dot_dimension_numbers<[1], [0], [0], [1], [0, 0, 1, 1], [], []>} : vector<4x4xf32>, vector<4x128xf32>, vector<4x128xf32> -> vector<4x128xf32>
    %110 = arith.addf %104, %109 : vector<4x128xf32>
    %c0_105 = arith.constant 0 : index
    %c2_106 = arith.constant 2 : index
    %c0_107 = arith.constant 0 : index
    %111 = vector.load %arg16[%c0_105, %c2_106, %c0_107] : memref<4x10x18xf32, #tpu.memory_space<vmem>>, vector<4x8x16xf32>
    %112 = vector.shape_cast %111 : vector<4x8x16xf32> to vector<4x128xf32>
    %c6 = arith.constant 6 : index
    %c0_108 = arith.constant 0 : index
    %c0_109 = arith.constant 0 : index
    %113 = vector.load %arg5[%c6, %c0_108, %c0_109] : memref<9x4x4xf32, #tpu.memory_space<vmem>>, vector<1x4x4xf32>
    %114 = vector.shape_cast %113 : vector<1x4x4xf32> to vector<4x4xf32>
    %cst_110 = arith.constant dense<0.000000e+00> : vector<4x128xf32>
    %115 = tpu.matmul %114, %112, %cst_110 {dimension_numbers = #tpu.dot_dimension_numbers<[1], [0], [0], [1], [0, 0, 1, 1], [], []>} : vector<4x4xf32>, vector<4x128xf32>, vector<4x128xf32> -> vector<4x128xf32>
    %116 = arith.addf %110, %115 : vector<4x128xf32>
    %c0_111 = arith.constant 0 : index
    %c2_112 = arith.constant 2 : index
    %c1_113 = arith.constant 1 : index
    %117 = vector.load %arg16[%c0_111, %c2_112, %c1_113] : memref<4x10x18xf32, #tpu.memory_space<vmem>>, vector<4x8x16xf32>
    %118 = vector.shape_cast %117 : vector<4x8x16xf32> to vector<4x128xf32>
    %c7 = arith.constant 7 : index
    %c0_114 = arith.constant 0 : index
    %c0_115 = arith.constant 0 : index
    %119 = vector.load %arg5[%c7, %c0_114, %c0_115] : memref<9x4x4xf32, #tpu.memory_space<vmem>>, vector<1x4x4xf32>
    %120 = vector.shape_cast %119 : vector<1x4x4xf32> to vector<4x4xf32>
    %cst_116 = arith.constant dense<0.000000e+00> : vector<4x128xf32>
    %121 = tpu.matmul %120, %118, %cst_116 {dimension_numbers = #tpu.dot_dimension_numbers<[1], [0], [0], [1], [0, 0, 1, 1], [], []>} : vector<4x4xf32>, vector<4x128xf32>, vector<4x128xf32> -> vector<4x128xf32>
    %122 = arith.addf %116, %121 : vector<4x128xf32>
    %c0_117 = arith.constant 0 : index
    %c2_118 = arith.constant 2 : index
    %c2_119 = arith.constant 2 : index
    %123 = vector.load %arg16[%c0_117, %c2_118, %c2_119] : memref<4x10x18xf32, #tpu.memory_space<vmem>>, vector<4x8x16xf32>
    %124 = vector.shape_cast %123 : vector<4x8x16xf32> to vector<4x128xf32>
    %c8 = arith.constant 8 : index
    %c0_120 = arith.constant 0 : index
    %c0_121 = arith.constant 0 : index
    %125 = vector.load %arg5[%c8, %c0_120, %c0_121] : memref<9x4x4xf32, #tpu.memory_space<vmem>>, vector<1x4x4xf32>
    %126 = vector.shape_cast %125 : vector<1x4x4xf32> to vector<4x4xf32>
    %cst_122 = arith.constant dense<0.000000e+00> : vector<4x128xf32>
    %127 = tpu.matmul %126, %124, %cst_122 {dimension_numbers = #tpu.dot_dimension_numbers<[1], [0], [0], [1], [0, 0, 1, 1], [], []>} : vector<4x4xf32>, vector<4x128xf32>, vector<4x128xf32> -> vector<4x128xf32>
    %128 = arith.addf %122, %127 : vector<4x128xf32>
    %c0_123 = arith.constant 0 : index
    %c0_124 = arith.constant 0 : index
    %129 = vector.load %arg9[%c0_123, %c0_124] : memref<4x1xf32, #tpu.memory_space<vmem>>, vector<4x1xf32>
    %130 = vector.broadcast %129 : vector<4x1xf32> to vector<4x128xf32>
    %131 = arith.mulf %128, %130 : vector<4x128xf32>
    %c0_125 = arith.constant 0 : index
    %c0_126 = arith.constant 0 : index
    %132 = vector.load %arg10[%c0_125, %c0_126] : memref<4x1xf32, #tpu.memory_space<vmem>>, vector<4x1xf32>
    %133 = vector.broadcast %132 : vector<4x1xf32> to vector<4x128xf32>
    %134 = arith.addf %131, %133 : vector<4x128xf32>
    %cst_127 = arith.constant 0.000000e+00 : f32
    %135 = vector.broadcast %cst_127 : f32 to vector<4x128xf32>
    %136 = arith.maximumf %134, %135 : vector<4x128xf32>
    %c0_128 = arith.constant 0 : index
    %c0_129 = arith.constant 0 : index
    %137 = vector.load %arg6[%c0_128, %c0_129] : memref<16x4xf32, #tpu.memory_space<vmem>>, vector<16x4xf32>
    %cst_130 = arith.constant dense<0.000000e+00> : vector<16x128xf32>
    %138 = tpu.matmul %137, %136, %cst_130 {dimension_numbers = #tpu.dot_dimension_numbers<[1], [0], [0], [1], [0, 0, 1, 1], [], []>} : vector<16x4xf32>, vector<4x128xf32>, vector<16x128xf32> -> vector<16x128xf32>
    %c0_131 = arith.constant 0 : index
    %c0_132 = arith.constant 0 : index
    %139 = vector.load %arg11[%c0_131, %c0_132] : memref<16x1xf32, #tpu.memory_space<vmem>>, vector<16x1xf32>
    %140 = vector.broadcast %139 : vector<16x1xf32> to vector<16x128xf32>
    %141 = arith.mulf %138, %140 : vector<16x128xf32>
    %c0_133 = arith.constant 0 : index
    %c0_134 = arith.constant 0 : index
    %142 = vector.load %arg12[%c0_133, %c0_134] : memref<16x1xf32, #tpu.memory_space<vmem>>, vector<16x1xf32>
    %143 = vector.broadcast %142 : vector<16x1xf32> to vector<16x128xf32>
    %144 = arith.addf %141, %143 : vector<16x128xf32>
    %145 = arith.addf %144, %22 : vector<16x128xf32>
    %cst_135 = arith.constant 0.000000e+00 : f32
    %146 = vector.broadcast %cst_135 : f32 to vector<16x128xf32>
    %147 = arith.maximumf %145, %146 : vector<16x128xf32>
    %c0_136 = arith.constant 0 : index
    %c0_137 = arith.constant 0 : index
    %c0_138 = arith.constant 0 : index
    %148 = vector.load %arg13[%c0_136, %c0_137, %c0_138] : memref<1x16x128xf32, #tpu.memory_space<vmem>>, vector<1x16x128xf32>
    %149 = vector.shape_cast %148 : vector<1x16x128xf32> to vector<16x128xf32>
    %150 = vector.shape_cast %147 : vector<16x128xf32> to vector<1x16x128xf32>
    tpu.vector_store %arg13[%c0_136, %c0_137, %c0_138], %150 {strides = array<i32>} : memref<1x16x128xf32, #tpu.memory_space<vmem>>, vector<1x16x128xf32>,
    return
  }
  func.func @transform_0(%arg0: i32, %arg1: i32) -> (i32, i32, i32) {
    %c0_i32 = arith.constant 0 : i32
    %c0_i32_0 = arith.constant 0 : i32
    return %arg0, %c0_i32, %arg1 : i32, i32, i32
  }
  func.func @transform_2(%arg0: i32, %arg1: i32) -> (i32, i32) {
    %c0_i32 = arith.constant 0 : i32
    %c0_i32_0 = arith.constant 0 : i32
    %c0_i32_1 = arith.constant 0 : i32
    return %c0_i32, %c0_i32_0 : i32, i32
  }
  func.func @transform_3(%arg0: i32, %arg1: i32) -> (i32, i32, i32) {
    %c0_i32 = arith.constant 0 : i32
    %c0_i32_0 = arith.constant 0 : i32
    %c0_i32_1 = arith.constant 0 : i32
    %c0_i32_2 = arith.constant 0 : i32
    return %c0_i32, %c0_i32_0, %c0_i32_1 : i32, i32, i32
  }
  func.func @transform_4(%arg0: i32, %arg1: i32) -> (i32, i32) {
    %c0_i32 = arith.constant 0 : i32
    %c0_i32_0 = arith.constant 0 : i32
    %c0_i32_1 = arith.constant 0 : i32
    return %c0_i32, %c0_i32_0 : i32, i32
  }
  func.func @transform_5(%arg0: i32, %arg1: i32) -> (i32, i32) {
    %c0_i32 = arith.constant 0 : i32
    %c0_i32_0 = arith.constant 0 : i32
    %c0_i32_1 = arith.constant 0 : i32
    return %c0_i32, %c0_i32_0 : i32, i32
  }
  func.func @transform_6(%arg0: i32, %arg1: i32) -> (i32, i32) {
    %c0_i32 = arith.constant 0 : i32
    %c0_i32_0 = arith.constant 0 : i32
    %c0_i32_1 = arith.constant 0 : i32
    return %c0_i32, %c0_i32_0 : i32, i32
  }
  func.func @transform_7(%arg0: i32, %arg1: i32) -> (i32, i32) {
    %c0_i32 = arith.constant 0 : i32
    %c0_i32_0 = arith.constant 0 : i32
    %c0_i32_1 = arith.constant 0 : i32
    return %c0_i32, %c0_i32_0 : i32, i32
  }
  func.func @transform_8(%arg0: i32, %arg1: i32) -> (i32, i32) {
    %c0_i32 = arith.constant 0 : i32
    %c0_i32_0 = arith.constant 0 : i32
    %c0_i32_1 = arith.constant 0 : i32
    return %c0_i32, %c0_i32_0 : i32, i32
  }
  func.func @transform_9(%arg0: i32, %arg1: i32) -> (i32, i32) {
    %c0_i32 = arith.constant 0 : i32
    %c0_i32_0 = arith.constant 0 : i32
    %c0_i32_1 = arith.constant 0 : i32
    return %c0_i32, %c0_i32_0 : i32, i32
  }
  func.func @transform_10(%arg0: i32, %arg1: i32) -> (i32, i32) {
    %c0_i32 = arith.constant 0 : i32
    %c0_i32_0 = arith.constant 0 : i32
    %c0_i32_1 = arith.constant 0 : i32
    return %c0_i32, %c0_i32_0 : i32, i32
  }
  func.func @transform_11(%arg0: i32, %arg1: i32) -> (i32, i32, i32) {
    %c0_i32 = arith.constant 0 : i32
    %c0_i32_0 = arith.constant 0 : i32
    return %arg0, %c0_i32, %arg1 : i32, i32, i32
  }
}

</mosaic_0001>

<llo_original>
// kernel: tpu_custom_call.1
$region0: #{tpu_custom_call.1}
  #allocation0 [shape = 'u32[]', space=smem, size = 0x4, offset = 0x4, fixed_abs, tag = 'smem constant byte address 0x4 - core index']
  #allocation1 [shape = 'u32[144,128]{1,0:T(1,128)}', space=vmem, size = 0x12000, scoped, tag = 'internal scratch']
  #allocation2 [shape = 'f32[2,16,1,16]{3,2,1,0:T(1,128)}', space=vmem, size = 0x4000, scoped, tag = 'scratch operand']
  #allocation3 [shape = 's32[2]{0}', space=sflag, size = 0x8, scoped, tag = 'scratch operand']
  #allocation4 [shape = 'f32[4,10,18]{2,1,0:T(8,128)}', space=vmem, size = 0x8000, scoped, tag = 'scratch operand']
  #allocation8 [shape = 's32[]', space=sflag, size = 0x4, offset = 0, fixed_abs, tag = 'sflag constant byte address 0x0 - dummy sync flag']
  #allocation9 [shape = 's32[]', space=sflag, size = 0x4, offset = 0, fixed_abs, tag = 'sflag constant byte address 0x0 - dummy sync flag']
  %s0 = inlined_call_operand.vmem [shape: f32[2,16,256], index: 0, kind: input, shape index: {}]
  %s1 = inlined_call_operand.hbm [shape: f32[2,16,16,16], index: 1, kind: input, shape index: {}]
  %s2 = inlined_call_operand.vmem [shape: f32[4,16], index: 2, kind: input, shape index: {}]
  %s3 = inlined_call_operand.vmem [shape: f32[9,4,4], index: 3, kind: input, shape index: {}]
  %s4 = inlined_call_operand.vmem [shape: f32[16,4], index: 4, kind: input, shape index: {}]
  %s5 = inlined_call_operand.vmem [shape: f32[4,1], index: 5, kind: input, shape index: {}]
  %s6 = inlined_call_operand.vmem [shape: f32[4,1], index: 6, kind: input, shape index: {}]
  %s7 = inlined_call_operand.vmem [shape: f32[4,1], index: 7, kind: input, shape index: {}]
  %s8 = inlined_call_operand.vmem [shape: f32[4,1], index: 8, kind: input, shape index: {}]
  %s9 = inlined_call_operand.vmem [shape: f32[16,1], index: 9, kind: input, shape index: {}]
  %s10 = inlined_call_operand.vmem [shape: f32[16,1], index: 10, kind: input, shape index: {}]
  %s11 = inlined_call_operand.hbm [shape: f32[2,16,256], index: 11, kind: output, shape index: {}]
  %s12 = sld [smem:[#allocation0]]
  $region111: #{tpu_custom_call.1} parent=0
    _
  %s14 = ssub.s32 1, %s12
  %s15 = scalar_select 0, %s14, %s12
  $region1: #{tpu_custom_call.1} parent=0
    #allocation5 [shape = 'u8[16384]{0}', space=vmem, size = 0x4000, scoped, tag = 'input window, operand 0']
    #allocation6 [shape = 'u8[16384]{0}', space=vmem, size = 0x4000, scoped, tag = 'output window, operand 0']
    #allocation7 [shape = 's32[2]{0}', space=sflag, size = 0x8, scoped, tag = 'scoped memory for tpu_custom_call.1']
    %16 = vsyncpa [#allocation7], 0
    %s17 = scalar_lea.sflag [#allocation7], 1
    %18 = vsyncpa %s17, 0
    loop: start=0, step=1, limit=6
    $region2: #{tpu_custom_call.1} parent=1 // loop_pre_header
      _
    $region3: #{tpu_custom_call.1} parent=1 // loop_header
      %s20 = sphi 0, %s24
      %p21 = scmp.ge.s32.totalorder %s20, 6
      %s27 = sphi 0, %s39
      %s28 = sphi 0, %s35
      %s29 = sphi 0, %s27
      %s30 = sphi 0, %s28
      %s31 = sphi 0, %s29
      %s32 = sphi 0, %s30
      %s44 = sphi 0, %s46
      %s47 = sphi 0, %s44
      %s48 = sphi 0, %s47
      %s64 = sphi 0, %s48
      %s68 = sphi 0, %s68
      %s70 = sphi 0, %s68
      %s71 = sphi 0, %s70
      %s85 = sphi 0, %s71
      %s89 = sphi 0, %s89
      %s91 = sphi 0, %s89
      %s92 = sphi 0, %s91
      %s106 = sphi 0, %s92
      %s110 = sphi 0, %s110
      %s112 = sphi 0, %s110
      %s113 = sphi 0, %s112
      %s127 = sphi 0, %s113
      %s131 = sphi 0, %s131
      %s133 = sphi 0, %s131
      %s134 = sphi 0, %s133
      %s148 = sphi 0, %s134
      %s152 = sphi 0, %s152
      %s154 = sphi 0, %s152
      %s155 = sphi 0, %s154
      %s169 = sphi 0, %s155
      %s173 = sphi 0, %s173
      %s175 = sphi 0, %s173
      %s176 = sphi 0, %s175
      %s190 = sphi 0, %s176
      %s194 = sphi 0, %s194
      %s196 = sphi 0, %s194
      %s197 = sphi 0, %s196
      %s211 = sphi 0, %s197
      %s215 = sphi 0, %s215
      %s217 = sphi 0, %s215
      %s218 = sphi 0, %s217
      %s232 = sphi 0, %s218
      %s236 = sphi 0, %s236
      %s238 = sphi 0, %s236
      %s239 = sphi 0, %s238
      %s253 = sphi 0, %s239
      %s261 = sphi 0, %s263
      %s264 = sphi 0, %s261
      %s265 = sphi 0, %s264
      %s281 = sphi 0, %s265
    $region4: #{tpu_custom_call.1} parent=1 // loop_header_branch
      %23 = sbr.rel (%p21) target = $region8
    $region5: #{tpu_custom_call.1} parent=1 // loop_body
      %s25 = ssub.s32 %s20, 1
      %s26 = ssub.s32 %s20, 2
      %s33 = sadd.s32 1, %s28
      %p34 = scmp.ge.s32.totalorder %s33, 2
      %s35 = scalar_select %p34, 0, %s33
      %s36 = sadd.s32 1, %s27
      %s37 = scalar_select %p34, %s36, %s27
      %p38 = scmp.ge.s32.totalorder %s37, 2
      %s39 = scalar_select %p38, 0, %s37
      %s40 = ssub.s32 %s27, %s39
      %s41 = ssub.s32 %s28, %s35
      %s42 = sor.u32 %s40, %s41
      %p43 = scmp.eq.s32.totalorder %s42, 0
      %s45 = sadd.s32 %s44, 1
      %s46 = scalar_select %p43, %s44, %s45
      %p49 = pneg %p43
      %p50 = scmp.eq.s32.totalorder %s20, 3
      %p51 = por %p49, %p50
      %p52 = scmp.ne.s32.totalorder %s44, %s47
      %p53 = scmp.eq.s32.totalorder %s20, 0
      %p54 = por %p52, %p53
      %p55 = scmp.ne.s32.totalorder %s44, %s47
      %p56 = scmp.eq.s32.totalorder %s25, 3
      %p57 = por %p55, %p56
      %p58 = scmp.ne.s32.totalorder %s47, %s48
      %p59 = scmp.eq.s32.totalorder %s25, 0
      %p60 = por %p58, %p59
      %p61 = scmp.ne.s32.totalorder %s47, %s48
      %p62 = scmp.eq.s32.totalorder %s26, 3
      %p63 = por %p61, %p62
      %p65 = scmp.ne.s32.totalorder %s48, %s64
      %p66 = scmp.eq.s32.totalorder %s26, 0
      %p67 = por %p65, %p66
      %s69 = sadd.s32 %s68, 1
      %p72 = scmp.eq.s32.totalorder %s20, 3
      %p73 = scmp.ne.s32.totalorder %s68, %s70
      %p74 = scmp.eq.s32.totalorder %s20, 0
      %p75 = por %p73, %p74
      %p76 = scmp.ne.s32.totalorder %s68, %s70
      %p77 = scmp.eq.s32.totalorder %s25, 3
      %p78 = por %p76, %p77
      %p79 = scmp.ne.s32.totalorder %s70, %s71
      %p80 = scmp.eq.s32.totalorder %s25, 0
      %p81 = por %p79, %p80
      %p82 = scmp.ne.s32.totalorder %s70, %s71
      %p83 = scmp.eq.s32.totalorder %s26, 3
      %p84 = por %p82, %p83
      %p86 = scmp.ne.s32.totalorder %s71, %s85
      %p87 = scmp.eq.s32.totalorder %s26, 0
      %p88 = por %p86, %p87
      %s90 = sadd.s32 %s89, 1
      %p93 = scmp.eq.s32.totalorder %s20, 3
      %p94 = scmp.ne.s32.totalorder %s89, %s91
      %p95 = scmp.eq.s32.totalorder %s20, 0
      %p96 = por %p94, %p95
      %p97 = scmp.ne.s32.totalorder %s89, %s91
      %p98 = scmp.eq.s32.totalorder %s25, 3
      %p99 = por %p97, %p98
      %p100 = scmp.ne.s32.totalorder %s91, %s92
      %p101 = scmp.eq.s32.totalorder %s25, 0
      %p102 = por %p100, %p101
      %p103 = scmp.ne.s32.totalorder %s91, %s92
      %p104 = scmp.eq.s32.totalorder %s26, 3
      %p105 = por %p103, %p104
      %p107 = scmp.ne.s32.totalorder %s92, %s106
      %p108 = scmp.eq.s32.totalorder %s26, 0
      %p109 = por %p107, %p108
      %s111 = sadd.s32 %s110, 1
      %p114 = scmp.eq.s32.totalorder %s20, 3
      %p115 = scmp.ne.s32.totalorder %s110, %s112
      %p116 = scmp.eq.s32.totalorder %s20, 0
      %p117 = por %p115, %p116
      %p118 = scmp.ne.s32.totalorder %s110, %s112
      %p119 = scmp.eq.s32.totalorder %s25, 3
      %p120 = por %p118, %p119
      %p121 = scmp.ne.s32.totalorder %s112, %s113
      %p122 = scmp.eq.s32.totalorder %s25, 0
      %p123 = por %p121, %p122
      %p124 = scmp.ne.s32.totalorder %s112, %s113
      %p125 = scmp.eq.s32.totalorder %s26, 3
      %p126 = por %p124, %p125
      %p128 = scmp.ne.s32.totalorder %s113, %s127
      %p129 = scmp.eq.s32.totalorder %s26, 0
      %p130 = por %p128, %p129
      %s132 = sadd.s32 %s131, 1
      %p135 = scmp.eq.s32.totalorder %s20, 3
      %p136 = scmp.ne.s32.totalorder %s131, %s133
      %p137 = scmp.eq.s32.totalorder %s20, 0
      %p138 = por %p136, %p137
      %p139 = scmp.ne.s32.totalorder %s131, %s133
      %p140 = scmp.eq.s32.totalorder %s25, 3
      %p141 = por %p139, %p140
      %p142 = scmp.ne.s32.totalorder %s133, %s134
      %p143 = scmp.eq.s32.totalorder %s25, 0
      %p144 = por %p142, %p143
      %p145 = scmp.ne.s32.totalorder %s133, %s134
      %p146 = scmp.eq.s32.totalorder %s26, 3
      %p147 = por %p145, %p146
      %p149 = scmp.ne.s32.totalorder %s134, %s148
      %p150 = scmp.eq.s32.totalorder %s26, 0
      %p151 = por %p149, %p150
      %s153 = sadd.s32 %s152, 1
      %p156 = scmp.eq.s32.totalorder %s20, 3
      %p157 = scmp.ne.s32.totalorder %s152, %s154
      %p158 = scmp.eq.s32.totalorder %s20, 0
      %p159 = por %p157, %p158
      %p160 = scmp.ne.s32.totalorder %s152, %s154
      %p161 = scmp.eq.s32.totalorder %s25, 3
      %p162 = por %p160, %p161
      %p163 = scmp.ne.s32.totalorder %s154, %s155
      %p164 = scmp.eq.s32.totalorder %s25, 0
      %p165 = por %p163, %p164
      %p166 = scmp.ne.s32.totalorder %s154, %s155
      %p167 = scmp.eq.s32.totalorder %s26, 3
      %p168 = por %p166, %p167
      %p170 = scmp.ne.s32.totalorder %s155, %s169
      %p171 = scmp.eq.s32.totalorder %s26, 0
      %p172 = por %p170, %p171
      %s174 = sadd.s32 %s173, 1
      %p177 = scmp.eq.s32.totalorder %s20, 3
      %p178 = scmp.ne.s32.totalorder %s173, %s175
      %p179 = scmp.eq.s32.totalorder %s20, 0
      %p180 = por %p178, %p179
      %p181 = scmp.ne.s32.totalorder %s173, %s175
      %p182 = scmp.eq.s32.totalorder %s25, 3
      %p183 = por %p181, %p182
      %p184 = scmp.ne.s32.totalorder %s175, %s176
      %p185 = scmp.eq.s32.totalorder %s25, 0
      %p186 = por %p184, %p185
      %p187 = scmp.ne.s32.totalorder %s175, %s176
      %p188 = scmp.eq.s32.totalorder %s26, 3
      %p189 = por %p187, %p188
      %p191 = scmp.ne.s32.totalorder %s176, %s190
      %p192 = scmp.eq.s32.totalorder %s26, 0
      %p193 = por %p191, %p192
      %s195 = sadd.s32 %s194, 1
      %p198 = scmp.eq.s32.totalorder %s20, 3
      %p199 = scmp.ne.s32.totalorder %s194, %s196
      %p200 = scmp.eq.s32.totalorder %s20, 0
      %p201 = por %p199, %p200
      %p202 = scmp.ne.s32.totalorder %s194, %s196
      %p203 = scmp.eq.s32.totalorder %s25, 3
      %p204 = por %p202, %p203
      %p205 = scmp.ne.s32.totalorder %s196, %s197
      %p206 = scmp.eq.s32.totalorder %s25, 0
      %p207 = por %p205, %p206
      %p208 = scmp.ne.s32.totalorder %s196, %s197
      %p209 = scmp.eq.s32.totalorder %s26, 3
      %p210 = por %p208, %p209
      %p212 = scmp.ne.s32.totalorder %s197, %s211
      %p213 = scmp.eq.s32.totalorder %s26, 0
      %p214 = por %p212, %p213
      %s216 = sadd.s32 %s215, 1
      %p219 = scmp.eq.s32.totalorder %s20, 3
      %p220 = scmp.ne.s32.totalorder %s215, %s217
      %p221 = scmp.eq.s32.totalorder %s20, 0
      %p222 = por %p220, %p221
      %p223 = scmp.ne.s32.totalorder %s215, %s217
      %p224 = scmp.eq.s32.totalorder %s25, 3
      %p225 = por %p223, %p224
      %p226 = scmp.ne.s32.totalorder %s217, %s218
      %p227 = scmp.eq.s32.totalorder %s25, 0
      %p228 = por %p226, %p227
      %p229 = scmp.ne.s32.totalorder %s217, %s218
      %p230 = scmp.eq.s32.totalorder %s26, 3
      %p231 = por %p229, %p230
      %p233 = scmp.ne.s32.totalorder %s218, %s232
      %p234 = scmp.eq.s32.totalorder %s26, 0
      %p235 = por %p233, %p234
      %s237 = sadd.s32 %s236, 1
      %p240 = scmp.eq.s32.totalorder %s20, 3
      %p241 = scmp.ne.s32.totalorder %s236, %s238
      %p242 = scmp.eq.s32.totalorder %s20, 0
      %p243 = por %p241, %p242
      %p244 = scmp.ne.s32.totalorder %s236, %s238
      %p245 = scmp.eq.s32.totalorder %s25, 3
      %p246 = por %p244, %p245
      %p247 = scmp.ne.s32.totalorder %s238, %s239
      %p248 = scmp.eq.s32.totalorder %s25, 0
      %p249 = por %p247, %p248
      %p250 = scmp.ne.s32.totalorder %s238, %s239
      %p251 = scmp.eq.s32.totalorder %s26, 3
      %p252 = por %p250, %p251
      %p254 = scmp.ne.s32.totalorder %s239, %s253
      %p255 = scmp.eq.s32.totalorder %s26, 0
      %p256 = por %p254, %p255
      %s257 = ssub.s32 %s27, %s39
      %s258 = ssub.s32 %s28, %s35
      %s259 = sor.u32 %s257, %s258
      %p260 = scmp.eq.s32.totalorder %s259, 0
      %s262 = sadd.s32 %s261, 1
      %s263 = scalar_select %p260, %s261, %s262
      %p266 = pneg %p260
      %p267 = scmp.eq.s32.totalorder %s20, 3
      %p268 = por %p266, %p267
      %p269 = scmp.ne.s32.totalorder %s261, %s264
      %p270 = scmp.eq.s32.totalorder %s20, 0
      %p271 = por %p269, %p270
      %p272 = scmp.ne.s32.totalorder %s261, %s264
      %p273 = scmp.eq.s32.totalorder %s25, 3
      %p274 = por %p272, %p273
      %p275 = scmp.ne.s32.totalorder %s264, %s265
      %p276 = scmp.eq.s32.totalorder %s25, 0
      %p277 = por %p275, %p276
      %p278 = scmp.ne.s32.totalorder %s264, %s265
      %p279 = scmp.eq.s32.totalorder %s26, 3
      %p280 = por %p278, %p279
      %p282 = scmp.ne.s32.totalorder %s265, %s281
      %p283 = scmp.eq.s32.totalorder %s26, 0
      %p284 = por %p282, %p283
      %p285 = scmp.le.s32.totalorder 1, %s20
      %p286 = scmp.lt.s32.totalorder %s20, 5
      %p287 = pnand %p285, %p286
      %p288 = pneg %p287
      // Predicated region
      $region9: #{tpu_custom_call.1} parent=5 // pred_check
        _
      $region10: #{tpu_custom_call.1} parent=5 // pred_check_branch
        %290 = sbr.rel (%p287) target = $region12
      $region11: #{tpu_custom_call.1} parent=5 // pred_region
        %s291 = ssub.s32 %s20, 1
        // Predicated region
        $region13: #{tpu_custom_call.1} parent=11 // pred_check
          %p292 = pneg %p81
        $region14: #{tpu_custom_call.1} parent=11 // pred_check_branch
          %294 = sbr.rel (%p292) target = $region16
        $region15: #{tpu_custom_call.1} parent=11 // pred_region
          _
        $region16: #{tpu_custom_call.1} parent=11 // pred_fallthru
          _
        // Predicated region
        $region17: #{tpu_custom_call.1} parent=11 // pred_check
          %p295 = pneg %p102
        $region18: #{tpu_custom_call.1} parent=11 // pred_check_branch
          %297 = sbr.rel (%p295) target = $region20
        $region19: #{tpu_custom_call.1} parent=11 // pred_region
          _
        $region20: #{tpu_custom_call.1} parent=11 // pred_fallthru
          _
        // Predicated region
        $region21: #{tpu_custom_call.1} parent=11 // pred_check
          %p298 = pneg %p123
        $region22: #{tpu_custom_call.1} parent=11 // pred_check_branch
          %300 = sbr.rel (%p298) target = $region24
        $region23: #{tpu_custom_call.1} parent=11 // pred_region
          _
        $region24: #{tpu_custom_call.1} parent=11 // pred_fallthru
          _
        // Predicated region
        $region25: #{tpu_custom_call.1} parent=11 // pred_check
          %p301 = pneg %p144
        $region26: #{tpu_custom_call.1} parent=11 // pred_check_branch
          %303 = sbr.rel (%p301) target = $region28
        $region27: #{tpu_custom_call.1} parent=11 // pred_region
          _
        $region28: #{tpu_custom_call.1} parent=11 // pred_fallthru
          _
        // Predicated region
        $region29: #{tpu_custom_call.1} parent=11 // pred_check
          %p304 = pneg %p165
        $region30: #{tpu_custom_call.1} parent=11 // pred_check_branch
          %306 = sbr.rel (%p304) target = $region32
        $region31: #{tpu_custom_call.1} parent=11 // pred_region
          _
        $region32: #{tpu_custom_call.1} parent=11 // pred_fallthru
          _
        // Predicated region
        $region33: #{tpu_custom_call.1} parent=11 // pred_check
          %p307 = pneg %p186
        $region34: #{tpu_custom_call.1} parent=11 // pred_check_branch
          %309 = sbr.rel (%p307) target = $region36
        $region35: #{tpu_custom_call.1} parent=11 // pred_region
          _
        $region36: #{tpu_custom_call.1} parent=11 // pred_fallthru
          _
        // Predicated region
        $region37: #{tpu_custom_call.1} parent=11 // pred_check
          %p310 = pneg %p207
        $region38: #{tpu_custom_call.1} parent=11 // pred_check_branch
          %312 = sbr.rel (%p310) target = $region40
        $region39: #{tpu_custom_call.1} parent=11 // pred_region
          _
        $region40: #{tpu_custom_call.1} parent=11 // pred_fallthru
          _
        // Predicated region
        $region41: #{tpu_custom_call.1} parent=11 // pred_check
          %p313 = pneg %p228
        $region42: #{tpu_custom_call.1} parent=11 // pred_check_branch
          %315 = sbr.rel (%p313) target = $region44
        $region43: #{tpu_custom_call.1} parent=11 // pred_region
          _
        $region44: #{tpu_custom_call.1} parent=11 // pred_fallthru
          _
        // Predicated region
        $region45: #{tpu_custom_call.1} parent=11 // pred_check
          %p316 = pneg %p249
        $region46: #{tpu_custom_call.1} parent=11 // pred_check_branch
          %318 = sbr.rel (%p316) target = $region48
        $region47: #{tpu_custom_call.1} parent=11 // pred_region
          _
        $region48: #{tpu_custom_call.1} parent=11 // pred_fallthru
          _
      $region12: #{tpu_custom_call.1} parent=5 // pred_fallthru
        _
      %p319 = scmp.lt.s32.totalorder %s20, 4
      // Predicated region
      $region49: #{tpu_custom_call.1} parent=5 // pred_check
        %p320 = pneg %p319
      $region50: #{tpu_custom_call.1} parent=5 // pred_check_branch
        %322 = sbr.rel (%p320) target = $region52
      $region51: #{tpu_custom_call.1} parent=5 // pred_region
        // Predicated region
        $region53: #{tpu_custom_call.1} parent=51 // pred_check
          %p323 = pneg %p54
        $region54: #{tpu_custom_call.1} parent=51 // pred_check_branch
          %325 = sbr.rel (%p323) target = $region56
        $region55: #{tpu_custom_call.1} parent=51 // pred_region
          %s326 = sand.u32 %s44, 1
          %s327 = sand.u32 %s44, 1
          %s328 = smul.addr %s327, 16
          %s329 = scalar_lea.vmem [#allocation5], %s328
          %s330 = smul.addr %s27, 4
          %s331 = sadd.s32 %s28, %s330
          %s332 = smul.addr %s331, 8
          %s333 = scalar_lea.vmem %s0, %s332
          // Predicated region
          $region57: #{tpu_custom_call.1} parent=55 // pred_check
            _
          $region58: #{tpu_custom_call.1} parent=55 // pred_check_branch
            %335 = sbr.rel (0) target = $region60
          $region59: #{tpu_custom_call.1} parent=55 // pred_region
            // Predicated region
            $region61: #{tpu_custom_call.1} parent=59 // pred_check
              _
            $region62: #{tpu_custom_call.1} parent=59 // pred_check_branch
              %337 = sbr.rel (0) target = $region64
            $region63: #{tpu_custom_call.1} parent=59 // pred_region
              // Predicated region
              $region76: #{tpu_custom_call.1} parent=63 // pred_check
                _
              $region77: #{tpu_custom_call.1} parent=63 // pred_check_branch
                %355 = sbr.rel (0) target = $region79
              $region78: #{tpu_custom_call.1} parent=63 // pred_region
                loop: start=0, step=1, limit=1
                $region80: #{tpu_custom_call.1} parent=78 // loop_pre_header
                  _
                $region81: #{tpu_custom_call.1} parent=78 // loop_header
                  %s357 = sphi 0, %s361
                  %p358 = scmp.ge.s32.totalorder %s357, 1
                  %s362 = sphi %s333, %s333
                  %s363 = sphi %s329, %s329
                $region82: #{tpu_custom_call.1} parent=78 // loop_header_branch
                  %360 = sbr.rel (%p358) target = $region86
                $region83: #{tpu_custom_call.1} parent=78 // loop_body
                  %v364 = vld [vmem:[%s362] sm:$0xff]
                  %365 = vst [vmem:[%s363] sm:$0xff] %v364
                  %v366 = vld [vmem:[%s362 + $0x10] sm:$0xff]
                  %367 = vst [vmem:[%s363 + $0x8] sm:$0xff] %v366
                $region84: #{tpu_custom_call.1} parent=78 // loop_footer
                  %s361 = sadd.s32 1, %s357
                $region85: #{tpu_custom_call.1} parent=78 // loop_footer_branch
                  %356 = sbr.rel target = $region81
                $region86: #{tpu_custom_call.1} parent=78 // loop_exit
                  _
              $region79: #{tpu_custom_call.1} parent=63 // pred_fallthru
                _
              // Predicated region
              $region87: #{tpu_custom_call.1} parent=63 // pred_check
                _
              $region88: #{tpu_custom_call.1} parent=63 // pred_check_branch
                %369 = sbr.rel target = $region90
              $region89: #{tpu_custom_call.1} parent=63 // pred_region
                _
              $region90: #{tpu_custom_call.1} parent=63 // pred_fallthru
                _
            $region64: #{tpu_custom_call.1} parent=59 // pred_fallthru
              _
            // Predicated region
            $region65: #{tpu_custom_call.1} parent=59 // pred_check
              _
            $region66: #{tpu_custom_call.1} parent=59 // pred_check_branch
              %339 = sbr.rel target = $region68
            $region67: #{tpu_custom_call.1} parent=59 // pred_region
              %s341 = ssub.s32 256, 1
              loop: start=0, step=1, limit=1
              $region69: #{tpu_custom_call.1} parent=67 // loop_pre_header
                _
              $region70: #{tpu_custom_call.1} parent=67 // loop_header
                %s343 = sphi 0, %s347
                %p344 = scmp.ge.s32.totalorder %s343, 1
                %s348 = sphi %s333, %s333
                %s349 = sphi %s329, %s329
              $region71: #{tpu_custom_call.1} parent=67 // loop_header_branch
                %346 = sbr.rel (%p344) target = $region75
              $region72: #{tpu_custom_call.1} parent=67 // loop_body
                %v350 = vld [vmem:[%s348] sm:%s341]
                %351 = vst [vmem:[%s349] sm:%s341] %v350
                %v352 = vld [vmem:[%s348 + $0x10] sm:%s341]
                %353 = vst [vmem:[%s349 + $0x8] sm:%s341] %v352
              $region73: #{tpu_custom_call.1} parent=67 // loop_footer
                %s347 = sadd.s32 1, %s343
              $region74: #{tpu_custom_call.1} parent=67 // loop_footer_branch
                %342 = sbr.rel target = $region70
              $region75: #{tpu_custom_call.1} parent=67 // loop_exit
                _
            $region68: #{tpu_custom_call.1} parent=59 // pred_fallthru
              _
          $region60: #{tpu_custom_call.1} parent=55 // pred_fallthru
            _
          %370 = vnop
        $region56: #{tpu_custom_call.1} parent=51 // pred_fallthru
          _
      $region52: #{tpu_custom_call.1} parent=5 // pred_fallthru
        _
      %p371 = scmp.le.s32.totalorder 1, %s20
      %p372 = scmp.lt.s32.totalorder %s20, 5
      %p373 = pnand %p371, %p372
      %p374 = pneg %p373
      // Predicated region
      $region91: #{tpu_custom_call.1} parent=5 // pred_check
        _
      $region92: #{tpu_custom_call.1} parent=5 // pred_check_branch
        %376 = sbr.rel (%p373) target = $region94
      $region93: #{tpu_custom_call.1} parent=5 // pred_region
        %s377 = ssub.s32 %s20, 1
        %s378 = sand.u32 %s47, 1
        %s379 = sand.u32 %s47, 1
        %s380 = smul.addr %s379, 16
        %s381 = scalar_lea.vmem [#allocation5], %s380
        // Predicated region
        $region95: #{tpu_custom_call.1} parent=93 // pred_check
          %p382 = pneg %p60
        $region96: #{tpu_custom_call.1} parent=93 // pred_check_branch
          %384 = sbr.rel (%p382) target = $region98
        $region97: #{tpu_custom_call.1} parent=93 // pred_region
          _
        $region98: #{tpu_custom_call.1} parent=93 // pred_fallthru
          _
        %s385 = sand.u32 %s47, 1
        %s386 = sand.u32 %s47, 1
        %s387 = smul.addr %s386, 16
        %s388 = scalar_lea.vmem [#allocation5], %s387
        %p389 = pneg %p60
        %p390 = pneg %p57
        %p391 = pneg %p81
        %p392 = pneg %p78
        %p393 = pneg %p102
        %p394 = pneg %p99
        %p395 = pneg %p123
        %p396 = pneg %p120
        %p397 = pneg %p144
        %p398 = pneg %p141
        %p399 = pneg %p165
        %p400 = pneg %p162
        %p401 = pneg %p186
        %p402 = pneg %p183
        %p403 = pneg %p207
        %p404 = pneg %p204
        %p405 = pneg %p228
        %p406 = pneg %p225
        %p407 = pneg %p249
        %p408 = pneg %p246
        %p409 = pneg %p277
        %p410 = pneg %p274
        %s411 = sand.u32 %s264, 1
        %s412 = scalar_lea.sflag [#allocation7], %s411
        %s413 = sand.u32 %s264, 1
        %s414 = smul.addr %s413, 16
        %s415 = scalar_lea.vmem [#allocation6], %s414
        %s416 = smul.u32 %s30, 8
        %s417 = ssub.s32 %s416, 1
        %p418 = scmp.gt.s32.totalorder %s417, 0
        %s419 = scalar_select %p418, %s417, 0
        %s420 = sadd.s32 %s416, 8
        %p421 = scmp.lt.s32.totalorder %s420, 15
        %s422 = scalar_select %p421, %s420, 15
        %s423 = smul.u32 %s29, 256
        %s424 = sadd.s32 %s419, %s423
        %s425 = smul.addr %s424, 16
        %s426 = scalar_lea.hbm %s1, %s425
        %s428 = sshll.u32 [#allocation2], 4
        %s429 = int_to_ptr.vmem [resolvable:$true] %s428
        %431 = dma.hbm_to_vmem [thread:$0]  %s426, 256, %s429, [#allocation3], 256, 16, 1
        %s432 = sadd.s32 %s422, %s423
        %s433 = smul.addr %s432, 16
        %s434 = scalar_lea.hbm %s1, %s433
        %s435 = scalar_lea.vmem [#allocation2], 16
        %s436 = scalar_lea.sflag [#allocation3], 1
        %s438 = sshll.u32 %s435, 4
        %s439 = int_to_ptr.vmem [resolvable:$true] %s438
        %441 = dma.hbm_to_vmem [thread:$0]  %s434, 256, %s439, %s436, 256, 16, 1
        %v442 = vld [vmem:[%s2] sm:$0xf]
        %v443 = vld [vmem:[%s5] sm:$0xf]
        %v444 = vld [vmem:[%s6] sm:$0xf]
        %v445 = vld [vmem:[%s381] sm:$0xff]
        %v446 = vld [vmem:[%s381 + $0x8] sm:$0xff]
        %vm447 = vcmask 130048
        %v449 = vsel %vm447, %v442, 0
        %451 = vmatprep.subr.mxu0 0.0
        %452 = vmatpush1.msra.mxu0 0.0
        %453 = vmatprep.subr.mxu0 0.0
        %454 = vmatpush1.msra.mxu0 0.0
        %455 = vmatprep.subr.mxu0 0.0
        %456 = vmatpush1.msra.mxu0 0.0
        %457 = vmatprep.subr.mxu0 0.0
        %458 = vmatpush1.msra.mxu0 0.0
        %459 = vmatprep.subr.mxu0 0.0
        %460 = vmatpush1.msra.mxu0 0.0
        %461 = vmatprep.subr.mxu0 0.0
        %462 = vmatpush1.msra.mxu0 0.0
        %463 = vmatprep.subr.mxu0 0.0
        %464 = vmatpush1.msra.mxu0 0.0
        %465 = vmatprep.subr.mxu0 0.0
        %466 = vmatpush1.msra.mxu0 0.0
        %467 = vmatprep.subr.mxu0 0.0
        %468 = vmatpush1.msra.mxu0 0.0
        %469 = vmatprep.subr.mxu0 0.0
        %470 = vmatpush1.msra.mxu0 0.0
        %471 = vmatprep.subr.mxu0 0.0
        %472 = vmatpush1.msra.mxu0 0.0
        %473 = vmatprep.subr.mxu0 0.0
        %474 = vmatpush1.msra.mxu0 0.0
        %475 = vmatprep.subr.mxu0 0.0
        %476 = vmatpush1.msra.mxu0 0.0
        %477 = vmatprep.subr.mxu0 0.0
        %478 = vmatpush1.msra.mxu0 0.0
        %479 = vmatprep.subr.mxu0 0.0
        %480 = vmatpush1.msra.mxu0 %v446
        %481 = vmatprep.subr.mxu0 0.0
        %482 = vmatpush1.msra.mxu0 %v445
        %483 = vmatprep.subr.mxu0 0.0
        %484 = vmatpush2.msra.mxu0 0.0
        %485 = vmatprep.subr.mxu0 0.0
        %486 = vmatpush2.msra.mxu0 0.0
        %487 = vmatprep.subr.mxu0 0.0
        %488 = vmatpush2.msra.mxu0 0.0
        %489 = vmatprep.subr.mxu0 0.0
        %490 = vmatpush2.msra.mxu0 0.0
        %491 = vmatprep.subr.mxu0 0.0
        %492 = vmatpush2.msra.mxu0 0.0
        %493 = vmatprep.subr.mxu0 0.0
        %494 = vmatpush2.msra.mxu0 0.0
        %495 = vmatprep.subr.mxu0 0.0
        %496 = vmatpush2.msra.mxu0 0.0
        %497 = vmatprep.subr.mxu0 0.0
        %498 = vmatpush2.msra.mxu0 0.0
        %499 = vmatprep.subr.mxu0 0.0
        %500 = vmatpush2.msra.mxu0 0.0
        %501 = vmatprep.subr.mxu0 0.0
        %502 = vmatpush2.msra.mxu0 0.0
        %503 = vmatprep.subr.mxu0 0.0
        %504 = vmatpush2.msra.mxu0 0.0
        %505 = vmatprep.subr.mxu0 0.0
        %506 = vmatpush2.msra.mxu0 0.0
        %507 = vmatprep.subr.mxu0 0.0
        %508 = vmatpush2.msra.mxu0 0.0
        %509 = vmatprep.subr.mxu0 0.0
        %510 = vmatpush2.msra.mxu0 0.0
        %511 = vmatprep.subr.mxu0 0.0
        %512 = vmatpush2.msra.mxu0 0.0
        %513 = vmatprep.subr.mxu0 0.0
        %514 = vmatpush2.msra.mxu0 0.0
        %515 = vmatprep.mubr.f32.mxu0 0.0
        %516 = vmatmul.mubr.f32.gmra.mxu0 %v449
        %v517 = vpop.f32.mrf.mxu0
        %v518 = vadd.f32 0.0, %v517
        %v519 = vpop.f32.mrf.mxu0
        %520 = vdwg.mxu0
        %522 = vset.pattern.permute.xlu0 0
        %523 = vperm.xlu0 %522, %v443
        %v524 = vpop.permute.xlu0 %523
        %v526 = vmul.f32 %v518, %v524
        %528 = vset.pattern.permute.xlu0 0
        %529 = vperm.xlu0 %528, %v444
        %v530 = vpop.permute.xlu0 %529
        %v532 = vadd.f32 %v526, %v530
        %v533 = vmax.f32 %v532, 0.0
        %s534 = smul.u32 16, 1
        %s535 = smul.u32 %s534, 1
        %s536 = sshll.u32 %s535, 4
        %537 = dma.done [#allocation3], %s536
        %v538 = vld [vmem:[#allocation2] sm:$0x1]
        %v539 = vld [vmem:[#allocation2 + $0x1] sm:$0x1]
        %v540 = vld [vmem:[#allocation2 + $0x2] sm:$0x1]
        %v541 = vld [vmem:[#allocation2 + $0x3] sm:$0x1]
        %v542 = vld [vmem:[#allocation2 + $0x4] sm:$0x1]
        %v543 = vld [vmem:[#allocation2 + $0x5] sm:$0x1]
        %v544 = vld [vmem:[#allocation2 + $0x6] sm:$0x1]
        %v545 = vld [vmem:[#allocation2 + $0x7] sm:$0x1]
        %v546 = vld [vmem:[#allocation2 + $0x8] sm:$0x1]
        %v547 = vld [vmem:[#allocation2 + $0x9] sm:$0x1]
        %v548 = vld [vmem:[#allocation2 + $0xa] sm:$0x1]
        %v549 = vld [vmem:[#allocation2 + $0xb] sm:$0x1]
        %v550 = vld [vmem:[#allocation2 + $0xc] sm:$0x1]
        %v551 = vld [vmem:[#allocation2 + $0xd] sm:$0x1]
        %v552 = vld [vmem:[#allocation2 + $0xe] sm:$0x1]
        %v553 = vld [vmem:[#allocation2 + $0xf] sm:$0x1]
        %v570 = vcombine.low %v538, %v539
        %v571 = vcombine.low %v540, %v541
        %v572 = vcombine.low %v542, %v543
        %v573 = vcombine.low %v544, %v545
        %v575 = vunpack.c.l.s4 1966171168
        %v576 = vunpack.c.0.s8 %v575
        %v577 = vlaneseq
        %v578 = vshrl.u32 %v577, 7
        %v579 = vsub.s32 %v576, %v578
        %v580 = vrot.slane %v570, %v579
        %v582 = vunpack.c.l.s4 1966171168
        %v583 = vunpack.c.0.s8 %v582
        %v584 = vlaneseq
        %v585 = vshrl.u32 %v584, 7
        %v586 = vsub.s32 %v583, %v585
        %v587 = vrot.slane %v571, %v586
        %v589 = vunpack.c.l.s4 1966171168
        %v590 = vunpack.c.0.s8 %v589
        %v591 = vlaneseq
        %v592 = vshrl.u32 %v591, 7
        %v593 = vsub.s32 %v590, %v592
        %v594 = vrot.slane %v572, %v593
        %v596 = vunpack.c.l.s4 1966171168
        %v597 = vunpack.c.0.s8 %v596
        %v598 = vlaneseq
        %v599 = vshrl.u32 %v598, 7
        %v600 = vsub.s32 %v597, %v599
        %v601 = vrot.slane %v573, %v600
        %v602 = vcombine.low %v580, %v587
        %v603 = vcombine.low %v594, %v601
        %v605 = vunpack.c.l.s4 1966171168
        %v606 = vunpack.c.0.s8 %v605
        %v607 = vlaneseq
        %v608 = vshrl.u32 %v607, 7
        %v609 = vsub.s32 %v606, %v608
        %v610 = vrot.slane %v602, %v609
        %v612 = vunpack.c.l.s4 1966171168
        %v613 = vunpack.c.0.s8 %v612
        %v614 = vlaneseq
        %v615 = vshrl.u32 %v614, 7
        %v616 = vsub.s32 %v613, %v615
        %v617 = vrot.slane %v603, %v616
        %v618 = vcombine.low %v610, %v617
        %v619 = vcombine.low %v546, %v547
        %v620 = vcombine.low %v548, %v549
        %v621 = vcombine.low %v550, %v551
        %v622 = vcombine.low %v552, %v553
        %v624 = vunpack.c.l.s4 1966171168
        %v625 = vunpack.c.0.s8 %v624
        %v626 = vlaneseq
        %v627 = vshrl.u32 %v626, 7
        %v628 = vsub.s32 %v625, %v627
        %v629 = vrot.slane %v619, %v628
        %v631 = vunpack.c.l.s4 1966171168
        %v632 = vunpack.c.0.s8 %v631
        %v633 = vlaneseq
        %v634 = vshrl.u32 %v633, 7
        %v635 = vsub.s32 %v632, %v634
        %v636 = vrot.slane %v620, %v635
        %v638 = vunpack.c.l.s4 1966171168
        %v639 = vunpack.c.0.s8 %v638
        %v640 = vlaneseq
        %v641 = vshrl.u32 %v640, 7
        %v642 = vsub.s32 %v639, %v641
        %v643 = vrot.slane %v621, %v642
        %v645 = vunpack.c.l.s4 1966171168
        %v646 = vunpack.c.0.s8 %v645
        %v647 = vlaneseq
        %v648 = vshrl.u32 %v647, 7
        %v649 = vsub.s32 %v646, %v648
        %v650 = vrot.slane %v622, %v649
        %v651 = vcombine.low %v629, %v636
        %v652 = vcombine.low %v643, %v650
        %v654 = vunpack.c.l.s4 1966171168
        %v655 = vunpack.c.0.s8 %v654
        %v656 = vlaneseq
        %v657 = vshrl.u32 %v656, 7
        %v658 = vsub.s32 %v655, %v657
        %v659 = vrot.slane %v651, %v658
        %v661 = vunpack.c.l.s4 1966171168
        %v662 = vunpack.c.0.s8 %v661
        %v663 = vlaneseq
        %v664 = vshrl.u32 %v663, 7
        %v665 = vsub.s32 %v662, %v664
        %v666 = vrot.slane %v652, %v665
        %v667 = vcombine.low %v659, %v666
        %670 = vmatprep.subr.mxu0 0.0
        %671 = vmatpush1.msra.mxu0 0.0
        %672 = vmatprep.subr.mxu0 0.0
        %673 = vmatpush1.msra.mxu0 0.0
        %674 = vmatprep.subr.mxu0 0.0
        %675 = vmatpush1.msra.mxu0 0.0
        %676 = vmatprep.subr.mxu0 0.0
        %677 = vmatpush1.msra.mxu0 0.0
        %678 = vmatprep.subr.mxu0 0.0
        %679 = vmatpush1.msra.mxu0 0.0
        %680 = vmatprep.subr.mxu0 0.0
        %681 = vmatpush1.msra.mxu0 0.0
        %682 = vmatprep.subr.mxu0 0.0
        %683 = vmatpush1.msra.mxu0 0.0
        %684 = vmatprep.subr.mxu0 0.0
        %685 = vmatpush1.msra.mxu0 0.0
        %686 = vmatprep.subr.mxu0 0.0
        %687 = vmatpush1.msra.mxu0 0.0
        %688 = vmatprep.subr.mxu0 0.0
        %689 = vmatpush1.msra.mxu0 0.0
        %690 = vmatprep.subr.mxu0 0.0
        %691 = vmatpush1.msra.mxu0 0.0
        %692 = vmatprep.subr.mxu0 0.0
        %693 = vmatpush1.msra.mxu0 0.0
        %694 = vmatprep.subr.mxu0 0.0
        %695 = vmatpush1.msra.mxu0 0.0
        %696 = vmatprep.subr.mxu0 0.0
        %697 = vmatpush1.msra.mxu0 0.0
        %698 = vmatprep.subr.mxu0 0.0
        %699 = vmatpush1.msra.mxu0 %v667
        %700 = vmatprep.subr.mxu0 0.0
        %701 = vmatpush1.msra.mxu0 %v618
        %702 = vmatprep.subr.mxu0 0.0
        %703 = vmatpush2.msra.mxu0 0.0
        %704 = vmatprep.subr.mxu0 0.0
        %705 = vmatpush2.msra.mxu0 0.0
        %706 = vmatprep.subr.mxu0 0.0
        %707 = vmatpush2.msra.mxu0 0.0
        %708 = vmatprep.subr.mxu0 0.0
        %709 = vmatpush2.msra.mxu0 0.0
        %710 = vmatprep.subr.mxu0 0.0
        %711 = vmatpush2.msra.mxu0 0.0
        %712 = vmatprep.subr.mxu0 0.0
        %713 = vmatpush2.msra.mxu0 0.0
        %714 = vmatprep.subr.mxu0 0.0
        %715 = vmatpush2.msra.mxu0 0.0
        %716 = vmatprep.subr.mxu0 0.0
        %717 = vmatpush2.msra.mxu0 0.0
        %718 = vmatprep.subr.mxu0 0.0
        %719 = vmatpush2.msra.mxu0 0.0
        %720 = vmatprep.subr.mxu0 0.0
        %721 = vmatpush2.msra.mxu0 0.0
        %722 = vmatprep.subr.mxu0 0.0
        %723 = vmatpush2.msra.mxu0 0.0
        %724 = vmatprep.subr.mxu0 0.0
        %725 = vmatpush2.msra.mxu0 0.0
        %726 = vmatprep.subr.mxu0 0.0
        %727 = vmatpush2.msra.mxu0 0.0
        %728 = vmatprep.subr.mxu0 0.0
        %729 = vmatpush2.msra.mxu0 0.0
        %730 = vmatprep.subr.mxu0 0.0
        %731 = vmatpush2.msra.mxu0 0.0
        %732 = vmatprep.subr.mxu0 0.0
        %733 = vmatpush2.msra.mxu0 0.0
        %734 = vmatprep.mubr.f32.mxu0 0.0
        %735 = vmatmul.mubr.f32.gmra.mxu0 %v449
        %v736 = vpop.f32.mrf.mxu0
        %v737 = vadd.f32 0.0, %v736
        %v738 = vpop.f32.mrf.mxu0
        %739 = vdwg.mxu0
        %v740 = vmul.f32 %v737, %v524
        %v741 = vadd.f32 %v740, %v530
        %v742 = vmax.f32 %v741, 0.0
        %p743 = scmp.gt.s32.totalorder %s30, 0
        %s744 = scalar_select %p743, 1, 0
        %v745 = vstv %s744
        %vm746 = vcmp.eq.s32.totalorder %v745, 1
        %v747 = vsel %vm746, %v742, 0.0
        %s748 = sshll.u32 %s535, 4
        %749 = dma.done %s436, %s748
        %v750 = vld [vmem:[%s435] sm:$0x1]
        %v751 = vld [vmem:[%s435 + $0x1] sm:$0x1]
        %v752 = vld [vmem:[%s435 + $0x2] sm:$0x1]
        %v753 = vld [vmem:[%s435 + $0x3] sm:$0x1]
        %v754 = vld [vmem:[%s435 + $0x4] sm:$0x1]
        %v755 = vld [vmem:[%s435 + $0x5] sm:$0x1]
        %v756 = vld [vmem:[%s435 + $0x6] sm:$0x1]
        %v757 = vld [vmem:[%s435 + $0x7] sm:$0x1]
        %v758 = vld [vmem:[%s435 + $0x8] sm:$0x1]
        %v759 = vld [vmem:[%s435 + $0x9] sm:$0x1]
        %v760 = vld [vmem:[%s435 + $0xa] sm:$0x1]
        %v761 = vld [vmem:[%s435 + $0xb] sm:$0x1]
        %v762 = vld [vmem:[%s435 + $0xc] sm:$0x1]
        %v763 = vld [vmem:[%s435 + $0xd] sm:$0x1]
        %v764 = vld [vmem:[%s435 + $0xe] sm:$0x1]
        %v765 = vld [vmem:[%s435 + $0xf] sm:$0x1]
        %v782 = vcombine.low %v750, %v751
        %v783 = vcombine.low %v752, %v753
        %v784 = vcombine.low %v754, %v755
        %v785 = vcombine.low %v756, %v757
        %v787 = vunpack.c.l.s4 1966171168
        %v788 = vunpack.c.0.s8 %v787
        %v789 = vlaneseq
        %v790 = vshrl.u32 %v789, 7
        %v791 = vsub.s32 %v788, %v790
        %v792 = vrot.slane %v782, %v791
        %v794 = vunpack.c.l.s4 1966171168
        %v795 = vunpack.c.0.s8 %v794
        %v796 = vlaneseq
        %v797 = vshrl.u32 %v796, 7
        %v798 = vsub.s32 %v795, %v797
        %v799 = vrot.slane %v783, %v798
        %v801 = vunpack.c.l.s4 1966171168
        %v802 = vunpack.c.0.s8 %v801
        %v803 = vlaneseq
        %v804 = vshrl.u32 %v803, 7
        %v805 = vsub.s32 %v802, %v804
        %v806 = vrot.slane %v784, %v805
        %v808 = vunpack.c.l.s4 1966171168
        %v809 = vunpack.c.0.s8 %v808
        %v810 = vlaneseq
        %v811 = vshrl.u32 %v810, 7
        %v812 = vsub.s32 %v809, %v811
        %v813 = vrot.slane %v785, %v812
        %v814 = vcombine.low %v792, %v799
        %v815 = vcombine.low %v806, %v813
        %v817 = vunpack.c.l.s4 1966171168
        %v818 = vunpack.c.0.s8 %v817
        %v819 = vlaneseq
        %v820 = vshrl.u32 %v819, 7
        %v821 = vsub.s32 %v818, %v820
        %v822 = vrot.slane %v814, %v821
        %v824 = vunpack.c.l.s4 1966171168
        %v825 = vunpack.c.0.s8 %v824
        %v826 = vlaneseq
        %v827 = vshrl.u32 %v826, 7
        %v828 = vsub.s32 %v825, %v827
        %v829 = vrot.slane %v815, %v828
        %v830 = vcombine.low %v822, %v829
        %v831 = vcombine.low %v758, %v759
        %v832 = vcombine.low %v760, %v761
        %v833 = vcombine.low %v762, %v763
        %v834 = vcombine.low %v764, %v765
        %v836 = vunpack.c.l.s4 1966171168
        %v837 = vunpack.c.0.s8 %v836
        %v838 = vlaneseq
        %v839 = vshrl.u32 %v838, 7
        %v840 = vsub.s32 %v837, %v839
        %v841 = vrot.slane %v831, %v840
        %v843 = vunpack.c.l.s4 1966171168
        %v844 = vunpack.c.0.s8 %v843
        %v845 = vlaneseq
        %v846 = vshrl.u32 %v845, 7
        %v847 = vsub.s32 %v844, %v846
        %v848 = vrot.slane %v832, %v847
        %v850 = vunpack.c.l.s4 1966171168
        %v851 = vunpack.c.0.s8 %v850
        %v852 = vlaneseq
        %v853 = vshrl.u32 %v852, 7
        %v854 = vsub.s32 %v851, %v853
        %v855 = vrot.slane %v833, %v854
        %v857 = vunpack.c.l.s4 1966171168
        %v858 = vunpack.c.0.s8 %v857
        %v859 = vlaneseq
        %v860 = vshrl.u32 %v859, 7
        %v861 = vsub.s32 %v858, %v860
        %v862 = vrot.slane %v834, %v861
        %v863 = vcombine.low %v841, %v848
        %v864 = vcombine.low %v855, %v862
        %v866 = vunpack.c.l.s4 1966171168
        %v867 = vunpack.c.0.s8 %v866
        %v868 = vlaneseq
        %v869 = vshrl.u32 %v868, 7
        %v870 = vsub.s32 %v867, %v869
        %v871 = vrot.slane %v863, %v870
        %v873 = vunpack.c.l.s4 1966171168
        %v874 = vunpack.c.0.s8 %v873
        %v875 = vlaneseq
        %v876 = vshrl.u32 %v875, 7
        %v877 = vsub.s32 %v874, %v876
        %v878 = vrot.slane %v864, %v877
        %v879 = vcombine.low %v871, %v878
        %882 = vmatprep.subr.mxu0 0.0
        %883 = vmatpush1.msra.mxu0 0.0
        %884 = vmatprep.subr.mxu0 0.0
        %885 = vmatpush1.msra.mxu0 0.0
        %886 = vmatprep.subr.mxu0 0.0
        %887 = vmatpush1.msra.mxu0 0.0
        %888 = vmatprep.subr.mxu0 0.0
        %889 = vmatpush1.msra.mxu0 0.0
        %890 = vmatprep.subr.mxu0 0.0
        %891 = vmatpush1.msra.mxu0 0.0
        %892 = vmatprep.subr.mxu0 0.0
        %893 = vmatpush1.msra.mxu0 0.0
        %894 = vmatprep.subr.mxu0 0.0
        %895 = vmatpush1.msra.mxu0 0.0
        %896 = vmatprep.subr.mxu0 0.0
        %897 = vmatpush1.msra.mxu0 0.0
        %898 = vmatprep.subr.mxu0 0.0
        %899 = vmatpush1.msra.mxu0 0.0
        %900 = vmatprep.subr.mxu0 0.0
        %901 = vmatpush1.msra.mxu0 0.0
        %902 = vmatprep.subr.mxu0 0.0
        %903 = vmatpush1.msra.mxu0 0.0
        %904 = vmatprep.subr.mxu0 0.0
        %905 = vmatpush1.msra.mxu0 0.0
        %906 = vmatprep.subr.mxu0 0.0
        %907 = vmatpush1.msra.mxu0 0.0
        %908 = vmatprep.subr.mxu0 0.0
        %909 = vmatpush1.msra.mxu0 0.0
        %910 = vmatprep.subr.mxu0 0.0
        %911 = vmatpush1.msra.mxu0 %v879
        %912 = vmatprep.subr.mxu0 0.0
        %913 = vmatpush1.msra.mxu0 %v830
        %914 = vmatprep.subr.mxu0 0.0
        %915 = vmatpush2.msra.mxu0 0.0
        %916 = vmatprep.subr.mxu0 0.0
        %917 = vmatpush2.msra.mxu0 0.0
        %918 = vmatprep.subr.mxu0 0.0
        %919 = vmatpush2.msra.mxu0 0.0
        %920 = vmatprep.subr.mxu0 0.0
        %921 = vmatpush2.msra.mxu0 0.0
        %922 = vmatprep.subr.mxu0 0.0
        %923 = vmatpush2.msra.mxu0 0.0
        %924 = vmatprep.subr.mxu0 0.0
        %925 = vmatpush2.msra.mxu0 0.0
        %926 = vmatprep.subr.mxu0 0.0
        %927 = vmatpush2.msra.mxu0 0.0
        %928 = vmatprep.subr.mxu0 0.0
        %929 = vmatpush2.msra.mxu0 0.0
        %930 = vmatprep.subr.mxu0 0.0
        %931 = vmatpush2.msra.mxu0 0.0
        %932 = vmatprep.subr.mxu0 0.0
        %933 = vmatpush2.msra.mxu0 0.0
        %934 = vmatprep.subr.mxu0 0.0
        %935 = vmatpush2.msra.mxu0 0.0
        %936 = vmatprep.subr.mxu0 0.0
        %937 = vmatpush2.msra.mxu0 0.0
        %938 = vmatprep.subr.mxu0 0.0
        %939 = vmatpush2.msra.mxu0 0.0
        %940 = vmatprep.subr.mxu0 0.0
        %941 = vmatpush2.msra.mxu0 0.0
        %942 = vmatprep.subr.mxu0 0.0
        %943 = vmatpush2.msra.mxu0 0.0
        %944 = vmatprep.subr.mxu0 0.0
        %945 = vmatpush2.msra.mxu0 0.0
        %946 = vmatprep.mubr.f32.mxu0 0.0
        %947 = vmatmul.mubr.f32.gmra.mxu0 %v449
        %v948 = vpop.f32.mrf.mxu0
        %v949 = vadd.f32 0.0, %v948
        %v950 = vpop.f32.mrf.mxu0
        %951 = vdwg.mxu0
        %v952 = vmul.f32 %v949, %v524
        %v953 = vadd.f32 %v952, %v530
        %v954 = vmax.f32 %v953, 0.0
        %p955 = scmp.lt.s32.totalorder %s30, 1
        %s956 = scalar_select %p955, 1, 0
        %v957 = vstv %s956
        %vm958 = vcmp.eq.s32.totalorder %v957, 1
        %v959 = vsel %vm958, %v954, 0.0
        %vm960 = vcmask 146432
        %961 = vst.msk [vmem:[#allocation4] sm:$0xff] %vm960, 0.0
        %vm962 = vcmask 140288
        %963 = vst.msk [vmem:[#allocation4 + $0x8] sm:$0x3] %vm962, 0.0
        %964 = vst.msk [vmem:[#allocation4 + $0x10] sm:$0xff] %vm960, 0.0
        %965 = vst.msk [vmem:[#allocation4 + $0x18] sm:$0x3] %vm962, 0.0
        %966 = vst.msk [vmem:[#allocation4 + $0x20] sm:$0xff] %vm960, 0.0
        %967 = vst.msk [vmem:[#allocation4 + $0x28] sm:$0x3] %vm962, 0.0
        %968 = vst.msk [vmem:[#allocation4 + $0x30] sm:$0xff] %vm960, 0.0
        %969 = vst.msk [vmem:[#allocation4 + $0x38] sm:$0x3] %vm962, 0.0
        %v972 = vunpack.c.l.s4 1966171168
        %v973 = vunpack.c.0.s8 %v972
        %v974 = vlaneseq
        %v975 = vshrl.u32 %v974, 7
        %v976 = vsub.s32 %v973, %v975
        %v977 = vrot.slane %v747, %v976
        %v978 = vcombine.high %v977, %v977
        %v980 = vunpack.c.l.s4 1966171168
        %v981 = vunpack.c.0.s8 %v980
        %v982 = vlaneseq
        %v983 = vshrl.u32 %v982, 7
        %v984 = vsub.s32 %v981, %v983
        %v985 = vrot.slane %v977, %v984
        %v987 = vunpack.c.l.s4 1966171168
        %v988 = vunpack.c.0.s8 %v987
        %v989 = vlaneseq
        %v990 = vshrl.u32 %v989, 7
        %v991 = vsub.s32 %v988, %v990
        %v992 = vrot.slane %v978, %v991
        %v993 = vcombine.high %v985, %v985
        %v994 = vcombine.high %v992, %v992
        %v995 = vlaneseq
        %v996 = vshrl.u32 %v995, 7
        %v997 = vsub.s32 0, %v996
        %v998 = vrot.slane %v985, %v997
        %v999 = vlaneseq
        %v1000 = vshrl.u32 %v999, 7
        %v1001 = vsub.s32 0, %v1000
        %v1002 = vrot.slane %v992, %v1001
        %v1003 = vlaneseq
        %v1004 = vshrl.u32 %v1003, 7
        %v1005 = vsub.s32 0, %v1004
        %v1006 = vrot.slane %v993, %v1005
        %v1007 = vlaneseq
        %v1008 = vshrl.u32 %v1007, 7
        %v1009 = vsub.s32 0, %v1008
        %v1010 = vrot.slane %v994, %v1009
        %1011 = vrot.lane.b32.xlu0 %v998, 1
        %v1012 = vpop.permute.xlu0 %1011
        %1013 = vrot.lane.b32.xlu0 %v1002, 1
        %v1014 = vpop.permute.xlu0 %1013
        %1015 = vrot.lane.b32.xlu0 %v1006, 1
        %v1016 = vpop.permute.xlu0 %1015
        %1017 = vrot.lane.b32.xlu0 %v1010, 1
        %v1018 = vpop.permute.xlu0 %1017
        %vm1023 = vcmask 131080
        %1024 = vst.msk [vmem:[#allocation4] sm:$0x1] %vm1023, %v1012
        %1025 = vst.msk [vmem:[#allocation4 + $0x10] sm:$0x1] %vm1023, %v1014
        %1026 = vst.msk [vmem:[#allocation4 + $0x20] sm:$0x1] %vm1023, %v1016
        %1027 = vst.msk [vmem:[#allocation4 + $0x30] sm:$0x1] %vm1023, %v1018
        %1029 = vrot.lane.b32.xlu0 %v533, 112
        %v1030 = vpop.permute.xlu0 %1029
        %1032 = vrot.lane.b32.xlu0 %v533, 96
        %v1033 = vpop.permute.xlu0 %1032
        %1035 = vrot.lane.b32.xlu0 %v533, 80
        %v1036 = vpop.permute.xlu0 %1035
        %1038 = vrot.lane.b32.xlu0 %v533, 64
        %v1039 = vpop.permute.xlu0 %1038
        %1041 = vrot.lane.b32.xlu0 %v533, 48
        %v1042 = vpop.permute.xlu0 %1041
        %1044 = vrot.lane.b32.xlu0 %v533, 32
        %v1045 = vpop.permute.xlu0 %1044
        %1047 = vrot.lane.b32.xlu0 %v533, 16
        %v1048 = vpop.permute.xlu0 %1047
        %v1050 = vcombine.low %v533, %v1033
        %v1052 = vunpack.c.l.s4 1983009808
        %v1053 = vunpack.c.0.s8 %v1052
        %v1054 = vlaneseq
        %v1055 = vshrl.u32 %v1054, 7
        %v1056 = vsub.s32 %v1053, %v1055
        %v1057 = vrot.slane %v1050, %v1056
        %v1058 = vcombine.low %v1030, %v1036
        %v1060 = vunpack.c.l.s4 1983009808
        %v1061 = vunpack.c.0.s8 %v1060
        %v1062 = vlaneseq
        %v1063 = vshrl.u32 %v1062, 7
        %v1064 = vsub.s32 %v1061, %v1063
        %v1065 = vrot.slane %v1058, %v1064
        %v1066 = vcombine.low %v1039, %v1045
        %v1068 = vunpack.c.l.s4 1983009808
        %v1069 = vunpack.c.0.s8 %v1068
        %v1070 = vlaneseq
        %v1071 = vshrl.u32 %v1070, 7
        %v1072 = vsub.s32 %v1069, %v1071
        %v1073 = vrot.slane %v1066, %v1072
        %v1074 = vcombine.low %v1042, %v1048
        %v1076 = vunpack.c.l.s4 1983009808
        %v1077 = vunpack.c.0.s8 %v1076
        %v1078 = vlaneseq
        %v1079 = vshrl.u32 %v1078, 7
        %v1080 = vsub.s32 %v1077, %v1079
        %v1081 = vrot.slane %v1074, %v1080
        %v1082 = vcombine.low %v1057, %v1065
        %v1083 = vcombine.high %v1057, %v1065
        %v1085 = vunpack.c.l.s4 1934713408
        %v1086 = vunpack.c.0.s8 %v1085
        %v1087 = vlaneseq
        %v1088 = vshrl.u32 %v1087, 7
        %v1089 = vsub.s32 %v1086, %v1088
        %v1090 = vrot.slane %v1082, %v1089
        %v1092 = vunpack.c.l.s4 1934713408
        %v1093 = vunpack.c.0.s8 %v1092
        %v1094 = vlaneseq
        %v1095 = vshrl.u32 %v1094, 7
        %v1096 = vsub.s32 %v1093, %v1095
        %v1097 = vrot.slane %v1083, %v1096
        %v1098 = vcombine.low %v1073, %v1081
        %v1099 = vcombine.high %v1073, %v1081
        %v1101 = vunpack.c.l.s4 1934713408
        %v1102 = vunpack.c.0.s8 %v1101
        %v1103 = vlaneseq
        %v1104 = vshrl.u32 %v1103, 7
        %v1105 = vsub.s32 %v1102, %v1104
        %v1106 = vrot.slane %v1098, %v1105
        %v1108 = vunpack.c.l.s4 1934713408
        %v1109 = vunpack.c.0.s8 %v1108
        %v1110 = vlaneseq
        %v1111 = vshrl.u32 %v1110, 7
        %v1112 = vsub.s32 %v1109, %v1111
        %v1113 = vrot.slane %v1099, %v1112
        %v1114 = vcombine.low %v1090, %v1106
        %v1115 = vcombine.high %v1090, %v1106
        %v1116 = vcombine.low %v1097, %v1113
        %v1117 = vcombine.high %v1097, %v1113
        %1122 = vrot.lane.b32.xlu0 %v1114, 1
        %v1123 = vpop.permute.xlu0 %1122
        %1124 = vrot.lane.b32.xlu0 %v1115, 1
        %v1125 = vpop.permute.xlu0 %1124
        %1126 = vrot.lane.b32.xlu0 %v1116, 1
        %v1127 = vpop.permute.xlu0 %1126
        %1128 = vrot.lane.b32.xlu0 %v1117, 1
        %v1129 = vpop.permute.xlu0 %1128
        %vm1134 = vcmask 138248
        %1135 = vst.msk [vmem:[#allocation4 + $0x1] sm:$0xff] %vm1134, %v1123
        %1136 = vst.msk [vmem:[#allocation4 + $0x11] sm:$0xff] %vm1134, %v1125
        %1137 = vst.msk [vmem:[#allocation4 + $0x21] sm:$0xff] %vm1134, %v1127
        %1138 = vst.msk [vmem:[#allocation4 + $0x31] sm:$0xff] %vm1134, %v1129
        %v1141 = vunpack.c.l.s4 1966171168
        %v1142 = vunpack.c.0.s8 %v1141
        %v1143 = vlaneseq
        %v1144 = vshrl.u32 %v1143, 7
        %v1145 = vsub.s32 %v1142, %v1144
        %v1146 = vrot.slane %v959, %v1145
        %v1147 = vcombine.high %v1146, %v1146
        %v1149 = vunpack.c.l.s4 1966171168
        %v1150 = vunpack.c.0.s8 %v1149
        %v1151 = vlaneseq
        %v1152 = vshrl.u32 %v1151, 7
        %v1153 = vsub.s32 %v1150, %v1152
        %v1154 = vrot.slane %v1146, %v1153
        %v1156 = vunpack.c.l.s4 1966171168
        %v1157 = vunpack.c.0.s8 %v1156
        %v1158 = vlaneseq
        %v1159 = vshrl.u32 %v1158, 7
        %v1160 = vsub.s32 %v1157, %v1159
        %v1161 = vrot.slane %v1147, %v1160
        %v1162 = vcombine.high %v1154, %v1154
        %v1163 = vcombine.high %v1161, %v1161
        %v1164 = vlaneseq
        %v1165 = vshrl.u32 %v1164, 7
        %v1166 = vsub.s32 0, %v1165
        %v1167 = vrot.slane %v1154, %v1166
        %v1168 = vlaneseq
        %v1169 = vshrl.u32 %v1168, 7
        %v1170 = vsub.s32 0, %v1169
        %v1171 = vrot.slane %v1161, %v1170
        %v1172 = vlaneseq
        %v1173 = vshrl.u32 %v1172, 7
        %v1174 = vsub.s32 0, %v1173
        %v1175 = vrot.slane %v1162, %v1174
        %v1176 = vlaneseq
        %v1177 = vshrl.u32 %v1176, 7
        %v1178 = vsub.s32 0, %v1177
        %v1179 = vrot.slane %v1163, %v1178
        %1180 = vrot.lane.b32.xlu0 %v1167, 1
        %v1181 = vpop.permute.xlu0 %1180
        %1182 = vrot.lane.b32.xlu0 %v1171, 1
        %v1183 = vpop.permute.xlu0 %1182
        %1184 = vrot.lane.b32.xlu0 %v1175, 1
        %v1185 = vpop.permute.xlu0 %1184
        %1186 = vrot.lane.b32.xlu0 %v1179, 1
        %v1187 = vpop.permute.xlu0 %1186
        %1192 = vst.msk [vmem:[#allocation4 + $0x9] sm:$0x1] %vm1023, %v1181
        %1193 = vst.msk [vmem:[#allocation4 + $0x19] sm:$0x1] %vm1023, %v1183
        %1194 = vst.msk [vmem:[#allocation4 + $0x29] sm:$0x1] %vm1023, %v1185
        %1195 = vst.msk [vmem:[#allocation4 + $0x39] sm:$0x1] %vm1023, %v1187
        %v1196 = vld [vmem:[#allocation4] sm:$0xff]
        %v1197 = vld [vmem:[#allocation4 + $0x10] sm:$0xff]
        %v1198 = vld [vmem:[#allocation4 + $0x20] sm:$0xff]
        %v1199 = vld [vmem:[#allocation4 + $0x30] sm:$0xff]
        %v1200 = vcombine.low %v1196, %v1198
        %v1201 = vcombine.high %v1196, %v1198
        %v1203 = vunpack.c.l.s4 1983009808
        %v1204 = vunpack.c.0.s8 %v1203
        %v1205 = vlaneseq
        %v1206 = vshrl.u32 %v1205, 7
        %v1207 = vsub.s32 %v1204, %v1206
        %v1208 = vrot.slane %v1200, %v1207
        %v1210 = vunpack.c.l.s4 1983009808
        %v1211 = vunpack.c.0.s8 %v1210
        %v1212 = vlaneseq
        %v1213 = vshrl.u32 %v1212, 7
        %v1214 = vsub.s32 %v1211, %v1213
        %v1215 = vrot.slane %v1201, %v1214
        %v1216 = vcombine.low %v1197, %v1199
        %v1217 = vcombine.high %v1197, %v1199
        %v1219 = vunpack.c.l.s4 1983009808
        %v1220 = vunpack.c.0.s8 %v1219
        %v1221 = vlaneseq
        %v1222 = vshrl.u32 %v1221, 7
        %v1223 = vsub.s32 %v1220, %v1222
        %v1224 = vrot.slane %v1216, %v1223
        %v1226 = vunpack.c.l.s4 1983009808
        %v1227 = vunpack.c.0.s8 %v1226
        %v1228 = vlaneseq
        %v1229 = vshrl.u32 %v1228, 7
        %v1230 = vsub.s32 %v1227, %v1229
        %v1231 = vrot.slane %v1217, %v1230
        %v1232 = vcombine.low %v1208, %v1224
        %v1233 = vcombine.high %v1208, %v1224
        %v1235 = vunpack.c.l.s4 1934713408
        %v1236 = vunpack.c.0.s8 %v1235
        %v1237 = vlaneseq
        %v1238 = vshrl.u32 %v1237, 7
        %v1239 = vsub.s32 %v1236, %v1238
        %v1240 = vrot.slane %v1232, %v1239
        %v1242 = vunpack.c.l.s4 1934713408
        %v1243 = vunpack.c.0.s8 %v1242
        %v1244 = vlaneseq
        %v1245 = vshrl.u32 %v1244, 7
        %v1246 = vsub.s32 %v1243, %v1245
        %v1247 = vrot.slane %v1233, %v1246
        %v1248 = vcombine.low %v1215, %v1231
        %v1249 = vcombine.high %v1215, %v1231
        %v1251 = vunpack.c.l.s4 1934713408
        %v1252 = vunpack.c.0.s8 %v1251
        %v1253 = vlaneseq
        %v1254 = vshrl.u32 %v1253, 7
        %v1255 = vsub.s32 %v1252, %v1254
        %v1256 = vrot.slane %v1248, %v1255
        %v1258 = vunpack.c.l.s4 1934713408
        %v1259 = vunpack.c.0.s8 %v1258
        %v1260 = vlaneseq
        %v1261 = vshrl.u32 %v1260, 7
        %v1262 = vsub.s32 %v1259, %v1261
        %v1263 = vrot.slane %v1249, %v1262
        %v1264 = vcombine.high %v1240, 0.0
        %v1265 = vcombine.high %v1247, 0.0
        %v1266 = vcombine.high %v1256, 0.0
        %v1267 = vcombine.high %v1263, 0.0
        %1269 = vrot.lane.b32.xlu0 %v1264, 16
        %v1270 = vpop.permute.xlu0 %1269
        %1273 = vrot.lane.b32.xlu0 %v1247, 32
        %v1274 = vpop.permute.xlu0 %1273
        %1277 = vrot.lane.b32.xlu0 %v1265, 48
        %v1278 = vpop.permute.xlu0 %1277
        %1281 = vrot.lane.b32.xlu0 %v1256, 64
        %v1282 = vpop.permute.xlu0 %1281
        %1285 = vrot.lane.b32.xlu0 %v1266, 80
        %v1286 = vpop.permute.xlu0 %1285
        %1289 = vrot.lane.b32.xlu0 %v1263, 96
        %v1290 = vpop.permute.xlu0 %1289
        %1293 = vrot.lane.b32.xlu0 %v1267, 112
        %v1294 = vpop.permute.xlu0 %1293
        %v1296 = vsel %vm447, %v1240, %v1270
        %vm1297 = vcmask 261120
        %v1298 = vsel %vm1297, %v1296, %v1274
        %vm1299 = vcmask 392192
        %v1300 = vsel %vm1299, %v1298, %v1278
        %vm1301 = vcmask 523264
        %v1302 = vsel %vm1301, %v1300, %v1282
        %vm1303 = vcmask 654336
        %v1304 = vsel %vm1303, %v1302, %v1286
        %vm1305 = vcmask 785408
        %v1306 = vsel %vm1305, %v1304, %v1290
        %vm1307 = vcmask 916480
        %v1308 = vsel %vm1307, %v1306, %v1294
        %v1309 = vld [vmem:[%s3] sm:$0xf]
        %1314 = vrot.lane.b32.xlu0 %v1196, 127
        %v1315 = vpop.permute.xlu0 %1314
        %1316 = vrot.lane.b32.xlu0 %v1197, 127
        %v1317 = vpop.permute.xlu0 %1316
        %1318 = vrot.lane.b32.xlu0 %v1198, 127
        %v1319 = vpop.permute.xlu0 %1318
        %1320 = vrot.lane.b32.xlu0 %v1199, 127
        %v1321 = vpop.permute.xlu0 %1320
        %v1326 = vcombine.low %v1315, %v1319
        %v1327 = vcombine.high %v1315, %v1319
        %v1329 = vunpack.c.l.s4 1983009808
        %v1330 = vunpack.c.0.s8 %v1329
        %v1331 = vlaneseq
        %v1332 = vshrl.u32 %v1331, 7
        %v1333 = vsub.s32 %v1330, %v1332
        %v1334 = vrot.slane %v1326, %v1333
        %v1336 = vunpack.c.l.s4 1983009808
        %v1337 = vunpack.c.0.s8 %v1336
        %v1338 = vlaneseq
        %v1339 = vshrl.u32 %v1338, 7
        %v1340 = vsub.s32 %v1337, %v1339
        %v1341 = vrot.slane %v1327, %v1340
        %v1342 = vcombine.low %v1317, %v1321
        %v1343 = vcombine.high %v1317, %v1321
        %v1345 = vunpack.c.l.s4 1983009808
        %v1346 = vunpack.c.0.s8 %v1345
        %v1347 = vlaneseq
        %v1348 = vshrl.u32 %v1347, 7
        %v1349 = vsub.s32 %v1346, %v1348
        %v1350 = vrot.slane %v1342, %v1349
        %v1352 = vunpack.c.l.s4 1983009808
        %v1353 = vunpack.c.0.s8 %v1352
        %v1354 = vlaneseq
        %v1355 = vshrl.u32 %v1354, 7
        %v1356 = vsub.s32 %v1353, %v1355
        %v1357 = vrot.slane %v1343, %v1356
        %v1358 = vcombine.low %v1334, %v1350
        %v1359 = vcombine.high %v1334, %v1350
        %v1361 = vunpack.c.l.s4 1934713408
        %v1362 = vunpack.c.0.s8 %v1361
        %v1363 = vlaneseq
        %v1364 = vshrl.u32 %v1363, 7
        %v1365 = vsub.s32 %v1362, %v1364
        %v1366 = vrot.slane %v1358, %v1365
        %v1368 = vunpack.c.l.s4 1934713408
        %v1369 = vunpack.c.0.s8 %v1368
        %v1370 = vlaneseq
        %v1371 = vshrl.u32 %v1370, 7
        %v1372 = vsub.s32 %v1369, %v1371
        %v1373 = vrot.slane %v1359, %v1372
        %v1374 = vcombine.low %v1341, %v1357
        %v1375 = vcombine.high %v1341, %v1357
        %v1377 = vunpack.c.l.s4 1934713408
        %v1378 = vunpack.c.0.s8 %v1377
        %v1379 = vlaneseq
        %v1380 = vshrl.u32 %v1379, 7
        %v1381 = vsub.s32 %v1378, %v1380
        %v1382 = vrot.slane %v1374, %v1381
        %v1384 = vunpack.c.l.s4 1934713408
        %v1385 = vunpack.c.0.s8 %v1384
        %v1386 = vlaneseq
        %v1387 = vshrl.u32 %v1386, 7
        %v1388 = vsub.s32 %v1385, %v1387
        %v1389 = vrot.slane %v1375, %v1388
        %v1390 = vcombine.high %v1366, 0.0
        %v1391 = vcombine.high %v1373, 0.0
        %v1392 = vcombine.high %v1382, 0.0
        %v1393 = vcombine.high %v1389, 0.0
        %1395 = vrot.lane.b32.xlu0 %v1390, 16
        %v1396 = vpop.permute.xlu0 %1395
        %1399 = vrot.lane.b32.xlu0 %v1373, 32
        %v1400 = vpop.permute.xlu0 %1399
        %1403 = vrot.lane.b32.xlu0 %v1391, 48
        %v1404 = vpop.permute.xlu0 %1403
        %1407 = vrot.lane.b32.xlu0 %v1382, 64
        %v1408 = vpop.permute.xlu0 %1407
        %1411 = vrot.lane.b32.xlu0 %v1392, 80
        %v1412 = vpop.permute.xlu0 %1411
        %1415 = vrot.lane.b32.xlu0 %v1389, 96
        %v1416 = vpop.permute.xlu0 %1415
        %1419 = vrot.lane.b32.xlu0 %v1393, 112
        %v1420 = vpop.permute.xlu0 %1419
        %v1422 = vsel %vm447, %v1366, %v1396
        %v1423 = vsel %vm1297, %v1422, %v1400
        %v1424 = vsel %vm1299, %v1423, %v1404
        %v1425 = vsel %vm1301, %v1424, %v1408
        %v1426 = vsel %vm1303, %v1425, %v1412
        %v1427 = vsel %vm1305, %v1426, %v1416
        %v1428 = vsel %vm1307, %v1427, %v1420
        %s1429 = scalar_lea.vmem %s3, 4
        %v1430 = vld [vmem:[%s1429] sm:$0xf]
        %vm1431 = vcmask 31744
        %v1433 = vsel %vm1431, %v1430, 0
        %vm1435 = vcmask 1043456
        %v1437 = vsel %vm1435, %v1428, 0
        %1439 = vmatprep.subr.mxu0 0.0
        %1440 = vmatpush1.msra.mxu0 0.0
        %1441 = vmatprep.subr.mxu0 0.0
        %1442 = vmatpush1.msra.mxu0 0.0
        %1443 = vmatprep.subr.mxu0 0.0
        %1444 = vmatpush1.msra.mxu0 0.0
        %1445 = vmatprep.subr.mxu0 0.0
        %1446 = vmatpush1.msra.mxu0 0.0
        %1447 = vmatprep.subr.mxu0 0.0
        %1448 = vmatpush1.msra.mxu0 0.0
        %1449 = vmatprep.subr.mxu0 0.0
        %1450 = vmatpush1.msra.mxu0 0.0
        %1451 = vmatprep.subr.mxu0 0.0
        %1452 = vmatpush1.msra.mxu0 0.0
        %1453 = vmatprep.subr.mxu0 0.0
        %1454 = vmatpush1.msra.mxu0 0.0
        %1455 = vmatprep.subr.mxu0 0.0
        %1456 = vmatpush1.msra.mxu0 0.0
        %1457 = vmatprep.subr.mxu0 0.0
        %1458 = vmatpush1.msra.mxu0 0.0
        %1459 = vmatprep.subr.mxu0 0.0
        %1460 = vmatpush1.msra.mxu0 0.0
        %1461 = vmatprep.subr.mxu0 0.0
        %1462 = vmatpush1.msra.mxu0 0.0
        %1463 = vmatprep.subr.mxu0 0.0
        %1464 = vmatpush1.msra.mxu0 0.0
        %1465 = vmatprep.subr.mxu0 0.0
        %1466 = vmatpush1.msra.mxu0 0.0
        %1467 = vmatprep.subr.mxu0 0.0
        %1468 = vmatpush1.msra.mxu0 0.0
        %1469 = vmatprep.subr.mxu0 0.0
        %1470 = vmatpush1.msra.mxu0 %v1437
        %1471 = vmatprep.subr.mxu0 0.0
        %1472 = vmatpush2.msra.mxu0 0.0
        %1473 = vmatprep.subr.mxu0 0.0
        %1474 = vmatpush2.msra.mxu0 0.0
        %1475 = vmatprep.subr.mxu0 0.0
        %1476 = vmatpush2.msra.mxu0 0.0
        %1477 = vmatprep.subr.mxu0 0.0
        %1478 = vmatpush2.msra.mxu0 0.0
        %1479 = vmatprep.subr.mxu0 0.0
        %1480 = vmatpush2.msra.mxu0 0.0
        %1481 = vmatprep.subr.mxu0 0.0
        %1482 = vmatpush2.msra.mxu0 0.0
        %1483 = vmatprep.subr.mxu0 0.0
        %1484 = vmatpush2.msra.mxu0 0.0
        %1485 = vmatprep.subr.mxu0 0.0
        %1486 = vmatpush2.msra.mxu0 0.0
        %1487 = vmatprep.subr.mxu0 0.0
        %1488 = vmatpush2.msra.mxu0 0.0
        %1489 = vmatprep.subr.mxu0 0.0
        %1490 = vmatpush2.msra.mxu0 0.0
        %1491 = vmatprep.subr.mxu0 0.0
        %1492 = vmatpush2.msra.mxu0 0.0
        %1493 = vmatprep.subr.mxu0 0.0
        %1494 = vmatpush2.msra.mxu0 0.0
        %1495 = vmatprep.subr.mxu0 0.0
        %1496 = vmatpush2.msra.mxu0 0.0
        %1497 = vmatprep.subr.mxu0 0.0
        %1498 = vmatpush2.msra.mxu0 0.0
        %1499 = vmatprep.subr.mxu0 0.0
        %1500 = vmatpush2.msra.mxu0 0.0
        %1501 = vmatprep.subr.mxu0 0.0
        %1502 = vmatpush2.msra.mxu0 0.0
        %1503 = vmatprep.mubr.f32.mxu0 0.0
        %1504 = vmatmul.mubr.f32.gmra.mxu0 %v1433
        %v1505 = vpop.f32.mrf.mxu0
        %v1506 = vadd.f32 0.0, %v1505
        %v1507 = vpop.f32.mrf.mxu0
        %1508 = vdwg.mxu0
        %v1510 = vsel %vm1431, %v1309, 0
        %v1513 = vsel %vm1435, %v1308, 0
        %1515 = vmatprep.subr.mxu0 0.0
        %1516 = vmatpush1.msra.mxu0 0.0
        %1517 = vmatprep.subr.mxu0 0.0
        %1518 = vmatpush1.msra.mxu0 0.0
        %1519 = vmatprep.subr.mxu0 0.0
        %1520 = vmatpush1.msra.mxu0 0.0
        %1521 = vmatprep.subr.mxu0 0.0
        %1522 = vmatpush1.msra.mxu0 0.0
        %1523 = vmatprep.subr.mxu0 0.0
        %1524 = vmatpush1.msra.mxu0 0.0
        %1525 = vmatprep.subr.mxu0 0.0
        %1526 = vmatpush1.msra.mxu0 0.0
        %1527 = vmatprep.subr.mxu0 0.0
        %1528 = vmatpush1.msra.mxu0 0.0
        %1529 = vmatprep.subr.mxu0 0.0
        %1530 = vmatpush1.msra.mxu0 0.0
        %1531 = vmatprep.subr.mxu0 0.0
        %1532 = vmatpush1.msra.mxu0 0.0
        %1533 = vmatprep.subr.mxu0 0.0
        %1534 = vmatpush1.msra.mxu0 0.0
        %1535 = vmatprep.subr.mxu0 0.0
        %1536 = vmatpush1.msra.mxu0 0.0
        %1537 = vmatprep.subr.mxu0 0.0
        %1538 = vmatpush1.msra.mxu0 0.0
        %1539 = vmatprep.subr.mxu0 0.0
        %1540 = vmatpush1.msra.mxu0 0.0
        %1541 = vmatprep.subr.mxu0 0.0
        %1542 = vmatpush1.msra.mxu0 0.0
        %1543 = vmatprep.subr.mxu0 0.0
        %1544 = vmatpush1.msra.mxu0 0.0
        %1545 = vmatprep.subr.mxu0 0.0
        %1546 = vmatpush1.msra.mxu0 %v1513
        %1547 = vmatprep.subr.mxu0 0.0
        %1548 = vmatpush2.msra.mxu0 0.0
        %1549 = vmatprep.subr.mxu0 0.0
        %1550 = vmatpush2.msra.mxu0 0.0
        %1551 = vmatprep.subr.mxu0 0.0
        %1552 = vmatpush2.msra.mxu0 0.0
        %1553 = vmatprep.subr.mxu0 0.0
        %1554 = vmatpush2.msra.mxu0 0.0
        %1555 = vmatprep.subr.mxu0 0.0
        %1556 = vmatpush2.msra.mxu0 0.0
        %1557 = vmatprep.subr.mxu0 0.0
        %1558 = vmatpush2.msra.mxu0 0.0
        %1559 = vmatprep.subr.mxu0 0.0
        %1560 = vmatpush2.msra.mxu0 0.0
        %1561 = vmatprep.subr.mxu0 0.0
        %1562 = vmatpush2.msra.mxu0 0.0
        %1563 = vmatprep.subr.mxu0 0.0
        %1564 = vmatpush2.msra.mxu0 0.0
        %1565 = vmatprep.subr.mxu0 0.0
        %1566 = vmatpush2.msra.mxu0 0.0
        %1567 = vmatprep.subr.mxu0 0.0
        %1568 = vmatpush2.msra.mxu0 0.0
        %1569 = vmatprep.subr.mxu0 0.0
        %1570 = vmatpush2.msra.mxu0 0.0
        %1571 = vmatprep.subr.mxu0 0.0
        %1572 = vmatpush2.msra.mxu0 0.0
        %1573 = vmatprep.subr.mxu0 0.0
        %1574 = vmatpush2.msra.mxu0 0.0
        %1575 = vmatprep.subr.mxu0 0.0
        %1576 = vmatpush2.msra.mxu0 0.0
        %1577 = vmatprep.subr.mxu0 0.0
        %1578 = vmatpush2.msra.mxu0 0.0
        %1579 = vmatprep.mubr.f32.mxu0 0.0
        %1580 = vmatmul.mubr.f32.gmra.mxu0 %v1510
        %v1581 = vpop.f32.mrf.mxu0
        %v1582 = vadd.f32 %v1506, %v1581
        %v1583 = vpop.f32.mrf.mxu0
        %1584 = vdwg.mxu0
        %v1585 = vld [vmem:[#allocation4] sm:$0xff]
        %v1586 = vld [vmem:[#allocation4 + $0x10] sm:$0xff]
        %v1587 = vld [vmem:[#allocation4 + $0x20] sm:$0xff]
        %v1588 = vld [vmem:[#allocation4 + $0x30] sm:$0xff]
        %1593 = vrot.lane.b32.xlu0 %v1585, 126
        %v1594 = vpop.permute.xlu0 %1593
        %1595 = vrot.lane.b32.xlu0 %v1586, 126
        %v1596 = vpop.permute.xlu0 %1595
        %1597 = vrot.lane.b32.xlu0 %v1587, 126
        %v1598 = vpop.permute.xlu0 %1597
        %1599 = vrot.lane.b32.xlu0 %v1588, 126
        %v1600 = vpop.permute.xlu0 %1599
        %v1605 = vcombine.low %v1594, %v1598
        %v1606 = vcombine.high %v1594, %v1598
        %v1608 = vunpack.c.l.s4 1983009808
        %v1609 = vunpack.c.0.s8 %v1608
        %v1610 = vlaneseq
        %v1611 = vshrl.u32 %v1610, 7
        %v1612 = vsub.s32 %v1609, %v1611
        %v1613 = vrot.slane %v1605, %v1612
        %v1615 = vunpack.c.l.s4 1983009808
        %v1616 = vunpack.c.0.s8 %v1615
        %v1617 = vlaneseq
        %v1618 = vshrl.u32 %v1617, 7
        %v1619 = vsub.s32 %v1616, %v1618
        %v1620 = vrot.slane %v1606, %v1619
        %v1621 = vcombine.low %v1596, %v1600
        %v1622 = vcombine.high %v1596, %v1600
        %v1624 = vunpack.c.l.s4 1983009808
        %v1625 = vunpack.c.0.s8 %v1624
        %v1626 = vlaneseq
        %v1627 = vshrl.u32 %v1626, 7
        %v1628 = vsub.s32 %v1625, %v1627
        %v1629 = vrot.slane %v1621, %v1628
        %v1631 = vunpack.c.l.s4 1983009808
        %v1632 = vunpack.c.0.s8 %v1631
        %v1633 = vlaneseq
        %v1634 = vshrl.u32 %v1633, 7
        %v1635 = vsub.s32 %v1632, %v1634
        %v1636 = vrot.slane %v1622, %v1635
        %v1637 = vcombine.low %v1613, %v1629
        %v1638 = vcombine.high %v1613, %v1629
        %v1640 = vunpack.c.l.s4 1934713408
        %v1641 = vunpack.c.0.s8 %v1640
        %v1642 = vlaneseq
        %v1643 = vshrl.u32 %v1642, 7
        %v1644 = vsub.s32 %v1641, %v1643
        %v1645 = vrot.slane %v1637, %v1644
        %v1647 = vunpack.c.l.s4 1934713408
        %v1648 = vunpack.c.0.s8 %v1647
        %v1649 = vlaneseq
        %v1650 = vshrl.u32 %v1649, 7
        %v1651 = vsub.s32 %v1648, %v1650
        %v1652 = vrot.slane %v1638, %v1651
        %v1653 = vcombine.low %v1620, %v1636
        %v1654 = vcombine.high %v1620, %v1636
        %v1656 = vunpack.c.l.s4 1934713408
        %v1657 = vunpack.c.0.s8 %v1656
        %v1658 = vlaneseq
        %v1659 = vshrl.u32 %v1658, 7
        %v1660 = vsub.s32 %v1657, %v1659
        %v1661 = vrot.slane %v1653, %v1660
        %v1663 = vunpack.c.l.s4 1934713408
        %v1664 = vunpack.c.0.s8 %v1663
        %v1665 = vlaneseq
        %v1666 = vshrl.u32 %v1665, 7
        %v1667 = vsub.s32 %v1664, %v1666
        %v1668 = vrot.slane %v1654, %v1667
        %v1669 = vcombine.high %v1645, 0.0
        %v1670 = vcombine.high %v1652, 0.0
        %v1671 = vcombine.high %v1661, 0.0
        %v1672 = vcombine.high %v1668, 0.0
        %1674 = vrot.lane.b32.xlu0 %v1669, 16
        %v1675 = vpop.permute.xlu0 %1674
        %1678 = vrot.lane.b32.xlu0 %v1652, 32
        %v1679 = vpop.permute.xlu0 %1678
        %1682 = vrot.lane.b32.xlu0 %v1670, 48
        %v1683 = vpop.permute.xlu0 %1682
        %1686 = vrot.lane.b32.xlu0 %v1661, 64
        %v1687 = vpop.permute.xlu0 %1686
        %1690 = vrot.lane.b32.xlu0 %v1671, 80
        %v1691 = vpop.permute.xlu0 %1690
        %1694 = vrot.lane.b32.xlu0 %v1668, 96
        %v1695 = vpop.permute.xlu0 %1694
        %1698 = vrot.lane.b32.xlu0 %v1672, 112
        %v1699 = vpop.permute.xlu0 %1698
        %v1701 = vsel %vm447, %v1645, %v1675
        %v1702 = vsel %vm1297, %v1701, %v1679
        %v1703 = vsel %vm1299, %v1702, %v1683
        %v1704 = vsel %vm1301, %v1703, %v1687
        %v1705 = vsel %vm1303, %v1704, %v1691
        %v1706 = vsel %vm1305, %v1705, %v1695
        %v1707 = vsel %vm1307, %v1706, %v1699
        %s1708 = scalar_lea.vmem %s3, 8
        %v1709 = vld [vmem:[%s1708] sm:$0xf]
        %v1711 = vsel %vm1431, %v1709, 0
        %v1714 = vsel %vm1435, %v1707, 0
        %1716 = vmatprep.subr.mxu0 0.0
        %1717 = vmatpush1.msra.mxu0 0.0
        %1718 = vmatprep.subr.mxu0 0.0
        %1719 = vmatpush1.msra.mxu0 0.0
        %1720 = vmatprep.subr.mxu0 0.0
        %1721 = vmatpush1.msra.mxu0 0.0
        %1722 = vmatprep.subr.mxu0 0.0
        %1723 = vmatpush1.msra.mxu0 0.0
        %1724 = vmatprep.subr.mxu0 0.0
        %1725 = vmatpush1.msra.mxu0 0.0
        %1726 = vmatprep.subr.mxu0 0.0
        %1727 = vmatpush1.msra.mxu0 0.0
        %1728 = vmatprep.subr.mxu0 0.0
        %1729 = vmatpush1.msra.mxu0 0.0
        %1730 = vmatprep.subr.mxu0 0.0
        %1731 = vmatpush1.msra.mxu0 0.0
        %1732 = vmatprep.subr.mxu0 0.0
        %1733 = vmatpush1.msra.mxu0 0.0
        %1734 = vmatprep.subr.mxu0 0.0
        %1735 = vmatpush1.msra.mxu0 0.0
        %1736 = vmatprep.subr.mxu0 0.0
        %1737 = vmatpush1.msra.mxu0 0.0
        %1738 = vmatprep.subr.mxu0 0.0
        %1739 = vmatpush1.msra.mxu0 0.0
        %1740 = vmatprep.subr.mxu0 0.0
        %1741 = vmatpush1.msra.mxu0 0.0
        %1742 = vmatprep.subr.mxu0 0.0
        %1743 = vmatpush1.msra.mxu0 0.0
        %1744 = vmatprep.subr.mxu0 0.0
        %1745 = vmatpush1.msra.mxu0 0.0
        %1746 = vmatprep.subr.mxu0 0.0
        %1747 = vmatpush1.msra.mxu0 %v1714
        %1748 = vmatprep.subr.mxu0 0.0
        %1749 = vmatpush2.msra.mxu0 0.0
        %1750 = vmatprep.subr.mxu0 0.0
        %1751 = vmatpush2.msra.mxu0 0.0
        %1752 = vmatprep.subr.mxu0 0.0
        %1753 = vmatpush2.msra.mxu0 0.0
        %1754 = vmatprep.subr.mxu0 0.0
        %1755 = vmatpush2.msra.mxu0 0.0
        %1756 = vmatprep.subr.mxu0 0.0
        %1757 = vmatpush2.msra.mxu0 0.0
        %1758 = vmatprep.subr.mxu0 0.0
        %1759 = vmatpush2.msra.mxu0 0.0
        %1760 = vmatprep.subr.mxu0 0.0
        %1761 = vmatpush2.msra.mxu0 0.0
        %1762 = vmatprep.subr.mxu0 0.0
        %1763 = vmatpush2.msra.mxu0 0.0
        %1764 = vmatprep.subr.mxu0 0.0
        %1765 = vmatpush2.msra.mxu0 0.0
        %1766 = vmatprep.subr.mxu0 0.0
        %1767 = vmatpush2.msra.mxu0 0.0
        %1768 = vmatprep.subr.mxu0 0.0
        %1769 = vmatpush2.msra.mxu0 0.0
        %1770 = vmatprep.subr.mxu0 0.0
        %1771 = vmatpush2.msra.mxu0 0.0
        %1772 = vmatprep.subr.mxu0 0.0
        %1773 = vmatpush2.msra.mxu0 0.0
        %1774 = vmatprep.subr.mxu0 0.0
        %1775 = vmatpush2.msra.mxu0 0.0
        %1776 = vmatprep.subr.mxu0 0.0
        %1777 = vmatpush2.msra.mxu0 0.0
        %1778 = vmatprep.subr.mxu0 0.0
        %1779 = vmatpush2.msra.mxu0 0.0
        %1780 = vmatprep.mubr.f32.mxu0 0.0
        %1781 = vmatmul.mubr.f32.gmra.mxu0 %v1711
        %v1782 = vpop.f32.mrf.mxu0
        %v1783 = vadd.f32 0.0, %v1782
        %v1784 = vpop.f32.mrf.mxu0
        %1785 = vdwg.mxu0
        %v1786 = vadd.f32 %v1582, %v1783
        %v1787 = vld [vmem:[#allocation4 + $0x1] sm:$0xff]
        %v1788 = vld [vmem:[#allocation4 + $0x11] sm:$0xff]
        %v1789 = vld [vmem:[#allocation4 + $0x21] sm:$0xff]
        %v1790 = vld [vmem:[#allocation4 + $0x31] sm:$0xff]
        %v1791 = vcombine.low %v1787, %v1789
        %v1792 = vcombine.high %v1787, %v1789
        %v1794 = vunpack.c.l.s4 1983009808
        %v1795 = vunpack.c.0.s8 %v1794
        %v1796 = vlaneseq
        %v1797 = vshrl.u32 %v1796, 7
        %v1798 = vsub.s32 %v1795, %v1797
        %v1799 = vrot.slane %v1791, %v1798
        %v1801 = vunpack.c.l.s4 1983009808
        %v1802 = vunpack.c.0.s8 %v1801
        %v1803 = vlaneseq
        %v1804 = vshrl.u32 %v1803, 7
        %v1805 = vsub.s32 %v1802, %v1804
        %v1806 = vrot.slane %v1792, %v1805
        %v1807 = vcombine.low %v1788, %v1790
        %v1808 = vcombine.high %v1788, %v1790
        %v1810 = vunpack.c.l.s4 1983009808
        %v1811 = vunpack.c.0.s8 %v1810
        %v1812 = vlaneseq
        %v1813 = vshrl.u32 %v1812, 7
        %v1814 = vsub.s32 %v1811, %v1813
        %v1815 = vrot.slane %v1807, %v1814
        %v1817 = vunpack.c.l.s4 1983009808
        %v1818 = vunpack.c.0.s8 %v1817
        %v1819 = vlaneseq
        %v1820 = vshrl.u32 %v1819, 7
        %v1821 = vsub.s32 %v1818, %v1820
        %v1822 = vrot.slane %v1808, %v1821
        %v1823 = vcombine.low %v1799, %v1815
        %v1824 = vcombine.high %v1799, %v1815
        %v1826 = vunpack.c.l.s4 1934713408
        %v1827 = vunpack.c.0.s8 %v1826
        %v1828 = vlaneseq
        %v1829 = vshrl.u32 %v1828, 7
        %v1830 = vsub.s32 %v1827, %v1829
        %v1831 = vrot.slane %v1823, %v1830
        %v1833 = vunpack.c.l.s4 1934713408
        %v1834 = vunpack.c.0.s8 %v1833
        %v1835 = vlaneseq
        %v1836 = vshrl.u32 %v1835, 7
        %v1837 = vsub.s32 %v1834, %v1836
        %v1838 = vrot.slane %v1824, %v1837
        %v1839 = vcombine.low %v1806, %v1822
        %v1840 = vcombine.high %v1806, %v1822
        %v1842 = vunpack.c.l.s4 1934713408
        %v1843 = vunpack.c.0.s8 %v1842
        %v1844 = vlaneseq
        %v1845 = vshrl.u32 %v1844, 7
        %v1846 = vsub.s32 %v1843, %v1845
        %v1847 = vrot.slane %v1839, %v1846
        %v1849 = vunpack.c.l.s4 1934713408
        %v1850 = vunpack.c.0.s8 %v1849
        %v1851 = vlaneseq
        %v1852 = vshrl.u32 %v1851, 7
        %v1853 = vsub.s32 %v1850, %v1852
        %v1854 = vrot.slane %v1840, %v1853
        %v1855 = vcombine.high %v1831, 0.0
        %v1856 = vcombine.high %v1838, 0.0
        %v1857 = vcombine.high %v1847, 0.0
        %v1858 = vcombine.high %v1854, 0.0
        %1860 = vrot.lane.b32.xlu0 %v1855, 16
        %v1861 = vpop.permute.xlu0 %1860
        %1864 = vrot.lane.b32.xlu0 %v1838, 32
        %v1865 = vpop.permute.xlu0 %1864
        %1868 = vrot.lane.b32.xlu0 %v1856, 48
        %v1869 = vpop.permute.xlu0 %1868
        %1872 = vrot.lane.b32.xlu0 %v1847, 64
        %v1873 = vpop.permute.xlu0 %1872
        %1876 = vrot.lane.b32.xlu0 %v1857, 80
        %v1877 = vpop.permute.xlu0 %1876
        %1880 = vrot.lane.b32.xlu0 %v1854, 96
        %v1881 = vpop.permute.xlu0 %1880
        %1884 = vrot.lane.b32.xlu0 %v1858, 112
        %v1885 = vpop.permute.xlu0 %1884
        %v1887 = vsel %vm447, %v1831, %v1861
        %v1888 = vsel %vm1297, %v1887, %v1865
        %v1889 = vsel %vm1299, %v1888, %v1869
        %v1890 = vsel %vm1301, %v1889, %v1873
        %v1891 = vsel %vm1303, %v1890, %v1877
        %v1892 = vsel %vm1305, %v1891, %v1881
        %v1893 = vsel %vm1307, %v1892, %v1885
        %s1894 = scalar_lea.vmem %s3, 12
        %v1895 = vld [vmem:[%s1894] sm:$0xf]
        %v1897 = vsel %vm1431, %v1895, 0
        %v1900 = vsel %vm1435, %v1893, 0
        %1902 = vmatprep.subr.mxu0 0.0
        %1903 = vmatpush1.msra.mxu0 0.0
        %1904 = vmatprep.subr.mxu0 0.0
        %1905 = vmatpush1.msra.mxu0 0.0
        %1906 = vmatprep.subr.mxu0 0.0
        %1907 = vmatpush1.msra.mxu0 0.0
        %1908 = vmatprep.subr.mxu0 0.0
        %1909 = vmatpush1.msra.mxu0 0.0
        %1910 = vmatprep.subr.mxu0 0.0
        %1911 = vmatpush1.msra.mxu0 0.0
        %1912 = vmatprep.subr.mxu0 0.0
        %1913 = vmatpush1.msra.mxu0 0.0
        %1914 = vmatprep.subr.mxu0 0.0
        %1915 = vmatpush1.msra.mxu0 0.0
        %1916 = vmatprep.subr.mxu0 0.0
        %1917 = vmatpush1.msra.mxu0 0.0
        %1918 = vmatprep.subr.mxu0 0.0
        %1919 = vmatpush1.msra.mxu0 0.0
        %1920 = vmatprep.subr.mxu0 0.0
        %1921 = vmatpush1.msra.mxu0 0.0
        %1922 = vmatprep.subr.mxu0 0.0
        %1923 = vmatpush1.msra.mxu0 0.0
        %1924 = vmatprep.subr.mxu0 0.0
        %1925 = vmatpush1.msra.mxu0 0.0
        %1926 = vmatprep.subr.mxu0 0.0
        %1927 = vmatpush1.msra.mxu0 0.0
        %1928 = vmatprep.subr.mxu0 0.0
        %1929 = vmatpush1.msra.mxu0 0.0
        %1930 = vmatprep.subr.mxu0 0.0
        %1931 = vmatpush1.msra.mxu0 0.0
        %1932 = vmatprep.subr.mxu0 0.0
        %1933 = vmatpush1.msra.mxu0 %v1900
        %1934 = vmatprep.subr.mxu0 0.0
        %1935 = vmatpush2.msra.mxu0 0.0
        %1936 = vmatprep.subr.mxu0 0.0
        %1937 = vmatpush2.msra.mxu0 0.0
        %1938 = vmatprep.subr.mxu0 0.0
        %1939 = vmatpush2.msra.mxu0 0.0
        %1940 = vmatprep.subr.mxu0 0.0
        %1941 = vmatpush2.msra.mxu0 0.0
        %1942 = vmatprep.subr.mxu0 0.0
        %1943 = vmatpush2.msra.mxu0 0.0
        %1944 = vmatprep.subr.mxu0 0.0
        %1945 = vmatpush2.msra.mxu0 0.0
        %1946 = vmatprep.subr.mxu0 0.0
        %1947 = vmatpush2.msra.mxu0 0.0
        %1948 = vmatprep.subr.mxu0 0.0
        %1949 = vmatpush2.msra.mxu0 0.0
        %1950 = vmatprep.subr.mxu0 0.0
        %1951 = vmatpush2.msra.mxu0 0.0
        %1952 = vmatprep.subr.mxu0 0.0
        %1953 = vmatpush2.msra.mxu0 0.0
        %1954 = vmatprep.subr.mxu0 0.0
        %1955 = vmatpush2.msra.mxu0 0.0
        %1956 = vmatprep.subr.mxu0 0.0
        %1957 = vmatpush2.msra.mxu0 0.0
        %1958 = vmatprep.subr.mxu0 0.0
        %1959 = vmatpush2.msra.mxu0 0.0
        %1960 = vmatprep.subr.mxu0 0.0
        %1961 = vmatpush2.msra.mxu0 0.0
        %1962 = vmatprep.subr.mxu0 0.0
        %1963 = vmatpush2.msra.mxu0 0.0
        %1964 = vmatprep.subr.mxu0 0.0
        %1965 = vmatpush2.msra.mxu0 0.0
        %1966 = vmatprep.mubr.f32.mxu0 0.0
        %1967 = vmatmul.mubr.f32.gmra.mxu0 %v1897
        %v1968 = vpop.f32.mrf.mxu0
        %v1969 = vadd.f32 0.0, %v1968
        %v1970 = vpop.f32.mrf.mxu0
        %1971 = vdwg.mxu0
        %v1972 = vadd.f32 %v1786, %v1969
        %v1973 = vld [vmem:[#allocation4 + $0x1] sm:$0xff]
        %v1974 = vld [vmem:[#allocation4 + $0x11] sm:$0xff]
        %v1975 = vld [vmem:[#allocation4 + $0x21] sm:$0xff]
        %v1976 = vld [vmem:[#allocation4 + $0x31] sm:$0xff]
        %1981 = vrot.lane.b32.xlu0 %v1973, 127
        %v1982 = vpop.permute.xlu0 %1981
        %1983 = vrot.lane.b32.xlu0 %v1974, 127
        %v1984 = vpop.permute.xlu0 %1983
        %1985 = vrot.lane.b32.xlu0 %v1975, 127
        %v1986 = vpop.permute.xlu0 %1985
        %1987 = vrot.lane.b32.xlu0 %v1976, 127
        %v1988 = vpop.permute.xlu0 %1987
        %v1993 = vcombine.low %v1982, %v1986
        %v1994 = vcombine.high %v1982, %v1986
        %v1996 = vunpack.c.l.s4 1983009808
        %v1997 = vunpack.c.0.s8 %v1996
        %v1998 = vlaneseq
        %v1999 = vshrl.u32 %v1998, 7
        %v2000 = vsub.s32 %v1997, %v1999
        %v2001 = vrot.slane %v1993, %v2000
        %v2003 = vunpack.c.l.s4 1983009808
        %v2004 = vunpack.c.0.s8 %v2003
        %v2005 = vlaneseq
        %v2006 = vshrl.u32 %v2005, 7
        %v2007 = vsub.s32 %v2004, %v2006
        %v2008 = vrot.slane %v1994, %v2007
        %v2009 = vcombine.low %v1984, %v1988
        %v2010 = vcombine.high %v1984, %v1988
        %v2012 = vunpack.c.l.s4 1983009808
        %v2013 = vunpack.c.0.s8 %v2012
        %v2014 = vlaneseq
        %v2015 = vshrl.u32 %v2014, 7
        %v2016 = vsub.s32 %v2013, %v2015
        %v2017 = vrot.slane %v2009, %v2016
        %v2019 = vunpack.c.l.s4 1983009808
        %v2020 = vunpack.c.0.s8 %v2019
        %v2021 = vlaneseq
        %v2022 = vshrl.u32 %v2021, 7
        %v2023 = vsub.s32 %v2020, %v2022
        %v2024 = vrot.slane %v2010, %v2023
        %v2025 = vcombine.low %v2001, %v2017
        %v2026 = vcombine.high %v2001, %v2017
        %v2028 = vunpack.c.l.s4 1934713408
        %v2029 = vunpack.c.0.s8 %v2028
        %v2030 = vlaneseq
        %v2031 = vshrl.u32 %v2030, 7
        %v2032 = vsub.s32 %v2029, %v2031
        %v2033 = vrot.slane %v2025, %v2032
        %v2035 = vunpack.c.l.s4 1934713408
        %v2036 = vunpack.c.0.s8 %v2035
        %v2037 = vlaneseq
        %v2038 = vshrl.u32 %v2037, 7
        %v2039 = vsub.s32 %v2036, %v2038
        %v2040 = vrot.slane %v2026, %v2039
        %v2041 = vcombine.low %v2008, %v2024
        %v2042 = vcombine.high %v2008, %v2024
        %v2044 = vunpack.c.l.s4 1934713408
        %v2045 = vunpack.c.0.s8 %v2044
        %v2046 = vlaneseq
        %v2047 = vshrl.u32 %v2046, 7
        %v2048 = vsub.s32 %v2045, %v2047
        %v2049 = vrot.slane %v2041, %v2048
        %v2051 = vunpack.c.l.s4 1934713408
        %v2052 = vunpack.c.0.s8 %v2051
        %v2053 = vlaneseq
        %v2054 = vshrl.u32 %v2053, 7
        %v2055 = vsub.s32 %v2052, %v2054
        %v2056 = vrot.slane %v2042, %v2055
        %v2057 = vcombine.high %v2033, 0.0
        %v2058 = vcombine.high %v2040, 0.0
        %v2059 = vcombine.high %v2049, 0.0
        %v2060 = vcombine.high %v2056, 0.0
        %2062 = vrot.lane.b32.xlu0 %v2057, 16
        %v2063 = vpop.permute.xlu0 %2062
        %2066 = vrot.lane.b32.xlu0 %v2040, 32
        %v2067 = vpop.permute.xlu0 %2066
        %2070 = vrot.lane.b32.xlu0 %v2058, 48
        %v2071 = vpop.permute.xlu0 %2070
        %2074 = vrot.lane.b32.xlu0 %v2049, 64
        %v2075 = vpop.permute.xlu0 %2074
        %2078 = vrot.lane.b32.xlu0 %v2059, 80
        %v2079 = vpop.permute.xlu0 %2078
        %2082 = vrot.lane.b32.xlu0 %v2056, 96
        %v2083 = vpop.permute.xlu0 %2082
        %2086 = vrot.lane.b32.xlu0 %v2060, 112
        %v2087 = vpop.permute.xlu0 %2086
        %v2089 = vsel %vm447, %v2033, %v2063
        %v2090 = vsel %vm1297, %v2089, %v2067
        %v2091 = vsel %vm1299, %v2090, %v2071
        %v2092 = vsel %vm1301, %v2091, %v2075
        %v2093 = vsel %vm1303, %v2092, %v2079
        %v2094 = vsel %vm1305, %v2093, %v2083
        %v2095 = vsel %vm1307, %v2094, %v2087
        %s2096 = scalar_lea.vmem %s3, 16
        %v2097 = vld [vmem:[%s2096] sm:$0xf]
        %v2099 = vsel %vm1431, %v2097, 0
        %v2102 = vsel %vm1435, %v2095, 0
        %2104 = vmatprep.subr.mxu0 0.0
        %2105 = vmatpush1.msra.mxu0 0.0
        %2106 = vmatprep.subr.mxu0 0.0
        %2107 = vmatpush1.msra.mxu0 0.0
        %2108 = vmatprep.subr.mxu0 0.0
        %2109 = vmatpush1.msra.mxu0 0.0
        %2110 = vmatprep.subr.mxu0 0.0
        %2111 = vmatpush1.msra.mxu0 0.0
        %2112 = vmatprep.subr.mxu0 0.0
        %2113 = vmatpush1.msra.mxu0 0.0
        %2114 = vmatprep.subr.mxu0 0.0
        %2115 = vmatpush1.msra.mxu0 0.0
        %2116 = vmatprep.subr.mxu0 0.0
        %2117 = vmatpush1.msra.mxu0 0.0
        %2118 = vmatprep.subr.mxu0 0.0
        %2119 = vmatpush1.msra.mxu0 0.0
        %2120 = vmatprep.subr.mxu0 0.0
        %2121 = vmatpush1.msra.mxu0 0.0
        %2122 = vmatprep.subr.mxu0 0.0
        %2123 = vmatpush1.msra.mxu0 0.0
        %2124 = vmatprep.subr.mxu0 0.0
        %2125 = vmatpush1.msra.mxu0 0.0
        %2126 = vmatprep.subr.mxu0 0.0
        %2127 = vmatpush1.msra.mxu0 0.0
        %2128 = vmatprep.subr.mxu0 0.0
        %2129 = vmatpush1.msra.mxu0 0.0
        %2130 = vmatprep.subr.mxu0 0.0
        %2131 = vmatpush1.msra.mxu0 0.0
        %2132 = vmatprep.subr.mxu0 0.0
        %2133 = vmatpush1.msra.mxu0 0.0
        %2134 = vmatprep.subr.mxu0 0.0
        %2135 = vmatpush1.msra.mxu0 %v2102
        %2136 = vmatprep.subr.mxu0 0.0
        %2137 = vmatpush2.msra.mxu0 0.0
        %2138 = vmatprep.subr.mxu0 0.0
        %2139 = vmatpush2.msra.mxu0 0.0
        %2140 = vmatprep.subr.mxu0 0.0
        %2141 = vmatpush2.msra.mxu0 0.0
        %2142 = vmatprep.subr.mxu0 0.0
        %2143 = vmatpush2.msra.mxu0 0.0
        %2144 = vmatprep.subr.mxu0 0.0
        %2145 = vmatpush2.msra.mxu0 0.0
        %2146 = vmatprep.subr.mxu0 0.0
        %2147 = vmatpush2.msra.mxu0 0.0
        %2148 = vmatprep.subr.mxu0 0.0
        %2149 = vmatpush2.msra.mxu0 0.0
        %2150 = vmatprep.subr.mxu0 0.0
        %2151 = vmatpush2.msra.mxu0 0.0
        %2152 = vmatprep.subr.mxu0 0.0
        %2153 = vmatpush2.msra.mxu0 0.0
        %2154 = vmatprep.subr.mxu0 0.0
        %2155 = vmatpush2.msra.mxu0 0.0
        %2156 = vmatprep.subr.mxu0 0.0
        %2157 = vmatpush2.msra.mxu0 0.0
        %2158 = vmatprep.subr.mxu0 0.0
        %2159 = vmatpush2.msra.mxu0 0.0
        %2160 = vmatprep.subr.mxu0 0.0
        %2161 = vmatpush2.msra.mxu0 0.0
        %2162 = vmatprep.subr.mxu0 0.0
        %2163 = vmatpush2.msra.mxu0 0.0
        %2164 = vmatprep.subr.mxu0 0.0
        %2165 = vmatpush2.msra.mxu0 0.0
        %2166 = vmatprep.subr.mxu0 0.0
        %2167 = vmatpush2.msra.mxu0 0.0
        %2168 = vmatprep.mubr.f32.mxu0 0.0
        %2169 = vmatmul.mubr.f32.gmra.mxu0 %v2099
        %v2170 = vpop.f32.mrf.mxu0
        %v2171 = vadd.f32 0.0, %v2170
        %v2172 = vpop.f32.mrf.mxu0
        %2173 = vdwg.mxu0
        %v2174 = vadd.f32 %v1972, %v2171
        %v2175 = vld [vmem:[#allocation4 + $0x1] sm:$0xff]
        %v2176 = vld [vmem:[#allocation4 + $0x11] sm:$0xff]
        %v2177 = vld [vmem:[#allocation4 + $0x21] sm:$0xff]
        %v2178 = vld [vmem:[#allocation4 + $0x31] sm:$0xff]
        %2183 = vrot.lane.b32.xlu0 %v2175, 126
        %v2184 = vpop.permute.xlu0 %2183
        %2185 = vrot.lane.b32.xlu0 %v2176, 126
        %v2186 = vpop.permute.xlu0 %2185
        %2187 = vrot.lane.b32.xlu0 %v2177, 126
        %v2188 = vpop.permute.xlu0 %2187
        %2189 = vrot.lane.b32.xlu0 %v2178, 126
        %v2190 = vpop.permute.xlu0 %2189
        %v2195 = vcombine.low %v2184, %v2188
        %v2196 = vcombine.high %v2184, %v2188
        %v2198 = vunpack.c.l.s4 1983009808
        %v2199 = vunpack.c.0.s8 %v2198
        %v2200 = vlaneseq
        %v2201 = vshrl.u32 %v2200, 7
        %v2202 = vsub.s32 %v2199, %v2201
        %v2203 = vrot.slane %v2195, %v2202
        %v2205 = vunpack.c.l.s4 1983009808
        %v2206 = vunpack.c.0.s8 %v2205
        %v2207 = vlaneseq
        %v2208 = vshrl.u32 %v2207, 7
        %v2209 = vsub.s32 %v2206, %v2208
        %v2210 = vrot.slane %v2196, %v2209
        %v2211 = vcombine.low %v2186, %v2190
        %v2212 = vcombine.high %v2186, %v2190
        %v2214 = vunpack.c.l.s4 1983009808
        %v2215 = vunpack.c.0.s8 %v2214
        %v2216 = vlaneseq
        %v2217 = vshrl.u32 %v2216, 7
        %v2218 = vsub.s32 %v2215, %v2217
        %v2219 = vrot.slane %v2211, %v2218
        %v2221 = vunpack.c.l.s4 1983009808
        %v2222 = vunpack.c.0.s8 %v2221
        %v2223 = vlaneseq
        %v2224 = vshrl.u32 %v2223, 7
        %v2225 = vsub.s32 %v2222, %v2224
        %v2226 = vrot.slane %v2212, %v2225
        %v2227 = vcombine.low %v2203, %v2219
        %v2228 = vcombine.high %v2203, %v2219
        %v2230 = vunpack.c.l.s4 1934713408
        %v2231 = vunpack.c.0.s8 %v2230
        %v2232 = vlaneseq
        %v2233 = vshrl.u32 %v2232, 7
        %v2234 = vsub.s32 %v2231, %v2233
        %v2235 = vrot.slane %v2227, %v2234
        %v2237 = vunpack.c.l.s4 1934713408
        %v2238 = vunpack.c.0.s8 %v2237
        %v2239 = vlaneseq
        %v2240 = vshrl.u32 %v2239, 7
        %v2241 = vsub.s32 %v2238, %v2240
        %v2242 = vrot.slane %v2228, %v2241
        %v2243 = vcombine.low %v2210, %v2226
        %v2244 = vcombine.high %v2210, %v2226
        %v2246 = vunpack.c.l.s4 1934713408
        %v2247 = vunpack.c.0.s8 %v2246
        %v2248 = vlaneseq
        %v2249 = vshrl.u32 %v2248, 7
        %v2250 = vsub.s32 %v2247, %v2249
        %v2251 = vrot.slane %v2243, %v2250
        %v2253 = vunpack.c.l.s4 1934713408
        %v2254 = vunpack.c.0.s8 %v2253
        %v2255 = vlaneseq
        %v2256 = vshrl.u32 %v2255, 7
        %v2257 = vsub.s32 %v2254, %v2256
        %v2258 = vrot.slane %v2244, %v2257
        %v2259 = vcombine.high %v2235, 0.0
        %v2260 = vcombine.high %v2242, 0.0
        %v2261 = vcombine.high %v2251, 0.0
        %v2262 = vcombine.high %v2258, 0.0
        %2264 = vrot.lane.b32.xlu0 %v2259, 16
        %v2265 = vpop.permute.xlu0 %2264
        %2268 = vrot.lane.b32.xlu0 %v2242, 32
        %v2269 = vpop.permute.xlu0 %2268
        %2272 = vrot.lane.b32.xlu0 %v2260, 48
        %v2273 = vpop.permute.xlu0 %2272
        %2276 = vrot.lane.b32.xlu0 %v2251, 64
        %v2277 = vpop.permute.xlu0 %2276
        %2280 = vrot.lane.b32.xlu0 %v2261, 80
        %v2281 = vpop.permute.xlu0 %2280
        %2284 = vrot.lane.b32.xlu0 %v2258, 96
        %v2285 = vpop.permute.xlu0 %2284
        %2288 = vrot.lane.b32.xlu0 %v2262, 112
        %v2289 = vpop.permute.xlu0 %2288
        %v2291 = vsel %vm447, %v2235, %v2265
        %v2292 = vsel %vm1297, %v2291, %v2269
        %v2293 = vsel %vm1299, %v2292, %v2273
        %v2294 = vsel %vm1301, %v2293, %v2277
        %v2295 = vsel %vm1303, %v2294, %v2281
        %v2296 = vsel %vm1305, %v2295, %v2285
        %v2297 = vsel %vm1307, %v2296, %v2289
        %s2298 = scalar_lea.vmem %s3, 20
        %v2299 = vld [vmem:[%s2298] sm:$0xf]
        %v2301 = vsel %vm1431, %v2299, 0
        %v2304 = vsel %vm1435, %v2297, 0
        %2306 = vmatprep.subr.mxu0 0.0
        %2307 = vmatpush1.msra.mxu0 0.0
        %2308 = vmatprep.subr.mxu0 0.0
        %2309 = vmatpush1.msra.mxu0 0.0
        %2310 = vmatprep.subr.mxu0 0.0
        %2311 = vmatpush1.msra.mxu0 0.0
        %2312 = vmatprep.subr.mxu0 0.0
        %2313 = vmatpush1.msra.mxu0 0.0
        %2314 = vmatprep.subr.mxu0 0.0
        %2315 = vmatpush1.msra.mxu0 0.0
        %2316 = vmatprep.subr.mxu0 0.0
        %2317 = vmatpush1.msra.mxu0 0.0
        %2318 = vmatprep.subr.mxu0 0.0
        %2319 = vmatpush1.msra.mxu0 0.0
        %2320 = vmatprep.subr.mxu0 0.0
        %2321 = vmatpush1.msra.mxu0 0.0
        %2322 = vmatprep.subr.mxu0 0.0
        %2323 = vmatpush1.msra.mxu0 0.0
        %2324 = vmatprep.subr.mxu0 0.0
        %2325 = vmatpush1.msra.mxu0 0.0
        %2326 = vmatprep.subr.mxu0 0.0
        %2327 = vmatpush1.msra.mxu0 0.0
        %2328 = vmatprep.subr.mxu0 0.0
        %2329 = vmatpush1.msra.mxu0 0.0
        %2330 = vmatprep.subr.mxu0 0.0
        %2331 = vmatpush1.msra.mxu0 0.0
        %2332 = vmatprep.subr.mxu0 0.0
        %2333 = vmatpush1.msra.mxu0 0.0
        %2334 = vmatprep.subr.mxu0 0.0
        %2335 = vmatpush1.msra.mxu0 0.0
        %2336 = vmatprep.subr.mxu0 0.0
        %2337 = vmatpush1.msra.mxu0 %v2304
        %2338 = vmatprep.subr.mxu0 0.0
        %2339 = vmatpush2.msra.mxu0 0.0
        %2340 = vmatprep.subr.mxu0 0.0
        %2341 = vmatpush2.msra.mxu0 0.0
        %2342 = vmatprep.subr.mxu0 0.0
        %2343 = vmatpush2.msra.mxu0 0.0
        %2344 = vmatprep.subr.mxu0 0.0
        %2345 = vmatpush2.msra.mxu0 0.0
        %2346 = vmatprep.subr.mxu0 0.0
        %2347 = vmatpush2.msra.mxu0 0.0
        %2348 = vmatprep.subr.mxu0 0.0
        %2349 = vmatpush2.msra.mxu0 0.0
        %2350 = vmatprep.subr.mxu0 0.0
        %2351 = vmatpush2.msra.mxu0 0.0
        %2352 = vmatprep.subr.mxu0 0.0
        %2353 = vmatpush2.msra.mxu0 0.0
        %2354 = vmatprep.subr.mxu0 0.0
        %2355 = vmatpush2.msra.mxu0 0.0
        %2356 = vmatprep.subr.mxu0 0.0
        %2357 = vmatpush2.msra.mxu0 0.0
        %2358 = vmatprep.subr.mxu0 0.0
        %2359 = vmatpush2.msra.mxu0 0.0
        %2360 = vmatprep.subr.mxu0 0.0
        %2361 = vmatpush2.msra.mxu0 0.0
        %2362 = vmatprep.subr.mxu0 0.0
        %2363 = vmatpush2.msra.mxu0 0.0
        %2364 = vmatprep.subr.mxu0 0.0
        %2365 = vmatpush2.msra.mxu0 0.0
        %2366 = vmatprep.subr.mxu0 0.0
        %2367 = vmatpush2.msra.mxu0 0.0
        %2368 = vmatprep.subr.mxu0 0.0
        %2369 = vmatpush2.msra.mxu0 0.0
        %2370 = vmatprep.mubr.f32.mxu0 0.0
        %2371 = vmatmul.mubr.f32.gmra.mxu0 %v2301
        %v2372 = vpop.f32.mrf.mxu0
        %v2373 = vadd.f32 0.0, %v2372
        %v2374 = vpop.f32.mrf.mxu0
        %2375 = vdwg.mxu0
        %v2376 = vadd.f32 %v2174, %v2373
        %v2377 = vld [vmem:[#allocation4 + $0x2] sm:$0xff]
        %v2378 = vld [vmem:[#allocation4 + $0x12] sm:$0xff]
        %v2379 = vld [vmem:[#allocation4 + $0x22] sm:$0xff]
        %v2380 = vld [vmem:[#allocation4 + $0x32] sm:$0xff]
        %v2381 = vcombine.low %v2377, %v2379
        %v2382 = vcombine.high %v2377, %v2379
        %v2384 = vunpack.c.l.s4 1983009808
        %v2385 = vunpack.c.0.s8 %v2384
        %v2386 = vlaneseq
        %v2387 = vshrl.u32 %v2386, 7
        %v2388 = vsub.s32 %v2385, %v2387
        %v2389 = vrot.slane %v2381, %v2388
        %v2391 = vunpack.c.l.s4 1983009808
        %v2392 = vunpack.c.0.s8 %v2391
        %v2393 = vlaneseq
        %v2394 = vshrl.u32 %v2393, 7
        %v2395 = vsub.s32 %v2392, %v2394
        %v2396 = vrot.slane %v2382, %v2395
        %v2397 = vcombine.low %v2378, %v2380
        %v2398 = vcombine.high %v2378, %v2380
        %v2400 = vunpack.c.l.s4 1983009808
        %v2401 = vunpack.c.0.s8 %v2400
        %v2402 = vlaneseq
        %v2403 = vshrl.u32 %v2402, 7
        %v2404 = vsub.s32 %v2401, %v2403
        %v2405 = vrot.slane %v2397, %v2404
        %v2407 = vunpack.c.l.s4 1983009808
        %v2408 = vunpack.c.0.s8 %v2407
        %v2409 = vlaneseq
        %v2410 = vshrl.u32 %v2409, 7
        %v2411 = vsub.s32 %v2408, %v2410
        %v2412 = vrot.slane %v2398, %v2411
        %v2413 = vcombine.low %v2389, %v2405
        %v2414 = vcombine.high %v2389, %v2405
        %v2416 = vunpack.c.l.s4 1934713408
        %v2417 = vunpack.c.0.s8 %v2416
        %v2418 = vlaneseq
        %v2419 = vshrl.u32 %v2418, 7
        %v2420 = vsub.s32 %v2417, %v2419
        %v2421 = vrot.slane %v2413, %v2420
        %v2423 = vunpack.c.l.s4 1934713408
        %v2424 = vunpack.c.0.s8 %v2423
        %v2425 = vlaneseq
        %v2426 = vshrl.u32 %v2425, 7
        %v2427 = vsub.s32 %v2424, %v2426
        %v2428 = vrot.slane %v2414, %v2427
        %v2429 = vcombine.low %v2396, %v2412
        %v2430 = vcombine.high %v2396, %v2412
        %v2432 = vunpack.c.l.s4 1934713408
        %v2433 = vunpack.c.0.s8 %v2432
        %v2434 = vlaneseq
        %v2435 = vshrl.u32 %v2434, 7
        %v2436 = vsub.s32 %v2433, %v2435
        %v2437 = vrot.slane %v2429, %v2436
        %v2439 = vunpack.c.l.s4 1934713408
        %v2440 = vunpack.c.0.s8 %v2439
        %v2441 = vlaneseq
        %v2442 = vshrl.u32 %v2441, 7
        %v2443 = vsub.s32 %v2440, %v2442
        %v2444 = vrot.slane %v2430, %v2443
        %v2445 = vcombine.high %v2421, 0.0
        %v2446 = vcombine.high %v2428, 0.0
        %v2447 = vcombine.high %v2437, 0.0
        %v2448 = vcombine.high %v2444, 0.0
        %2450 = vrot.lane.b32.xlu0 %v2445, 16
        %v2451 = vpop.permute.xlu0 %2450
        %2454 = vrot.lane.b32.xlu0 %v2428, 32
        %v2455 = vpop.permute.xlu0 %2454
        %2458 = vrot.lane.b32.xlu0 %v2446, 48
        %v2459 = vpop.permute.xlu0 %2458
        %2462 = vrot.lane.b32.xlu0 %v2437, 64
        %v2463 = vpop.permute.xlu0 %2462
        %2466 = vrot.lane.b32.xlu0 %v2447, 80
        %v2467 = vpop.permute.xlu0 %2466
        %2470 = vrot.lane.b32.xlu0 %v2444, 96
        %v2471 = vpop.permute.xlu0 %2470
        %2474 = vrot.lane.b32.xlu0 %v2448, 112
        %v2475 = vpop.permute.xlu0 %2474
        %v2477 = vsel %vm447, %v2421, %v2451
        %v2478 = vsel %vm1297, %v2477, %v2455
        %v2479 = vsel %vm1299, %v2478, %v2459
        %v2480 = vsel %vm1301, %v2479, %v2463
        %v2481 = vsel %vm1303, %v2480, %v2467
        %v2482 = vsel %vm1305, %v2481, %v2471
        %v2483 = vsel %vm1307, %v2482, %v2475
        %s2484 = scalar_lea.vmem %s3, 24
        %v2485 = vld [vmem:[%s2484] sm:$0xf]
        %v2487 = vsel %vm1431, %v2485, 0
        %v2490 = vsel %vm1435, %v2483, 0
        %2492 = vmatprep.subr.mxu0 0.0
        %2493 = vmatpush1.msra.mxu0 0.0
        %2494 = vmatprep.subr.mxu0 0.0
        %2495 = vmatpush1.msra.mxu0 0.0
        %2496 = vmatprep.subr.mxu0 0.0
        %2497 = vmatpush1.msra.mxu0 0.0
        %2498 = vmatprep.subr.mxu0 0.0
        %2499 = vmatpush1.msra.mxu0 0.0
        %2500 = vmatprep.subr.mxu0 0.0
        %2501 = vmatpush1.msra.mxu0 0.0
        %2502 = vmatprep.subr.mxu0 0.0
        %2503 = vmatpush1.msra.mxu0 0.0
        %2504 = vmatprep.subr.mxu0 0.0
        %2505 = vmatpush1.msra.mxu0 0.0
        %2506 = vmatprep.subr.mxu0 0.0
        %2507 = vmatpush1.msra.mxu0 0.0
        %2508 = vmatprep.subr.mxu0 0.0
        %2509 = vmatpush1.msra.mxu0 0.0
        %2510 = vmatprep.subr.mxu0 0.0
        %2511 = vmatpush1.msra.mxu0 0.0
        %2512 = vmatprep.subr.mxu0 0.0
        %2513 = vmatpush1.msra.mxu0 0.0
        %2514 = vmatprep.subr.mxu0 0.0
        %2515 = vmatpush1.msra.mxu0 0.0
        %2516 = vmatprep.subr.mxu0 0.0
        %2517 = vmatpush1.msra.mxu0 0.0
        %2518 = vmatprep.subr.mxu0 0.0
        %2519 = vmatpush1.msra.mxu0 0.0
        %2520 = vmatprep.subr.mxu0 0.0
        %2521 = vmatpush1.msra.mxu0 0.0
        %2522 = vmatprep.subr.mxu0 0.0
        %2523 = vmatpush1.msra.mxu0 %v2490
        %2524 = vmatprep.subr.mxu0 0.0
        %2525 = vmatpush2.msra.mxu0 0.0
        %2526 = vmatprep.subr.mxu0 0.0
        %2527 = vmatpush2.msra.mxu0 0.0
        %2528 = vmatprep.subr.mxu0 0.0
        %2529 = vmatpush2.msra.mxu0 0.0
        %2530 = vmatprep.subr.mxu0 0.0
        %2531 = vmatpush2.msra.mxu0 0.0
        %2532 = vmatprep.subr.mxu0 0.0
        %2533 = vmatpush2.msra.mxu0 0.0
        %2534 = vmatprep.subr.mxu0 0.0
        %2535 = vmatpush2.msra.mxu0 0.0
        %2536 = vmatprep.subr.mxu0 0.0
        %2537 = vmatpush2.msra.mxu0 0.0
        %2538 = vmatprep.subr.mxu0 0.0
        %2539 = vmatpush2.msra.mxu0 0.0
        %2540 = vmatprep.subr.mxu0 0.0
        %2541 = vmatpush2.msra.mxu0 0.0
        %2542 = vmatprep.subr.mxu0 0.0
        %2543 = vmatpush2.msra.mxu0 0.0
        %2544 = vmatprep.subr.mxu0 0.0
        %2545 = vmatpush2.msra.mxu0 0.0
        %2546 = vmatprep.subr.mxu0 0.0
        %2547 = vmatpush2.msra.mxu0 0.0
        %2548 = vmatprep.subr.mxu0 0.0
        %2549 = vmatpush2.msra.mxu0 0.0
        %2550 = vmatprep.subr.mxu0 0.0
        %2551 = vmatpush2.msra.mxu0 0.0
        %2552 = vmatprep.subr.mxu0 0.0
        %2553 = vmatpush2.msra.mxu0 0.0
        %2554 = vmatprep.subr.mxu0 0.0
        %2555 = vmatpush2.msra.mxu0 0.0
        %2556 = vmatprep.mubr.f32.mxu0 0.0
        %2557 = vmatmul.mubr.f32.gmra.mxu0 %v2487
        %v2558 = vpop.f32.mrf.mxu0
        %v2559 = vadd.f32 0.0, %v2558
        %v2560 = vpop.f32.mrf.mxu0
        %2561 = vdwg.mxu0
        %v2562 = vadd.f32 %v2376, %v2559
        %v2563 = vld [vmem:[#allocation4 + $0x2] sm:$0xff]
        %v2564 = vld [vmem:[#allocation4 + $0x12] sm:$0xff]
        %v2565 = vld [vmem:[#allocation4 + $0x22] sm:$0xff]
        %v2566 = vld [vmem:[#allocation4 + $0x32] sm:$0xff]
        %2571 = vrot.lane.b32.xlu0 %v2563, 127
        %v2572 = vpop.permute.xlu0 %2571
        %2573 = vrot.lane.b32.xlu0 %v2564, 127
        %v2574 = vpop.permute.xlu0 %2573
        %2575 = vrot.lane.b32.xlu0 %v2565, 127
        %v2576 = vpop.permute.xlu0 %2575
        %2577 = vrot.lane.b32.xlu0 %v2566, 127
        %v2578 = vpop.permute.xlu0 %2577
        %v2583 = vcombine.low %v2572, %v2576
        %v2584 = vcombine.high %v2572, %v2576
        %v2586 = vunpack.c.l.s4 1983009808
        %v2587 = vunpack.c.0.s8 %v2586
        %v2588 = vlaneseq
        %v2589 = vshrl.u32 %v2588, 7
        %v2590 = vsub.s32 %v2587, %v2589
        %v2591 = vrot.slane %v2583, %v2590
        %v2593 = vunpack.c.l.s4 1983009808
        %v2594 = vunpack.c.0.s8 %v2593
        %v2595 = vlaneseq
        %v2596 = vshrl.u32 %v2595, 7
        %v2597 = vsub.s32 %v2594, %v2596
        %v2598 = vrot.slane %v2584, %v2597
        %v2599 = vcombine.low %v2574, %v2578
        %v2600 = vcombine.high %v2574, %v2578
        %v2602 = vunpack.c.l.s4 1983009808
        %v2603 = vunpack.c.0.s8 %v2602
        %v2604 = vlaneseq
        %v2605 = vshrl.u32 %v2604, 7
        %v2606 = vsub.s32 %v2603, %v2605
        %v2607 = vrot.slane %v2599, %v2606
        %v2609 = vunpack.c.l.s4 1983009808
        %v2610 = vunpack.c.0.s8 %v2609
        %v2611 = vlaneseq
        %v2612 = vshrl.u32 %v2611, 7
        %v2613 = vsub.s32 %v2610, %v2612
        %v2614 = vrot.slane %v2600, %v2613
        %v2615 = vcombine.low %v2591, %v2607
        %v2616 = vcombine.high %v2591, %v2607
        %v2618 = vunpack.c.l.s4 1934713408
        %v2619 = vunpack.c.0.s8 %v2618
        %v2620 = vlaneseq
        %v2621 = vshrl.u32 %v2620, 7
        %v2622 = vsub.s32 %v2619, %v2621
        %v2623 = vrot.slane %v2615, %v2622
        %v2625 = vunpack.c.l.s4 1934713408
        %v2626 = vunpack.c.0.s8 %v2625
        %v2627 = vlaneseq
        %v2628 = vshrl.u32 %v2627, 7
        %v2629 = vsub.s32 %v2626, %v2628
        %v2630 = vrot.slane %v2616, %v2629
        %v2631 = vcombine.low %v2598, %v2614
        %v2632 = vcombine.high %v2598, %v2614
        %v2634 = vunpack.c.l.s4 1934713408
        %v2635 = vunpack.c.0.s8 %v2634
        %v2636 = vlaneseq
        %v2637 = vshrl.u32 %v2636, 7
        %v2638 = vsub.s32 %v2635, %v2637
        %v2639 = vrot.slane %v2631, %v2638
        %v2641 = vunpack.c.l.s4 1934713408
        %v2642 = vunpack.c.0.s8 %v2641
        %v2643 = vlaneseq
        %v2644 = vshrl.u32 %v2643, 7
        %v2645 = vsub.s32 %v2642, %v2644
        %v2646 = vrot.slane %v2632, %v2645
        %v2647 = vcombine.high %v2623, 0.0
        %v2648 = vcombine.high %v2630, 0.0
        %v2649 = vcombine.high %v2639, 0.0
        %v2650 = vcombine.high %v2646, 0.0
        %2652 = vrot.lane.b32.xlu0 %v2647, 16
        %v2653 = vpop.permute.xlu0 %2652
        %2656 = vrot.lane.b32.xlu0 %v2630, 32
        %v2657 = vpop.permute.xlu0 %2656
        %2660 = vrot.lane.b32.xlu0 %v2648, 48
        %v2661 = vpop.permute.xlu0 %2660
        %2664 = vrot.lane.b32.xlu0 %v2639, 64
        %v2665 = vpop.permute.xlu0 %2664
        %2668 = vrot.lane.b32.xlu0 %v2649, 80
        %v2669 = vpop.permute.xlu0 %2668
        %2672 = vrot.lane.b32.xlu0 %v2646, 96
        %v2673 = vpop.permute.xlu0 %2672
        %2676 = vrot.lane.b32.xlu0 %v2650, 112
        %v2677 = vpop.permute.xlu0 %2676
        %v2679 = vsel %vm447, %v2623, %v2653
        %v2680 = vsel %vm1297, %v2679, %v2657
        %v2681 = vsel %vm1299, %v2680, %v2661
        %v2682 = vsel %vm1301, %v2681, %v2665
        %v2683 = vsel %vm1303, %v2682, %v2669
        %v2684 = vsel %vm1305, %v2683, %v2673
        %v2685 = vsel %vm1307, %v2684, %v2677
        %s2686 = scalar_lea.vmem %s3, 28
        %v2687 = vld [vmem:[%s2686] sm:$0xf]
        %v2689 = vsel %vm1431, %v2687, 0
        %v2692 = vsel %vm1435, %v2685, 0
        %2694 = vmatprep.subr.mxu0 0.0
        %2695 = vmatpush1.msra.mxu0 0.0
        %2696 = vmatprep.subr.mxu0 0.0
        %2697 = vmatpush1.msra.mxu0 0.0
        %2698 = vmatprep.subr.mxu0 0.0
        %2699 = vmatpush1.msra.mxu0 0.0
        %2700 = vmatprep.subr.mxu0 0.0
        %2701 = vmatpush1.msra.mxu0 0.0
        %2702 = vmatprep.subr.mxu0 0.0
        %2703 = vmatpush1.msra.mxu0 0.0
        %2704 = vmatprep.subr.mxu0 0.0
        %2705 = vmatpush1.msra.mxu0 0.0
        %2706 = vmatprep.subr.mxu0 0.0
        %2707 = vmatpush1.msra.mxu0 0.0
        %2708 = vmatprep.subr.mxu0 0.0
        %2709 = vmatpush1.msra.mxu0 0.0
        %2710 = vmatprep.subr.mxu0 0.0
        %2711 = vmatpush1.msra.mxu0 0.0
        %2712 = vmatprep.subr.mxu0 0.0
        %2713 = vmatpush1.msra.mxu0 0.0
        %2714 = vmatprep.subr.mxu0 0.0
        %2715 = vmatpush1.msra.mxu0 0.0
        %2716 = vmatprep.subr.mxu0 0.0
        %2717 = vmatpush1.msra.mxu0 0.0
        %2718 = vmatprep.subr.mxu0 0.0
        %2719 = vmatpush1.msra.mxu0 0.0
        %2720 = vmatprep.subr.mxu0 0.0
        %2721 = vmatpush1.msra.mxu0 0.0
        %2722 = vmatprep.subr.mxu0 0.0
        %2723 = vmatpush1.msra.mxu0 0.0
        %2724 = vmatprep.subr.mxu0 0.0
        %2725 = vmatpush1.msra.mxu0 %v2692
        %2726 = vmatprep.subr.mxu0 0.0
        %2727 = vmatpush2.msra.mxu0 0.0
        %2728 = vmatprep.subr.mxu0 0.0
        %2729 = vmatpush2.msra.mxu0 0.0
        %2730 = vmatprep.subr.mxu0 0.0
        %2731 = vmatpush2.msra.mxu0 0.0
        %2732 = vmatprep.subr.mxu0 0.0
        %2733 = vmatpush2.msra.mxu0 0.0
        %2734 = vmatprep.subr.mxu0 0.0
        %2735 = vmatpush2.msra.mxu0 0.0
        %2736 = vmatprep.subr.mxu0 0.0
        %2737 = vmatpush2.msra.mxu0 0.0
        %2738 = vmatprep.subr.mxu0 0.0
        %2739 = vmatpush2.msra.mxu0 0.0
        %2740 = vmatprep.subr.mxu0 0.0
        %2741 = vmatpush2.msra.mxu0 0.0
        %2742 = vmatprep.subr.mxu0 0.0
        %2743 = vmatpush2.msra.mxu0 0.0
        %2744 = vmatprep.subr.mxu0 0.0
        %2745 = vmatpush2.msra.mxu0 0.0
        %2746 = vmatprep.subr.mxu0 0.0
        %2747 = vmatpush2.msra.mxu0 0.0
        %2748 = vmatprep.subr.mxu0 0.0
        %2749 = vmatpush2.msra.mxu0 0.0
        %2750 = vmatprep.subr.mxu0 0.0
        %2751 = vmatpush2.msra.mxu0 0.0
        %2752 = vmatprep.subr.mxu0 0.0
        %2753 = vmatpush2.msra.mxu0 0.0
        %2754 = vmatprep.subr.mxu0 0.0
        %2755 = vmatpush2.msra.mxu0 0.0
        %2756 = vmatprep.subr.mxu0 0.0
        %2757 = vmatpush2.msra.mxu0 0.0
        %2758 = vmatprep.mubr.f32.mxu0 0.0
        %2759 = vmatmul.mubr.f32.gmra.mxu0 %v2689
        %v2760 = vpop.f32.mrf.mxu0
        %v2761 = vadd.f32 0.0, %v2760
        %v2762 = vpop.f32.mrf.mxu0
        %2763 = vdwg.mxu0
        %v2764 = vadd.f32 %v2562, %v2761
        %v2765 = vld [vmem:[#allocation4 + $0x2] sm:$0xff]
        %v2766 = vld [vmem:[#allocation4 + $0x12] sm:$0xff]
        %v2767 = vld [vmem:[#allocation4 + $0x22] sm:$0xff]
        %v2768 = vld [vmem:[#allocation4 + $0x32] sm:$0xff]
        %2773 = vrot.lane.b32.xlu0 %v2765, 126
        %v2774 = vpop.permute.xlu0 %2773
        %2775 = vrot.lane.b32.xlu0 %v2766, 126
        %v2776 = vpop.permute.xlu0 %2775
        %2777 = vrot.lane.b32.xlu0 %v2767, 126
        %v2778 = vpop.permute.xlu0 %2777
        %2779 = vrot.lane.b32.xlu0 %v2768, 126
        %v2780 = vpop.permute.xlu0 %2779
        %v2785 = vcombine.low %v2774, %v2778
        %v2786 = vcombine.high %v2774, %v2778
        %v2788 = vunpack.c.l.s4 1983009808
        %v2789 = vunpack.c.0.s8 %v2788
        %v2790 = vlaneseq
        %v2791 = vshrl.u32 %v2790, 7
        %v2792 = vsub.s32 %v2789, %v2791
        %v2793 = vrot.slane %v2785, %v2792
        %v2795 = vunpack.c.l.s4 1983009808
        %v2796 = vunpack.c.0.s8 %v2795
        %v2797 = vlaneseq
        %v2798 = vshrl.u32 %v2797, 7
        %v2799 = vsub.s32 %v2796, %v2798
        %v2800 = vrot.slane %v2786, %v2799
        %v2801 = vcombine.low %v2776, %v2780
        %v2802 = vcombine.high %v2776, %v2780
        %v2804 = vunpack.c.l.s4 1983009808
        %v2805 = vunpack.c.0.s8 %v2804
        %v2806 = vlaneseq
        %v2807 = vshrl.u32 %v2806, 7
        %v2808 = vsub.s32 %v2805, %v2807
        %v2809 = vrot.slane %v2801, %v2808
        %v2811 = vunpack.c.l.s4 1983009808
        %v2812 = vunpack.c.0.s8 %v2811
        %v2813 = vlaneseq
        %v2814 = vshrl.u32 %v2813, 7
        %v2815 = vsub.s32 %v2812, %v2814
        %v2816 = vrot.slane %v2802, %v2815
        %v2817 = vcombine.low %v2793, %v2809
        %v2818 = vcombine.high %v2793, %v2809
        %v2820 = vunpack.c.l.s4 1934713408
        %v2821 = vunpack.c.0.s8 %v2820
        %v2822 = vlaneseq
        %v2823 = vshrl.u32 %v2822, 7
        %v2824 = vsub.s32 %v2821, %v2823
        %v2825 = vrot.slane %v2817, %v2824
        %v2827 = vunpack.c.l.s4 1934713408
        %v2828 = vunpack.c.0.s8 %v2827
        %v2829 = vlaneseq
        %v2830 = vshrl.u32 %v2829, 7
        %v2831 = vsub.s32 %v2828, %v2830
        %v2832 = vrot.slane %v2818, %v2831
        %v2833 = vcombine.low %v2800, %v2816
        %v2834 = vcombine.high %v2800, %v2816
        %v2836 = vunpack.c.l.s4 1934713408
        %v2837 = vunpack.c.0.s8 %v2836
        %v2838 = vlaneseq
        %v2839 = vshrl.u32 %v2838, 7
        %v2840 = vsub.s32 %v2837, %v2839
        %v2841 = vrot.slane %v2833, %v2840
        %v2843 = vunpack.c.l.s4 1934713408
        %v2844 = vunpack.c.0.s8 %v2843
        %v2845 = vlaneseq
        %v2846 = vshrl.u32 %v2845, 7
        %v2847 = vsub.s32 %v2844, %v2846
        %v2848 = vrot.slane %v2834, %v2847
        %v2849 = vcombine.high %v2825, 0.0
        %v2850 = vcombine.high %v2832, 0.0
        %v2851 = vcombine.high %v2841, 0.0
        %v2852 = vcombine.high %v2848, 0.0
        %2854 = vrot.lane.b32.xlu0 %v2849, 16
        %v2855 = vpop.permute.xlu0 %2854
        %2858 = vrot.lane.b32.xlu0 %v2832, 32
        %v2859 = vpop.permute.xlu0 %2858
        %2862 = vrot.lane.b32.xlu0 %v2850, 48
        %v2863 = vpop.permute.xlu0 %2862
        %2866 = vrot.lane.b32.xlu0 %v2841, 64
        %v2867 = vpop.permute.xlu0 %2866
        %2870 = vrot.lane.b32.xlu0 %v2851, 80
        %v2871 = vpop.permute.xlu0 %2870
        %2874 = vrot.lane.b32.xlu0 %v2848, 96
        %v2875 = vpop.permute.xlu0 %2874
        %2878 = vrot.lane.b32.xlu0 %v2852, 112
        %v2879 = vpop.permute.xlu0 %2878
        %v2881 = vsel %vm447, %v2825, %v2855
        %v2882 = vsel %vm1297, %v2881, %v2859
        %v2883 = vsel %vm1299, %v2882, %v2863
        %v2884 = vsel %vm1301, %v2883, %v2867
        %v2885 = vsel %vm1303, %v2884, %v2871
        %v2886 = vsel %vm1305, %v2885, %v2875
        %v2887 = vsel %vm1307, %v2886, %v2879
        %s2888 = scalar_lea.vmem %s3, 32
        %v2889 = vld [vmem:[%s2888] sm:$0xf]
        %v2891 = vsel %vm1431, %v2889, 0
        %v2894 = vsel %vm1435, %v2887, 0
        %2896 = vmatprep.subr.mxu0 0.0
        %2897 = vmatpush1.msra.mxu0 0.0
        %2898 = vmatprep.subr.mxu0 0.0
        %2899 = vmatpush1.msra.mxu0 0.0
        %2900 = vmatprep.subr.mxu0 0.0
        %2901 = vmatpush1.msra.mxu0 0.0
        %2902 = vmatprep.subr.mxu0 0.0
        %2903 = vmatpush1.msra.mxu0 0.0
        %2904 = vmatprep.subr.mxu0 0.0
        %2905 = vmatpush1.msra.mxu0 0.0
        %2906 = vmatprep.subr.mxu0 0.0
        %2907 = vmatpush1.msra.mxu0 0.0
        %2908 = vmatprep.subr.mxu0 0.0
        %2909 = vmatpush1.msra.mxu0 0.0
        %2910 = vmatprep.subr.mxu0 0.0
        %2911 = vmatpush1.msra.mxu0 0.0
        %2912 = vmatprep.subr.mxu0 0.0
        %2913 = vmatpush1.msra.mxu0 0.0
        %2914 = vmatprep.subr.mxu0 0.0
        %2915 = vmatpush1.msra.mxu0 0.0
        %2916 = vmatprep.subr.mxu0 0.0
        %2917 = vmatpush1.msra.mxu0 0.0
        %2918 = vmatprep.subr.mxu0 0.0
        %2919 = vmatpush1.msra.mxu0 0.0
        %2920 = vmatprep.subr.mxu0 0.0
        %2921 = vmatpush1.msra.mxu0 0.0
        %2922 = vmatprep.subr.mxu0 0.0
        %2923 = vmatpush1.msra.mxu0 0.0
        %2924 = vmatprep.subr.mxu0 0.0
        %2925 = vmatpush1.msra.mxu0 0.0
        %2926 = vmatprep.subr.mxu0 0.0
        %2927 = vmatpush1.msra.mxu0 %v2894
        %2928 = vmatprep.subr.mxu0 0.0
        %2929 = vmatpush2.msra.mxu0 0.0
        %2930 = vmatprep.subr.mxu0 0.0
        %2931 = vmatpush2.msra.mxu0 0.0
        %2932 = vmatprep.subr.mxu0 0.0
        %2933 = vmatpush2.msra.mxu0 0.0
        %2934 = vmatprep.subr.mxu0 0.0
        %2935 = vmatpush2.msra.mxu0 0.0
        %2936 = vmatprep.subr.mxu0 0.0
        %2937 = vmatpush2.msra.mxu0 0.0
        %2938 = vmatprep.subr.mxu0 0.0
        %2939 = vmatpush2.msra.mxu0 0.0
        %2940 = vmatprep.subr.mxu0 0.0
        %2941 = vmatpush2.msra.mxu0 0.0
        %2942 = vmatprep.subr.mxu0 0.0
        %2943 = vmatpush2.msra.mxu0 0.0
        %2944 = vmatprep.subr.mxu0 0.0
        %2945 = vmatpush2.msra.mxu0 0.0
        %2946 = vmatprep.subr.mxu0 0.0
        %2947 = vmatpush2.msra.mxu0 0.0
        %2948 = vmatprep.subr.mxu0 0.0
        %2949 = vmatpush2.msra.mxu0 0.0
        %2950 = vmatprep.subr.mxu0 0.0
        %2951 = vmatpush2.msra.mxu0 0.0
        %2952 = vmatprep.subr.mxu0 0.0
        %2953 = vmatpush2.msra.mxu0 0.0
        %2954 = vmatprep.subr.mxu0 0.0
        %2955 = vmatpush2.msra.mxu0 0.0
        %2956 = vmatprep.subr.mxu0 0.0
        %2957 = vmatpush2.msra.mxu0 0.0
        %2958 = vmatprep.subr.mxu0 0.0
        %2959 = vmatpush2.msra.mxu0 0.0
        %2960 = vmatprep.mubr.f32.mxu0 0.0
        %2961 = vmatmul.mubr.f32.gmra.mxu0 %v2891
        %v2962 = vpop.f32.mrf.mxu0
        %v2963 = vadd.f32 0.0, %v2962
        %v2964 = vpop.f32.mrf.mxu0
        %2965 = vdwg.mxu0
        %v2966 = vadd.f32 %v2764, %v2963
        %v2967 = vld [vmem:[%s7] sm:$0xf]
        %2969 = vset.pattern.permute.xlu0 0
        %2970 = vperm.xlu0 %2969, %v2967
        %v2971 = vpop.permute.xlu0 %2970
        %v2973 = vmul.f32 %v2966, %v2971
        %v2974 = vld [vmem:[%s8] sm:$0xf]
        %2976 = vset.pattern.permute.xlu0 0
        %2977 = vperm.xlu0 %2976, %v2974
        %v2978 = vpop.permute.xlu0 %2977
        %v2980 = vadd.f32 %v2973, %v2978
        %v2981 = vmax.f32 %v2980, 0.0
        %v2982 = vld [vmem:[%s4] sm:$0xff]
        %v2983 = vld [vmem:[%s4 + $0x8] sm:$0xff]
        %v2985 = vsel %vm1431, %v2982, 0
        %v2988 = vsel %vm1431, %v2983, 0
        %v2991 = vsel %vm1435, %v2981, 0
        %2993 = vmatprep.subr.mxu0 0.0
        %2994 = vmatpush1.msra.mxu0 0.0
        %2995 = vmatprep.subr.mxu0 0.0
        %2996 = vmatpush1.msra.mxu0 0.0
        %2997 = vmatprep.subr.mxu0 0.0
        %2998 = vmatpush1.msra.mxu0 0.0
        %2999 = vmatprep.subr.mxu0 0.0
        %3000 = vmatpush1.msra.mxu0 0.0
        %3001 = vmatprep.subr.mxu0 0.0
        %3002 = vmatpush1.msra.mxu0 0.0
        %3003 = vmatprep.subr.mxu0 0.0
        %3004 = vmatpush1.msra.mxu0 0.0
        %3005 = vmatprep.subr.mxu0 0.0
        %3006 = vmatpush1.msra.mxu0 0.0
        %3007 = vmatprep.subr.mxu0 0.0
        %3008 = vmatpush1.msra.mxu0 0.0
        %3009 = vmatprep.subr.mxu0 0.0
        %3010 = vmatpush1.msra.mxu0 0.0
        %3011 = vmatprep.subr.mxu0 0.0
        %3012 = vmatpush1.msra.mxu0 0.0
        %3013 = vmatprep.subr.mxu0 0.0
        %3014 = vmatpush1.msra.mxu0 0.0
        %3015 = vmatprep.subr.mxu0 0.0
        %3016 = vmatpush1.msra.mxu0 0.0
        %3017 = vmatprep.subr.mxu0 0.0
        %3018 = vmatpush1.msra.mxu0 0.0
        %3019 = vmatprep.subr.mxu0 0.0
        %3020 = vmatpush1.msra.mxu0 0.0
        %3021 = vmatprep.subr.mxu0 0.0
        %3022 = vmatpush1.msra.mxu0 0.0
        %3023 = vmatprep.subr.mxu0 0.0
        %3024 = vmatpush1.msra.mxu0 %v2991
        %3025 = vmatprep.subr.mxu0 0.0
        %3026 = vmatpush2.msra.mxu0 0.0
        %3027 = vmatprep.subr.mxu0 0.0
        %3028 = vmatpush2.msra.mxu0 0.0
        %3029 = vmatprep.subr.mxu0 0.0
        %3030 = vmatpush2.msra.mxu0 0.0
        %3031 = vmatprep.subr.mxu0 0.0
        %3032 = vmatpush2.msra.mxu0 0.0
        %3033 = vmatprep.subr.mxu0 0.0
        %3034 = vmatpush2.msra.mxu0 0.0
        %3035 = vmatprep.subr.mxu0 0.0
        %3036 = vmatpush2.msra.mxu0 0.0
        %3037 = vmatprep.subr.mxu0 0.0
        %3038 = vmatpush2.msra.mxu0 0.0
        %3039 = vmatprep.subr.mxu0 0.0
        %3040 = vmatpush2.msra.mxu0 0.0
        %3041 = vmatprep.subr.mxu0 0.0
        %3042 = vmatpush2.msra.mxu0 0.0
        %3043 = vmatprep.subr.mxu0 0.0
        %3044 = vmatpush2.msra.mxu0 0.0
        %3045 = vmatprep.subr.mxu0 0.0
        %3046 = vmatpush2.msra.mxu0 0.0
        %3047 = vmatprep.subr.mxu0 0.0
        %3048 = vmatpush2.msra.mxu0 0.0
        %3049 = vmatprep.subr.mxu0 0.0
        %3050 = vmatpush2.msra.mxu0 0.0
        %3051 = vmatprep.subr.mxu0 0.0
        %3052 = vmatpush2.msra.mxu0 0.0
        %3053 = vmatprep.subr.mxu0 0.0
        %3054 = vmatpush2.msra.mxu0 0.0
        %3055 = vmatprep.subr.mxu0 0.0
        %3056 = vmatpush2.msra.mxu0 0.0
        %3057 = vmatprep.mubr.f32.mxu0 0.0
        %3058 = vmatmul.mubr.f32.gmra.mxu0 %v2985
        %v3059 = vpop.f32.mrf.mxu0
        %v3060 = vadd.f32 0.0, %v3059
        %v3061 = vpop.f32.mrf.mxu0
        %3062 = vmatprep.mubr.f32.mxu0 0.0
        %3063 = vmatmul.mubr.f32.gmra.mxu0 %v2988
        %v3064 = vpop.f32.mrf.mxu0
        %v3065 = vadd.f32 0.0, %v3064
        %v3066 = vpop.f32.mrf.mxu0
        %3067 = vdwg.mxu0
        %v3068 = vld [vmem:[%s9] sm:$0xff]
        %v3069 = vld [vmem:[%s9 + $0x8] sm:$0xff]
        %3071 = vset.pattern.permute.xlu0 0
        %3072 = vperm.xlu0 %3071, %v3068
        %v3073 = vpop.permute.xlu0 %3072
        %3076 = vset.pattern.permute.xlu0 0
        %3077 = vperm.xlu0 %3076, %v3069
        %v3078 = vpop.permute.xlu0 %3077
        %v3080 = vmul.f32 %v3060, %v3073
        %v3081 = vmul.f32 %v3065, %v3078
        %v3082 = vld [vmem:[%s10] sm:$0xff]
        %v3083 = vld [vmem:[%s10 + $0x8] sm:$0xff]
        %3085 = vset.pattern.permute.xlu0 0
        %3086 = vperm.xlu0 %3085, %v3082
        %v3087 = vpop.permute.xlu0 %3086
        %3090 = vset.pattern.permute.xlu0 0
        %3091 = vperm.xlu0 %3090, %v3083
        %v3092 = vpop.permute.xlu0 %3091
        %v3094 = vadd.f32 %v3080, %v3087
        %v3095 = vadd.f32 %v3081, %v3092
        %v3096 = vadd.f32 %v3094, %v445
        %v3097 = vadd.f32 %v3095, %v446
        %v3098 = vmax.f32 %v3096, 0.0
        %v3099 = vmax.f32 %v3097, 0.0
        %3100 = vst [vmem:[%s415] sm:$0xff] %v3098
        %3101 = vst [vmem:[%s415 + $0x8] sm:$0xff] %v3099
        %s3102 = sand.u32 %s264, 1
        %s3103 = scalar_lea.sflag [#allocation7], %s3102
        %s3104 = sand.u32 %s264, 1
        %s3105 = smul.addr %s3104, 16
        %s3106 = scalar_lea.vmem [#allocation6], %s3105
        // Predicated region
        $region99: #{tpu_custom_call.1} parent=93 // pred_check
          %p3107 = pneg %p274
        $region100: #{tpu_custom_call.1} parent=93 // pred_check_branch
          %3109 = sbr.rel (%p3107) target = $region102
        $region101: #{tpu_custom_call.1} parent=93 // pred_region
          %s3111 = ssub.s32 256, 256
          %3112 = vsyncadd %s3103, %s3111
          %s3113 = smul.addr %s29, 4
          %s3114 = sadd.s32 %s30, %s3113
          %s3115 = smul.addr %s3114, 128
          %s3116 = scalar_lea.hbm %s11, %s3115
          %s3117 = sshll.u32 %s3106, 4
          %s3118 = int_to_ptr.vmem [resolvable:$true] %s3117
          %3123 = dma.vmem_to_hbm [thread:$0]  %s3118, 256, %s3116, %s3103, 128, 256, 8
        $region102: #{tpu_custom_call.1} parent=93 // pred_fallthru
          _
      $region94: #{tpu_custom_call.1} parent=5 // pred_fallthru
        _
      %p3124 = scmp.le.s32.totalorder 2, %s20
      // Predicated region
      $region103: #{tpu_custom_call.1} parent=5 // pred_check
        %p3125 = pneg %p3124
      $region104: #{tpu_custom_call.1} parent=5 // pred_check_branch
        %3127 = sbr.rel (%p3125) target = $region106
      $region105: #{tpu_custom_call.1} parent=5 // pred_region
        %s3128 = ssub.s32 %s20, 2
        // Predicated region
        $region107: #{tpu_custom_call.1} parent=105 // pred_check
          %p3129 = pneg %p280
        $region108: #{tpu_custom_call.1} parent=105 // pred_check_branch
          %3131 = sbr.rel (%p3129) target = $region110
        $region109: #{tpu_custom_call.1} parent=105 // pred_region
          %s3132 = sand.u32 %s265, 1
          %s3133 = scalar_lea.sflag [#allocation7], %s3132
          %s3134 = sand.u32 %s265, 1
          %s3135 = smul.addr %s3134, 16
          %s3136 = scalar_lea.vmem [#allocation6], %s3135
          %3137 = dma.done %s3133, 256
        $region110: #{tpu_custom_call.1} parent=105 // pred_fallthru
          _
      $region106: #{tpu_custom_call.1} parent=5 // pred_fallthru
        _
    $region6: #{tpu_custom_call.1} parent=1 // loop_footer
      %s24 = sadd.s32 1, %s20
    $region7: #{tpu_custom_call.1} parent=1 // loop_footer_branch
      %19 = sbr.rel target = $region3
    $region8: #{tpu_custom_call.1} parent=1 // loop_exit
      _
    %3138 = vsyncpa [#allocation7], 1
    %s3139 = scalar_lea.sflag [#allocation7], 1
    %3140 = vsyncpa %s3139, 1
  %3141 = vsyncmov [#allocation3]
  %s3142 = vpop.sfrf %3141
  %p3143 = scmp.eq.s32.totalorder %s3142, 0
  %p3144 = pneg %p3143
  %3146 = shalt.err (%p3144)
  %s3147 = scalar_lea.sflag [#allocation3], 1
  %3148 = vsyncmov %s3147
  %s3149 = vpop.sfrf %3148
  %p3150 = scmp.eq.s32.totalorder %s3149, 0
  %p3151 = pneg %p3150
  %3153 = shalt.err (%p3151)

</llo_original>
